<compile_context>
chip_gen: v5e
topology: v5e:2x2
jax: 0.10.0
libtpu: 0.0.40
codegen_flags: <defaults>
</compile_context>

<pallas_src>
from functools import partial

import jax
import jax.numpy as jnp
from jax.experimental import pallas as pl
from jax.experimental.pallas import tpu as pltpu

EPS = 1e-5  # PyTorch BatchNorm2d default eps


def _tcn_kernel(x_ref, w_ref, g_ref, be_ref, o_ref, cols_ref, *, K, P, M, T, T_out):
    Cin = x_ref.shape[1]

    # ---- im2col straight from x: rows = (t, m), lanes = (k, c); zero only halos ----
    for k in range(K):
        shift = k - P                       # input time = output time + shift
        t_lo = max(0, -shift)               # first valid output time for this tap
        t_hi = min(T_out, T - shift)        # one past last valid output time
        band = slice(k * Cin, (k + 1) * Cin)
        if t_lo > 0:
            cols_ref[:t_lo * M, band] = jnp.zeros((t_lo * M, Cin), cols_ref.dtype)
        if t_hi < T_out:
            cols_ref[t_hi * M:, band] = jnp.zeros(((T_out - t_hi) * M, Cin),
                                                  cols_ref.dtype)
        cols_ref[t_lo * M:t_hi * M, band] = (
            x_ref[(t_lo + shift) * M:(t_hi + shift) * M, :])

    # ---- conv as one (T_out*M, K*Cin) x (K*Cin, Cout) bf16 matmul, f32 accumulate ----
    # (conv bias omitted: a per-channel constant cancels exactly in train-mode BN)
    acc = jnp.dot(cols_ref[...], w_ref[...], preferred_element_type=jnp.float32)

    # ---- BatchNorm2d, train mode: batch stats over all (N, T, V) rows, per channel ----
    mu = jnp.mean(acc, axis=0, keepdims=True)
    var = jnp.mean(jnp.square(acc - mu), axis=0, keepdims=True)   # biased variance
    o_ref[...] = (acc - mu) * (jax.lax.rsqrt(var + EPS) * g_ref[...]) + be_ref[...]


@partial(jax.jit, static_argnames=("K", "stride"))
def tcn_forward(x, params, *, K=9, stride=1):
    """x: (N, C_in, T, V) float32 (PyTorch NCHW). Returns bn(conv(x)) as (N, C_out, T_out, V)."""
    assert stride == 1, "only the default stride=1 is implemented"
    P = (K - 1) // 2
    N, Cin, T, V = x.shape
    Cout = params['w'].shape[2]
    T_out = T + 2 * P - K + 1
    M = N * V

    # NCHW -> (T*M, C): row index = t*M + (n*V + v); channels on the lane axis.
    # Cast to bf16 here so the kernel's input DMA and im2col stores are half-width.
    xr = jnp.transpose(x, (2, 0, 3, 1)).reshape(T * M, Cin).astype(jnp.bfloat16)
    # flatten taps into the contraction dim, cast to bf16 for the MXU
    wr = params['w'].reshape(K * Cin, Cout).astype(jnp.bfloat16)

    kern = partial(_tcn_kernel, K=K, P=P, M=M, T=T, T_out=T_out)
    vmem = pl.BlockSpec(memory_space=pltpu.MemorySpace.VMEM)
    out = pl.pallas_call(
        kern,
        out_shape=jax.ShapeDtypeStruct((T_out * M, Cout), jnp.float32),
        in_specs=[vmem] * 4,
        out_specs=vmem,
        scratch_shapes=[
            pltpu.VMEM((T_out * M, K * Cin), jnp.bfloat16),   # im2col matrix
        ],
        compiler_params=pltpu.CompilerParams(vmem_limit_bytes=48 * 1024 * 1024),
    )(xr, wr, params['g'], params['be'])

    # back to NCHW
    return out.reshape(T_out, N, V, Cout).transpose(1, 3, 0, 2)


def init_params(key, Cin, Cout, K=9, randomize=False):
    """Default init matches the module: conv_init (kaiming_normal fan_out, zero bias)
    + bn_init(bn, 1).  randomize=True perturbs bias/affine params to exercise the
    bias-cancellation and the BN affine."""
    kw, kr = jax.random.split(key)
    std = (2.0 / (Cout * K * 1)) ** 0.5      # fan_out = out_channels * kH * kW
    p = {
        'w': (jax.random.normal(kw, (K, Cin, Cout)) * std).astype(jnp.float32),
        'b': jnp.zeros((1, Cout), jnp.float32),
        'g': jnp.ones((1, Cout), jnp.float32),
        'be': jnp.zeros((1, Cout), jnp.float32),
    }
    if randomize:
        k1, k2, k3 = jax.random.split(kr, 3)
        p['b'] = 0.1 * jax.random.normal(k1, (1, Cout), jnp.float32)
        p['be'] = 0.1 * jax.random.normal(k2, (1, Cout), jnp.float32)
        p['g'] = 1.0 + 0.1 * jax.random.normal(k3, (1, Cout), jnp.float32)
    return p


def _reference_forward(x, params, *, K=9):
    """Pure-JAX reference of the original math: conv (with bias) + train-mode BN."""
    P = (K - 1) // 2
    N, Cin, T, V = x.shape
    Cout = params['w'].shape[2]
    T_out = T + 2 * P - K + 1
    xm = jnp.transpose(x, (0, 3, 2, 1)).reshape(N * V, T, Cin)
    xp = jnp.pad(xm, ((0, 0), (P, P), (0, 0)))
    acc = sum(jnp.einsum('mtc,cd->mtd', xp[:, k:k + T_out, :], params['w'][k])
              for k in range(K)) + params['b']
    mean = jnp.mean(acc, axis=(0, 1), keepdims=True)
    var = jnp.mean((acc - mean) ** 2, axis=(0, 1), keepdims=True)
    y = (acc - mean) * jax.lax.rsqrt(var + EPS) * params['g'] + params['be']
    return y.reshape(N, V, T_out, Cout).transpose(0, 3, 2, 1)


if __name__ == "__main__":
    N, Cin, T, V = 2, 4, 16, 16
    Cout, K = 32, 9

    key = jax.random.PRNGKey(0)
    kx, kp = jax.random.split(key)
    x = jax.random.normal(kx, (N, Cin, T, V), dtype=jnp.float32)

    # 1) PyTorch-default init (gamma=1, beta=0, bias=0)
    params = init_params(kp, Cin, Cout, K=K)
    y = jax.block_until_ready(tcn_forward(x, params, K=K))
    assert y.shape == (N, Cout, T, V), y.shape
    y_ref = jax.block_until_ready(_reference_forward(x, params, K=K))
    assert jnp.allclose(y, y_ref, rtol=5e-2, atol=5e-2), float(jnp.max(jnp.abs(y - y_ref)))

    # 2) randomized bias / BN affine: validates bias cancellation and the affine path
    params_r = init_params(kp, Cin, Cout, K=K, randomize=True)
    y2 = jax.block_until_ready(tcn_forward(x, params_r, K=K))
    y2_ref = jax.block_until_ready(_reference_forward(x, params_r, K=K))
    assert jnp.allclose(y2, y2_ref, rtol=5e-2, atol=5e-2), float(jnp.max(jnp.abs(y2 - y2_ref)))

    print("KERNEL_OK")
</pallas_src>

<mosaic_0001>
module attributes {stable_mosaic.version = 11 : i64} {
  func.func @_tcn_kernel(%arg0: memref<512x4xbf16, #tpu.memory_space<vmem>>, %arg1: memref<36x32xbf16, #tpu.memory_space<vmem>>, %arg2: memref<1x32xf32, #tpu.memory_space<vmem>>, %arg3: memref<1x32xf32, #tpu.memory_space<vmem>>, %arg4: memref<512x32xf32, #tpu.memory_space<vmem>>, %arg5: memref<512x36xbf16, #tpu.memory_space<vmem>>) attributes {dimension_semantics = [], scalar_prefetch = 0 : i64, scratch_operands = 1 : i64, tpu.core_type = #tpu.core_type<tc>} {
    %cst = arith.constant 0.000000e+00 : bf16
    %0 = vector.broadcast %cst : bf16 to vector<128x4xbf16>
    %c0 = arith.constant 0 : index
    %c0_0 = arith.constant 0 : index
    %1 = vector.load %arg5[%c0, %c0_0] : memref<512x36xbf16, #tpu.memory_space<vmem>>, vector<128x4xbf16>
    tpu.vector_store %arg5[%c0, %c0_0], %0 {strides = array<i32>} : memref<512x36xbf16, #tpu.memory_space<vmem>>, vector<128x4xbf16>,
    %c0_1 = arith.constant 0 : index
    %c0_2 = arith.constant 0 : index
    %2 = vector.load %arg0[%c0_1, %c0_2] : memref<512x4xbf16, #tpu.memory_space<vmem>>, vector<384x4xbf16>
    %c128 = arith.constant 128 : index
    %c0_3 = arith.constant 0 : index
    %3 = vector.load %arg5[%c128, %c0_3] : memref<512x36xbf16, #tpu.memory_space<vmem>>, vector<384x4xbf16>
    tpu.vector_store %arg5[%c128, %c0_3], %2 {strides = array<i32>} : memref<512x36xbf16, #tpu.memory_space<vmem>>, vector<384x4xbf16>,
    %cst_4 = arith.constant 0.000000e+00 : bf16
    %4 = vector.broadcast %cst_4 : bf16 to vector<96x4xbf16>
    %c0_5 = arith.constant 0 : index
    %c4 = arith.constant 4 : index
    %5 = vector.load %arg5[%c0_5, %c4] : memref<512x36xbf16, #tpu.memory_space<vmem>>, vector<96x4xbf16>
    tpu.vector_store %arg5[%c0_5, %c4], %4 {strides = array<i32>} : memref<512x36xbf16, #tpu.memory_space<vmem>>, vector<96x4xbf16>,
    %c0_6 = arith.constant 0 : index
    %c0_7 = arith.constant 0 : index
    %6 = vector.load %arg0[%c0_6, %c0_7] : memref<512x4xbf16, #tpu.memory_space<vmem>>, vector<416x4xbf16>
    %c96 = arith.constant 96 : index
    %c4_8 = arith.constant 4 : index
    %7 = vector.load %arg5[%c96, %c4_8] : memref<512x36xbf16, #tpu.memory_space<vmem>>, vector<416x4xbf16>
    tpu.vector_store %arg5[%c96, %c4_8], %6 {strides = array<i32>} : memref<512x36xbf16, #tpu.memory_space<vmem>>, vector<416x4xbf16>,
    %cst_9 = arith.constant 0.000000e+00 : bf16
    %8 = vector.broadcast %cst_9 : bf16 to vector<64x4xbf16>
    %c0_10 = arith.constant 0 : index
    %c8 = arith.constant 8 : index
    %9 = vector.load %arg5[%c0_10, %c8] : memref<512x36xbf16, #tpu.memory_space<vmem>>, vector<64x4xbf16>
    tpu.vector_store %arg5[%c0_10, %c8], %8 {strides = array<i32>} : memref<512x36xbf16, #tpu.memory_space<vmem>>, vector<64x4xbf16>,
    %c0_11 = arith.constant 0 : index
    %c0_12 = arith.constant 0 : index
    %10 = vector.load %arg0[%c0_11, %c0_12] : memref<512x4xbf16, #tpu.memory_space<vmem>>, vector<448x4xbf16>
    %c64 = arith.constant 64 : index
    %c8_13 = arith.constant 8 : index
    %11 = vector.load %arg5[%c64, %c8_13] : memref<512x36xbf16, #tpu.memory_space<vmem>>, vector<448x4xbf16>
    tpu.vector_store %arg5[%c64, %c8_13], %10 {strides = array<i32>} : memref<512x36xbf16, #tpu.memory_space<vmem>>, vector<448x4xbf16>,
    %cst_14 = arith.constant 0.000000e+00 : bf16
    %12 = vector.broadcast %cst_14 : bf16 to vector<32x4xbf16>
    %c0_15 = arith.constant 0 : index
    %c12 = arith.constant 12 : index
    %13 = vector.load %arg5[%c0_15, %c12] : memref<512x36xbf16, #tpu.memory_space<vmem>>, vector<32x4xbf16>
    tpu.vector_store %arg5[%c0_15, %c12], %12 {strides = array<i32>} : memref<512x36xbf16, #tpu.memory_space<vmem>>, vector<32x4xbf16>,
    %c0_16 = arith.constant 0 : index
    %c0_17 = arith.constant 0 : index
    %14 = vector.load %arg0[%c0_16, %c0_17] : memref<512x4xbf16, #tpu.memory_space<vmem>>, vector<480x4xbf16>
    %c32 = arith.constant 32 : index
    %c12_18 = arith.constant 12 : index
    %15 = vector.load %arg5[%c32, %c12_18] : memref<512x36xbf16, #tpu.memory_space<vmem>>, vector<480x4xbf16>
    tpu.vector_store %arg5[%c32, %c12_18], %14 {strides = array<i32>} : memref<512x36xbf16, #tpu.memory_space<vmem>>, vector<480x4xbf16>,
    %c0_19 = arith.constant 0 : index
    %c0_20 = arith.constant 0 : index
    %16 = vector.load %arg0[%c0_19, %c0_20] : memref<512x4xbf16, #tpu.memory_space<vmem>>, vector<512x4xbf16>
    %c0_21 = arith.constant 0 : index
    %c16 = arith.constant 16 : index
    %17 = vector.load %arg5[%c0_21, %c16] : memref<512x36xbf16, #tpu.memory_space<vmem>>, vector<512x4xbf16>
    tpu.vector_store %arg5[%c0_21, %c16], %16 {strides = array<i32>} : memref<512x36xbf16, #tpu.memory_space<vmem>>, vector<512x4xbf16>,
    %cst_22 = arith.constant 0.000000e+00 : bf16
    %18 = vector.broadcast %cst_22 : bf16 to vector<32x4xbf16>
    %c480 = arith.constant 480 : index
    %c20 = arith.constant 20 : index
    %19 = vector.load %arg5[%c480, %c20] : memref<512x36xbf16, #tpu.memory_space<vmem>>, vector<32x4xbf16>
    tpu.vector_store %arg5[%c480, %c20], %18 {strides = array<i32>} : memref<512x36xbf16, #tpu.memory_space<vmem>>, vector<32x4xbf16>,
    %c32_23 = arith.constant 32 : index
    %c0_24 = arith.constant 0 : index
    %20 = vector.load %arg0[%c32_23, %c0_24] : memref<512x4xbf16, #tpu.memory_space<vmem>>, vector<480x4xbf16>
    %c0_25 = arith.constant 0 : index
    %c20_26 = arith.constant 20 : index
    %21 = vector.load %arg5[%c0_25, %c20_26] : memref<512x36xbf16, #tpu.memory_space<vmem>>, vector<480x4xbf16>
    tpu.vector_store %arg5[%c0_25, %c20_26], %20 {strides = array<i32>} : memref<512x36xbf16, #tpu.memory_space<vmem>>, vector<480x4xbf16>,
    %cst_27 = arith.constant 0.000000e+00 : bf16
    %22 = vector.broadcast %cst_27 : bf16 to vector<64x4xbf16>
    %c448 = arith.constant 448 : index
    %c24 = arith.constant 24 : index
    %23 = vector.load %arg5[%c448, %c24] : memref<512x36xbf16, #tpu.memory_space<vmem>>, vector<64x4xbf16>
    tpu.vector_store %arg5[%c448, %c24], %22 {strides = array<i32>} : memref<512x36xbf16, #tpu.memory_space<vmem>>, vector<64x4xbf16>,
    %c64_28 = arith.constant 64 : index
    %c0_29 = arith.constant 0 : index
    %24 = vector.load %arg0[%c64_28, %c0_29] : memref<512x4xbf16, #tpu.memory_space<vmem>>, vector<448x4xbf16>
    %c0_30 = arith.constant 0 : index
    %c24_31 = arith.constant 24 : index
    %25 = vector.load %arg5[%c0_30, %c24_31] : memref<512x36xbf16, #tpu.memory_space<vmem>>, vector<448x4xbf16>
    tpu.vector_store %arg5[%c0_30, %c24_31], %24 {strides = array<i32>} : memref<512x36xbf16, #tpu.memory_space<vmem>>, vector<448x4xbf16>,
    %cst_32 = arith.constant 0.000000e+00 : bf16
    %26 = vector.broadcast %cst_32 : bf16 to vector<96x4xbf16>
    %c416 = arith.constant 416 : index
    %c28 = arith.constant 28 : index
    %27 = vector.load %arg5[%c416, %c28] : memref<512x36xbf16, #tpu.memory_space<vmem>>, vector<96x4xbf16>
    tpu.vector_store %arg5[%c416, %c28], %26 {strides = array<i32>} : memref<512x36xbf16, #tpu.memory_space<vmem>>, vector<96x4xbf16>,
    %c96_33 = arith.constant 96 : index
    %c0_34 = arith.constant 0 : index
    %28 = vector.load %arg0[%c96_33, %c0_34] : memref<512x4xbf16, #tpu.memory_space<vmem>>, vector<416x4xbf16>
    %c0_35 = arith.constant 0 : index
    %c28_36 = arith.constant 28 : index
    %29 = vector.load %arg5[%c0_35, %c28_36] : memref<512x36xbf16, #tpu.memory_space<vmem>>, vector<416x4xbf16>
    tpu.vector_store %arg5[%c0_35, %c28_36], %28 {strides = array<i32>} : memref<512x36xbf16, #tpu.memory_space<vmem>>, vector<416x4xbf16>,
    %cst_37 = arith.constant 0.000000e+00 : bf16
    %30 = vector.broadcast %cst_37 : bf16 to vector<128x4xbf16>
    %c384 = arith.constant 384 : index
    %c32_38 = arith.constant 32 : index
    %31 = vector.load %arg5[%c384, %c32_38] : memref<512x36xbf16, #tpu.memory_space<vmem>>, vector<128x4xbf16>
    tpu.vector_store %arg5[%c384, %c32_38], %30 {strides = array<i32>} : memref<512x36xbf16, #tpu.memory_space<vmem>>, vector<128x4xbf16>,
    %c128_39 = arith.constant 128 : index
    %c0_40 = arith.constant 0 : index
    %32 = vector.load %arg0[%c128_39, %c0_40] : memref<512x4xbf16, #tpu.memory_space<vmem>>, vector<384x4xbf16>
    %c0_41 = arith.constant 0 : index
    %c32_42 = arith.constant 32 : index
    %33 = vector.load %arg5[%c0_41, %c32_42] : memref<512x36xbf16, #tpu.memory_space<vmem>>, vector<384x4xbf16>
    tpu.vector_store %arg5[%c0_41, %c32_42], %32 {strides = array<i32>} : memref<512x36xbf16, #tpu.memory_space<vmem>>, vector<384x4xbf16>,
    %c0_43 = arith.constant 0 : index
    %c0_44 = arith.constant 0 : index
    %34 = vector.load %arg5[%c0_43, %c0_44] : memref<512x36xbf16, #tpu.memory_space<vmem>>, vector<512x36xbf16>
    %c0_45 = arith.constant 0 : index
    %c0_46 = arith.constant 0 : index
    %35 = vector.load %arg1[%c0_45, %c0_46] : memref<36x32xbf16, #tpu.memory_space<vmem>>, vector<36x32xbf16>
    %cst_47 = arith.constant dense<0.000000e+00> : vector<512x32xf32>
    %36 = tpu.matmul %34, %35, %cst_47 {dimension_numbers = #tpu.dot_dimension_numbers<[1], [0], [0], [1], [0, 0, 1, 1], [], []>} : vector<512x36xbf16>, vector<36x32xbf16>, vector<512x32xf32> -> vector<512x32xf32>
    %cst_48 = arith.constant dense<0.000000e+00> : vector<32xf32>
    %37 = vector.multi_reduction <add>, %36, %cst_48 [0] : vector<512x32xf32> to vector<32xf32>
    %38 = vector.shape_cast %37 : vector<32xf32> to vector<1x32xf32>
    %cst_49 = arith.constant 5.120000e+02 : f32
    %39 = vector.broadcast %cst_49 : f32 to vector<1x32xf32>
    %40 = arith.divf %38, %39 : vector<1x32xf32>
    %41 = vector.broadcast %40 : vector<1x32xf32> to vector<512x32xf32>
    %42 = arith.subf %36, %41 : vector<512x32xf32>
    %43 = arith.mulf %42, %42 : vector<512x32xf32>
    %cst_50 = arith.constant dense<0.000000e+00> : vector<32xf32>
    %44 = vector.multi_reduction <add>, %43, %cst_50 [0] : vector<512x32xf32> to vector<32xf32>
    %45 = vector.shape_cast %44 : vector<32xf32> to vector<1x32xf32>
    %cst_51 = arith.constant 5.120000e+02 : f32
    %46 = vector.broadcast %cst_51 : f32 to vector<1x32xf32>
    %47 = arith.divf %45, %46 : vector<1x32xf32>
    %48 = vector.broadcast %40 : vector<1x32xf32> to vector<512x32xf32>
    %49 = arith.subf %36, %48 : vector<512x32xf32>
    %cst_52 = arith.constant 9.99999974E-6 : f32
    %50 = vector.broadcast %cst_52 : f32 to vector<1x32xf32>
    %51 = arith.addf %47, %50 : vector<1x32xf32>
    %52 = math.rsqrt %51 : vector<1x32xf32>
    %c0_53 = arith.constant 0 : index
    %c0_54 = arith.constant 0 : index
    %53 = vector.load %arg2[%c0_53, %c0_54] : memref<1x32xf32, #tpu.memory_space<vmem>>, vector<1x32xf32>
    %54 = arith.mulf %52, %53 : vector<1x32xf32>
    %55 = vector.broadcast %54 : vector<1x32xf32> to vector<512x32xf32>
    %56 = arith.mulf %49, %55 : vector<512x32xf32>
    %c0_55 = arith.constant 0 : index
    %c0_56 = arith.constant 0 : index
    %57 = vector.load %arg3[%c0_55, %c0_56] : memref<1x32xf32, #tpu.memory_space<vmem>>, vector<1x32xf32>
    %58 = vector.broadcast %57 : vector<1x32xf32> to vector<512x32xf32>
    %59 = arith.addf %56, %58 : vector<512x32xf32>
    %c0_57 = arith.constant 0 : index
    %c0_58 = arith.constant 0 : index
    %60 = vector.load %arg4[%c0_57, %c0_58] : memref<512x32xf32, #tpu.memory_space<vmem>>, vector<512x32xf32>
    tpu.vector_store %arg4[%c0_57, %c0_58], %59 {strides = array<i32>} : memref<512x32xf32, #tpu.memory_space<vmem>>, vector<512x32xf32>,
    return
  }
}

</mosaic_0001>

<llo_original>
// kernel: tcn_forward.1
$region0: #{tcn_forward.1}
  #allocation0 [shape = 'u32[]', space=smem, size = 0x4, offset = 0x4, fixed_abs, tag = 'smem constant byte address 0x4 - core index']
  #allocation1 [shape = 'u32[72,128]{1,0:T(1,128)}', space=vmem, size = 0x9000, scoped, tag = 'internal scratch']
  #allocation2 [shape = 'bf16[512,36]{1,0:T(8,128)(2,1)}', space=vmem, size = 0x20000, scoped, tag = 'scratch operand']
  %s0 = inlined_call_operand.vmem [shape: bf16[512,4], index: 0, kind: input, shape index: {}]
  %s1 = inlined_call_operand.vmem [shape: bf16[36,32], index: 1, kind: input, shape index: {}]
  %s2 = inlined_call_operand.vmem [shape: f32[1,32], index: 2, kind: input, shape index: {}]
  %s3 = inlined_call_operand.vmem [shape: f32[1,32], index: 3, kind: input, shape index: {}]
  %s4 = inlined_call_operand.vmem [shape: f32[512,32], index: 4, kind: output, shape index: {}]
  %s5 = sld [smem:[#allocation0]]
  $region26: #{tcn_forward.1} parent=0
    _
  %s7 = ssub.s32 1, %s5
  %s8 = scalar_select 0, %s7, %s5
  // Predicated region
  $region2: #{tcn_forward.1} parent=0 // pred_check
    _
  $region3: #{tcn_forward.1} parent=0 // pred_check_branch
    %10 = sbr.rel (0) target = $region5
  $region4: #{tcn_forward.1} parent=0 // pred_region
    _
  $region5: #{tcn_forward.1} parent=0 // pred_fallthru
    _
  // Predicated region
  $region6: #{tcn_forward.1} parent=0 // pred_check
    _
  $region7: #{tcn_forward.1} parent=0 // pred_check_branch
    %12 = sbr.rel (0) target = $region9
  $region8: #{tcn_forward.1} parent=0 // pred_region
    _
  $region9: #{tcn_forward.1} parent=0 // pred_fallthru
    _
  // Predicated region
  $region10: #{tcn_forward.1} parent=0 // pred_check
    _
  $region11: #{tcn_forward.1} parent=0 // pred_check_branch
    %14 = sbr.rel (0) target = $region13
  $region12: #{tcn_forward.1} parent=0 // pred_region
    _
  $region13: #{tcn_forward.1} parent=0 // pred_fallthru
    _
  // Predicated region
  $region14: #{tcn_forward.1} parent=0 // pred_check
    _
  $region15: #{tcn_forward.1} parent=0 // pred_check_branch
    %16 = sbr.rel (0) target = $region17
  $region16: #{tcn_forward.1} parent=0 // pred_region
    _
  $region17: #{tcn_forward.1} parent=0 // pred_fallthru
    _
  %vm18 = vcmask 27648
  %19 = vst.msk [vmem:[#allocation2] sm:$0xf] %vm18, 0
  %20 = vst.msk [vmem:[#allocation2 + $0x4] sm:$0xf] %vm18, 0
  %21 = vst.msk [vmem:[#allocation2 + $0x8] sm:$0xf] %vm18, 0
  %22 = vst.msk [vmem:[#allocation2 + $0xc] sm:$0xf] %vm18, 0
  %23 = vst.msk [vmem:[#allocation2 + $0x10] sm:$0xf] %vm18, 0
  %24 = vst.msk [vmem:[#allocation2 + $0x14] sm:$0xf] %vm18, 0
  %25 = vst.msk [vmem:[#allocation2 + $0x18] sm:$0xf] %vm18, 0
  %26 = vst.msk [vmem:[#allocation2 + $0x1c] sm:$0xf] %vm18, 0
  %27 = vst.msk [vmem:[#allocation2 + $0x20] sm:$0xf] %vm18, 0
  %28 = vst.msk [vmem:[#allocation2 + $0x24] sm:$0xf] %vm18, 0
  %29 = vst.msk [vmem:[#allocation2 + $0x28] sm:$0xf] %vm18, 0
  %30 = vst.msk [vmem:[#allocation2 + $0x2c] sm:$0xf] %vm18, 0
  %31 = vst.msk [vmem:[#allocation2 + $0x30] sm:$0xf] %vm18, 0
  %32 = vst.msk [vmem:[#allocation2 + $0x34] sm:$0xf] %vm18, 0
  %33 = vst.msk [vmem:[#allocation2 + $0x38] sm:$0xf] %vm18, 0
  %34 = vst.msk [vmem:[#allocation2 + $0x3c] sm:$0xf] %vm18, 0
  %v35 = vld [vmem:[%s0] sm:$0xf]
  %v36 = vld [vmem:[%s0 + $0x4] sm:$0xf]
  %v37 = vld [vmem:[%s0 + $0x8] sm:$0xf]
  %v38 = vld [vmem:[%s0 + $0xc] sm:$0xf]
  %v39 = vld [vmem:[%s0 + $0x10] sm:$0xf]
  %v40 = vld [vmem:[%s0 + $0x14] sm:$0xf]
  %v41 = vld [vmem:[%s0 + $0x18] sm:$0xf]
  %v42 = vld [vmem:[%s0 + $0x1c] sm:$0xf]
  %v43 = vld [vmem:[%s0 + $0x20] sm:$0xf]
  %v44 = vld [vmem:[%s0 + $0x24] sm:$0xf]
  %v45 = vld [vmem:[%s0 + $0x28] sm:$0xf]
  %v46 = vld [vmem:[%s0 + $0x2c] sm:$0xf]
  %v47 = vld [vmem:[%s0 + $0x30] sm:$0xf]
  %v48 = vld [vmem:[%s0 + $0x34] sm:$0xf]
  %v49 = vld [vmem:[%s0 + $0x38] sm:$0xf]
  %v50 = vld [vmem:[%s0 + $0x3c] sm:$0xf]
  %v51 = vld [vmem:[%s0 + $0x40] sm:$0xf]
  %v52 = vld [vmem:[%s0 + $0x44] sm:$0xf]
  %v53 = vld [vmem:[%s0 + $0x48] sm:$0xf]
  %v54 = vld [vmem:[%s0 + $0x4c] sm:$0xf]
  %v55 = vld [vmem:[%s0 + $0x50] sm:$0xf]
  %v56 = vld [vmem:[%s0 + $0x54] sm:$0xf]
  %v57 = vld [vmem:[%s0 + $0x58] sm:$0xf]
  %v58 = vld [vmem:[%s0 + $0x5c] sm:$0xf]
  %v59 = vld [vmem:[%s0 + $0x60] sm:$0xf]
  %v60 = vld [vmem:[%s0 + $0x64] sm:$0xf]
  %v61 = vld [vmem:[%s0 + $0x68] sm:$0xf]
  %v62 = vld [vmem:[%s0 + $0x6c] sm:$0xf]
  %v63 = vld [vmem:[%s0 + $0x70] sm:$0xf]
  %v64 = vld [vmem:[%s0 + $0x74] sm:$0xf]
  %v65 = vld [vmem:[%s0 + $0x78] sm:$0xf]
  %v66 = vld [vmem:[%s0 + $0x7c] sm:$0xf]
  %v67 = vld [vmem:[%s0 + $0x80] sm:$0xf]
  %v68 = vld [vmem:[%s0 + $0x84] sm:$0xf]
  %v69 = vld [vmem:[%s0 + $0x88] sm:$0xf]
  %v70 = vld [vmem:[%s0 + $0x8c] sm:$0xf]
  %v71 = vld [vmem:[%s0 + $0x90] sm:$0xf]
  %v72 = vld [vmem:[%s0 + $0x94] sm:$0xf]
  %v73 = vld [vmem:[%s0 + $0x98] sm:$0xf]
  %v74 = vld [vmem:[%s0 + $0x9c] sm:$0xf]
  %v75 = vld [vmem:[%s0 + $0xa0] sm:$0xf]
  %v76 = vld [vmem:[%s0 + $0xa4] sm:$0xf]
  %v77 = vld [vmem:[%s0 + $0xa8] sm:$0xf]
  %v78 = vld [vmem:[%s0 + $0xac] sm:$0xf]
  %v79 = vld [vmem:[%s0 + $0xb0] sm:$0xf]
  %v80 = vld [vmem:[%s0 + $0xb4] sm:$0xf]
  %v81 = vld [vmem:[%s0 + $0xb8] sm:$0xf]
  %v82 = vld [vmem:[%s0 + $0xbc] sm:$0xf]
  %83 = vst.msk [vmem:[#allocation2 + $0x40] sm:$0xf] %vm18, %v35
  %84 = vst.msk [vmem:[#allocation2 + $0x44] sm:$0xf] %vm18, %v36
  %85 = vst.msk [vmem:[#allocation2 + $0x48] sm:$0xf] %vm18, %v37
  %86 = vst.msk [vmem:[#allocation2 + $0x4c] sm:$0xf] %vm18, %v38
  %87 = vst.msk [vmem:[#allocation2 + $0x50] sm:$0xf] %vm18, %v39
  %88 = vst.msk [vmem:[#allocation2 + $0x54] sm:$0xf] %vm18, %v40
  %89 = vst.msk [vmem:[#allocation2 + $0x58] sm:$0xf] %vm18, %v41
  %90 = vst.msk [vmem:[#allocation2 + $0x5c] sm:$0xf] %vm18, %v42
  %91 = vst.msk [vmem:[#allocation2 + $0x60] sm:$0xf] %vm18, %v43
  %92 = vst.msk [vmem:[#allocation2 + $0x64] sm:$0xf] %vm18, %v44
  %93 = vst.msk [vmem:[#allocation2 + $0x68] sm:$0xf] %vm18, %v45
  %94 = vst.msk [vmem:[#allocation2 + $0x6c] sm:$0xf] %vm18, %v46
  %95 = vst.msk [vmem:[#allocation2 + $0x70] sm:$0xf] %vm18, %v47
  %96 = vst.msk [vmem:[#allocation2 + $0x74] sm:$0xf] %vm18, %v48
  %97 = vst.msk [vmem:[#allocation2 + $0x78] sm:$0xf] %vm18, %v49
  %98 = vst.msk [vmem:[#allocation2 + $0x7c] sm:$0xf] %vm18, %v50
  %99 = vst.msk [vmem:[#allocation2 + $0x80] sm:$0xf] %vm18, %v51
  %100 = vst.msk [vmem:[#allocation2 + $0x84] sm:$0xf] %vm18, %v52
  %101 = vst.msk [vmem:[#allocation2 + $0x88] sm:$0xf] %vm18, %v53
  %102 = vst.msk [vmem:[#allocation2 + $0x8c] sm:$0xf] %vm18, %v54
  %103 = vst.msk [vmem:[#allocation2 + $0x90] sm:$0xf] %vm18, %v55
  %104 = vst.msk [vmem:[#allocation2 + $0x94] sm:$0xf] %vm18, %v56
  %105 = vst.msk [vmem:[#allocation2 + $0x98] sm:$0xf] %vm18, %v57
  %106 = vst.msk [vmem:[#allocation2 + $0x9c] sm:$0xf] %vm18, %v58
  %107 = vst.msk [vmem:[#allocation2 + $0xa0] sm:$0xf] %vm18, %v59
  %108 = vst.msk [vmem:[#allocation2 + $0xa4] sm:$0xf] %vm18, %v60
  %109 = vst.msk [vmem:[#allocation2 + $0xa8] sm:$0xf] %vm18, %v61
  %110 = vst.msk [vmem:[#allocation2 + $0xac] sm:$0xf] %vm18, %v62
  %111 = vst.msk [vmem:[#allocation2 + $0xb0] sm:$0xf] %vm18, %v63
  %112 = vst.msk [vmem:[#allocation2 + $0xb4] sm:$0xf] %vm18, %v64
  %113 = vst.msk [vmem:[#allocation2 + $0xb8] sm:$0xf] %vm18, %v65
  %114 = vst.msk [vmem:[#allocation2 + $0xbc] sm:$0xf] %vm18, %v66
  %115 = vst.msk [vmem:[#allocation2 + $0xc0] sm:$0xf] %vm18, %v67
  %116 = vst.msk [vmem:[#allocation2 + $0xc4] sm:$0xf] %vm18, %v68
  %117 = vst.msk [vmem:[#allocation2 + $0xc8] sm:$0xf] %vm18, %v69
  %118 = vst.msk [vmem:[#allocation2 + $0xcc] sm:$0xf] %vm18, %v70
  %119 = vst.msk [vmem:[#allocation2 + $0xd0] sm:$0xf] %vm18, %v71
  %120 = vst.msk [vmem:[#allocation2 + $0xd4] sm:$0xf] %vm18, %v72
  %121 = vst.msk [vmem:[#allocation2 + $0xd8] sm:$0xf] %vm18, %v73
  %122 = vst.msk [vmem:[#allocation2 + $0xdc] sm:$0xf] %vm18, %v74
  %123 = vst.msk [vmem:[#allocation2 + $0xe0] sm:$0xf] %vm18, %v75
  %124 = vst.msk [vmem:[#allocation2 + $0xe4] sm:$0xf] %vm18, %v76
  %125 = vst.msk [vmem:[#allocation2 + $0xe8] sm:$0xf] %vm18, %v77
  %126 = vst.msk [vmem:[#allocation2 + $0xec] sm:$0xf] %vm18, %v78
  %127 = vst.msk [vmem:[#allocation2 + $0xf0] sm:$0xf] %vm18, %v79
  %128 = vst.msk [vmem:[#allocation2 + $0xf4] sm:$0xf] %vm18, %v80
  %129 = vst.msk [vmem:[#allocation2 + $0xf8] sm:$0xf] %vm18, %v81
  %130 = vst.msk [vmem:[#allocation2 + $0xfc] sm:$0xf] %vm18, %v82
  %vm131 = vcmask 60448
  %132 = vst.msk [vmem:[#allocation2] sm:$0xf] %vm131, 0
  %133 = vst.msk [vmem:[#allocation2 + $0x4] sm:$0xf] %vm131, 0
  %134 = vst.msk [vmem:[#allocation2 + $0x8] sm:$0xf] %vm131, 0
  %135 = vst.msk [vmem:[#allocation2 + $0xc] sm:$0xf] %vm131, 0
  %136 = vst.msk [vmem:[#allocation2 + $0x10] sm:$0xf] %vm131, 0
  %137 = vst.msk [vmem:[#allocation2 + $0x14] sm:$0xf] %vm131, 0
  %138 = vst.msk [vmem:[#allocation2 + $0x18] sm:$0xf] %vm131, 0
  %139 = vst.msk [vmem:[#allocation2 + $0x1c] sm:$0xf] %vm131, 0
  %140 = vst.msk [vmem:[#allocation2 + $0x20] sm:$0xf] %vm131, 0
  %141 = vst.msk [vmem:[#allocation2 + $0x24] sm:$0xf] %vm131, 0
  %142 = vst.msk [vmem:[#allocation2 + $0x28] sm:$0xf] %vm131, 0
  %143 = vst.msk [vmem:[#allocation2 + $0x2c] sm:$0xf] %vm131, 0
  %v144 = vld [vmem:[%s0] sm:$0xf]
  %v145 = vld [vmem:[%s0 + $0x4] sm:$0xf]
  %v146 = vld [vmem:[%s0 + $0x8] sm:$0xf]
  %v147 = vld [vmem:[%s0 + $0xc] sm:$0xf]
  %v148 = vld [vmem:[%s0 + $0x10] sm:$0xf]
  %v149 = vld [vmem:[%s0 + $0x14] sm:$0xf]
  %v150 = vld [vmem:[%s0 + $0x18] sm:$0xf]
  %v151 = vld [vmem:[%s0 + $0x1c] sm:$0xf]
  %v152 = vld [vmem:[%s0 + $0x20] sm:$0xf]
  %v153 = vld [vmem:[%s0 + $0x24] sm:$0xf]
  %v154 = vld [vmem:[%s0 + $0x28] sm:$0xf]
  %v155 = vld [vmem:[%s0 + $0x2c] sm:$0xf]
  %v156 = vld [vmem:[%s0 + $0x30] sm:$0xf]
  %v157 = vld [vmem:[%s0 + $0x34] sm:$0xf]
  %v158 = vld [vmem:[%s0 + $0x38] sm:$0xf]
  %v159 = vld [vmem:[%s0 + $0x3c] sm:$0xf]
  %v160 = vld [vmem:[%s0 + $0x40] sm:$0xf]
  %v161 = vld [vmem:[%s0 + $0x44] sm:$0xf]
  %v162 = vld [vmem:[%s0 + $0x48] sm:$0xf]
  %v163 = vld [vmem:[%s0 + $0x4c] sm:$0xf]
  %v164 = vld [vmem:[%s0 + $0x50] sm:$0xf]
  %v165 = vld [vmem:[%s0 + $0x54] sm:$0xf]
  %v166 = vld [vmem:[%s0 + $0x58] sm:$0xf]
  %v167 = vld [vmem:[%s0 + $0x5c] sm:$0xf]
  %v168 = vld [vmem:[%s0 + $0x60] sm:$0xf]
  %v169 = vld [vmem:[%s0 + $0x64] sm:$0xf]
  %v170 = vld [vmem:[%s0 + $0x68] sm:$0xf]
  %v171 = vld [vmem:[%s0 + $0x6c] sm:$0xf]
  %v172 = vld [vmem:[%s0 + $0x70] sm:$0xf]
  %v173 = vld [vmem:[%s0 + $0x74] sm:$0xf]
  %v174 = vld [vmem:[%s0 + $0x78] sm:$0xf]
  %v175 = vld [vmem:[%s0 + $0x7c] sm:$0xf]
  %v176 = vld [vmem:[%s0 + $0x80] sm:$0xf]
  %v177 = vld [vmem:[%s0 + $0x84] sm:$0xf]
  %v178 = vld [vmem:[%s0 + $0x88] sm:$0xf]
  %v179 = vld [vmem:[%s0 + $0x8c] sm:$0xf]
  %v180 = vld [vmem:[%s0 + $0x90] sm:$0xf]
  %v181 = vld [vmem:[%s0 + $0x94] sm:$0xf]
  %v182 = vld [vmem:[%s0 + $0x98] sm:$0xf]
  %v183 = vld [vmem:[%s0 + $0x9c] sm:$0xf]
  %v184 = vld [vmem:[%s0 + $0xa0] sm:$0xf]
  %v185 = vld [vmem:[%s0 + $0xa4] sm:$0xf]
  %v186 = vld [vmem:[%s0 + $0xa8] sm:$0xf]
  %v187 = vld [vmem:[%s0 + $0xac] sm:$0xf]
  %v188 = vld [vmem:[%s0 + $0xb0] sm:$0xf]
  %v189 = vld [vmem:[%s0 + $0xb4] sm:$0xf]
  %v190 = vld [vmem:[%s0 + $0xb8] sm:$0xf]
  %v191 = vld [vmem:[%s0 + $0xbc] sm:$0xf]
  %v192 = vld [vmem:[%s0 + $0xc0] sm:$0xf]
  %v193 = vld [vmem:[%s0 + $0xc4] sm:$0xf]
  %v194 = vld [vmem:[%s0 + $0xc8] sm:$0xf]
  %v195 = vld [vmem:[%s0 + $0xcc] sm:$0xf]
  %248 = vrot.lane.b32.xlu0 %v144, 4
  %v249 = vpop.permute.xlu0 %248
  %250 = vrot.lane.b32.xlu0 %v145, 4
  %v251 = vpop.permute.xlu0 %250
  %252 = vrot.lane.b32.xlu0 %v146, 4
  %v253 = vpop.permute.xlu0 %252
  %254 = vrot.lane.b32.xlu0 %v147, 4
  %v255 = vpop.permute.xlu0 %254
  %256 = vrot.lane.b32.xlu0 %v148, 4
  %v257 = vpop.permute.xlu0 %256
  %258 = vrot.lane.b32.xlu0 %v149, 4
  %v259 = vpop.permute.xlu0 %258
  %260 = vrot.lane.b32.xlu0 %v150, 4
  %v261 = vpop.permute.xlu0 %260
  %262 = vrot.lane.b32.xlu0 %v151, 4
  %v263 = vpop.permute.xlu0 %262
  %264 = vrot.lane.b32.xlu0 %v152, 4
  %v265 = vpop.permute.xlu0 %264
  %266 = vrot.lane.b32.xlu0 %v153, 4
  %v267 = vpop.permute.xlu0 %266
  %268 = vrot.lane.b32.xlu0 %v154, 4
  %v269 = vpop.permute.xlu0 %268
  %270 = vrot.lane.b32.xlu0 %v155, 4
  %v271 = vpop.permute.xlu0 %270
  %272 = vrot.lane.b32.xlu0 %v156, 4
  %v273 = vpop.permute.xlu0 %272
  %274 = vrot.lane.b32.xlu0 %v157, 4
  %v275 = vpop.permute.xlu0 %274
  %276 = vrot.lane.b32.xlu0 %v158, 4
  %v277 = vpop.permute.xlu0 %276
  %278 = vrot.lane.b32.xlu0 %v159, 4
  %v279 = vpop.permute.xlu0 %278
  %280 = vrot.lane.b32.xlu0 %v160, 4
  %v281 = vpop.permute.xlu0 %280
  %282 = vrot.lane.b32.xlu0 %v161, 4
  %v283 = vpop.permute.xlu0 %282
  %284 = vrot.lane.b32.xlu0 %v162, 4
  %v285 = vpop.permute.xlu0 %284
  %286 = vrot.lane.b32.xlu0 %v163, 4
  %v287 = vpop.permute.xlu0 %286
  %288 = vrot.lane.b32.xlu0 %v164, 4
  %v289 = vpop.permute.xlu0 %288
  %290 = vrot.lane.b32.xlu0 %v165, 4
  %v291 = vpop.permute.xlu0 %290
  %292 = vrot.lane.b32.xlu0 %v166, 4
  %v293 = vpop.permute.xlu0 %292
  %294 = vrot.lane.b32.xlu0 %v167, 4
  %v295 = vpop.permute.xlu0 %294
  %296 = vrot.lane.b32.xlu0 %v168, 4
  %v297 = vpop.permute.xlu0 %296
  %298 = vrot.lane.b32.xlu0 %v169, 4
  %v299 = vpop.permute.xlu0 %298
  %300 = vrot.lane.b32.xlu0 %v170, 4
  %v301 = vpop.permute.xlu0 %300
  %302 = vrot.lane.b32.xlu0 %v171, 4
  %v303 = vpop.permute.xlu0 %302
  %304 = vrot.lane.b32.xlu0 %v172, 4
  %v305 = vpop.permute.xlu0 %304
  %306 = vrot.lane.b32.xlu0 %v173, 4
  %v307 = vpop.permute.xlu0 %306
  %308 = vrot.lane.b32.xlu0 %v174, 4
  %v309 = vpop.permute.xlu0 %308
  %310 = vrot.lane.b32.xlu0 %v175, 4
  %v311 = vpop.permute.xlu0 %310
  %312 = vrot.lane.b32.xlu0 %v176, 4
  %v313 = vpop.permute.xlu0 %312
  %314 = vrot.lane.b32.xlu0 %v177, 4
  %v315 = vpop.permute.xlu0 %314
  %316 = vrot.lane.b32.xlu0 %v178, 4
  %v317 = vpop.permute.xlu0 %316
  %318 = vrot.lane.b32.xlu0 %v179, 4
  %v319 = vpop.permute.xlu0 %318
  %320 = vrot.lane.b32.xlu0 %v180, 4
  %v321 = vpop.permute.xlu0 %320
  %322 = vrot.lane.b32.xlu0 %v181, 4
  %v323 = vpop.permute.xlu0 %322
  %324 = vrot.lane.b32.xlu0 %v182, 4
  %v325 = vpop.permute.xlu0 %324
  %326 = vrot.lane.b32.xlu0 %v183, 4
  %v327 = vpop.permute.xlu0 %326
  %328 = vrot.lane.b32.xlu0 %v184, 4
  %v329 = vpop.permute.xlu0 %328
  %330 = vrot.lane.b32.xlu0 %v185, 4
  %v331 = vpop.permute.xlu0 %330
  %332 = vrot.lane.b32.xlu0 %v186, 4
  %v333 = vpop.permute.xlu0 %332
  %334 = vrot.lane.b32.xlu0 %v187, 4
  %v335 = vpop.permute.xlu0 %334
  %336 = vrot.lane.b32.xlu0 %v188, 4
  %v337 = vpop.permute.xlu0 %336
  %338 = vrot.lane.b32.xlu0 %v189, 4
  %v339 = vpop.permute.xlu0 %338
  %340 = vrot.lane.b32.xlu0 %v190, 4
  %v341 = vpop.permute.xlu0 %340
  %342 = vrot.lane.b32.xlu0 %v191, 4
  %v343 = vpop.permute.xlu0 %342
  %344 = vrot.lane.b32.xlu0 %v192, 4
  %v345 = vpop.permute.xlu0 %344
  %346 = vrot.lane.b32.xlu0 %v193, 4
  %v347 = vpop.permute.xlu0 %346
  %348 = vrot.lane.b32.xlu0 %v194, 4
  %v349 = vpop.permute.xlu0 %348
  %350 = vrot.lane.b32.xlu0 %v195, 4
  %v351 = vpop.permute.xlu0 %350
  %404 = vst.msk [vmem:[#allocation2 + $0x30] sm:$0xf] %vm131, %v249
  %405 = vst.msk [vmem:[#allocation2 + $0x34] sm:$0xf] %vm131, %v251
  %406 = vst.msk [vmem:[#allocation2 + $0x38] sm:$0xf] %vm131, %v253
  %407 = vst.msk [vmem:[#allocation2 + $0x3c] sm:$0xf] %vm131, %v255
  %408 = vst.msk [vmem:[#allocation2 + $0x40] sm:$0xf] %vm131, %v257
  %409 = vst.msk [vmem:[#allocation2 + $0x44] sm:$0xf] %vm131, %v259
  %410 = vst.msk [vmem:[#allocation2 + $0x48] sm:$0xf] %vm131, %v261
  %411 = vst.msk [vmem:[#allocation2 + $0x4c] sm:$0xf] %vm131, %v263
  %412 = vst.msk [vmem:[#allocation2 + $0x50] sm:$0xf] %vm131, %v265
  %413 = vst.msk [vmem:[#allocation2 + $0x54] sm:$0xf] %vm131, %v267
  %414 = vst.msk [vmem:[#allocation2 + $0x58] sm:$0xf] %vm131, %v269
  %415 = vst.msk [vmem:[#allocation2 + $0x5c] sm:$0xf] %vm131, %v271
  %416 = vst.msk [vmem:[#allocation2 + $0x60] sm:$0xf] %vm131, %v273
  %417 = vst.msk [vmem:[#allocation2 + $0x64] sm:$0xf] %vm131, %v275
  %418 = vst.msk [vmem:[#allocation2 + $0x68] sm:$0xf] %vm131, %v277
  %419 = vst.msk [vmem:[#allocation2 + $0x6c] sm:$0xf] %vm131, %v279
  %420 = vst.msk [vmem:[#allocation2 + $0x70] sm:$0xf] %vm131, %v281
  %421 = vst.msk [vmem:[#allocation2 + $0x74] sm:$0xf] %vm131, %v283
  %422 = vst.msk [vmem:[#allocation2 + $0x78] sm:$0xf] %vm131, %v285
  %423 = vst.msk [vmem:[#allocation2 + $0x7c] sm:$0xf] %vm131, %v287
  %424 = vst.msk [vmem:[#allocation2 + $0x80] sm:$0xf] %vm131, %v289
  %425 = vst.msk [vmem:[#allocation2 + $0x84] sm:$0xf] %vm131, %v291
  %426 = vst.msk [vmem:[#allocation2 + $0x88] sm:$0xf] %vm131, %v293
  %427 = vst.msk [vmem:[#allocation2 + $0x8c] sm:$0xf] %vm131, %v295
  %428 = vst.msk [vmem:[#allocation2 + $0x90] sm:$0xf] %vm131, %v297
  %429 = vst.msk [vmem:[#allocation2 + $0x94] sm:$0xf] %vm131, %v299
  %430 = vst.msk [vmem:[#allocation2 + $0x98] sm:$0xf] %vm131, %v301
  %431 = vst.msk [vmem:[#allocation2 + $0x9c] sm:$0xf] %vm131, %v303
  %432 = vst.msk [vmem:[#allocation2 + $0xa0] sm:$0xf] %vm131, %v305
  %433 = vst.msk [vmem:[#allocation2 + $0xa4] sm:$0xf] %vm131, %v307
  %434 = vst.msk [vmem:[#allocation2 + $0xa8] sm:$0xf] %vm131, %v309
  %435 = vst.msk [vmem:[#allocation2 + $0xac] sm:$0xf] %vm131, %v311
  %436 = vst.msk [vmem:[#allocation2 + $0xb0] sm:$0xf] %vm131, %v313
  %437 = vst.msk [vmem:[#allocation2 + $0xb4] sm:$0xf] %vm131, %v315
  %438 = vst.msk [vmem:[#allocation2 + $0xb8] sm:$0xf] %vm131, %v317
  %439 = vst.msk [vmem:[#allocation2 + $0xbc] sm:$0xf] %vm131, %v319
  %440 = vst.msk [vmem:[#allocation2 + $0xc0] sm:$0xf] %vm131, %v321
  %441 = vst.msk [vmem:[#allocation2 + $0xc4] sm:$0xf] %vm131, %v323
  %442 = vst.msk [vmem:[#allocation2 + $0xc8] sm:$0xf] %vm131, %v325
  %443 = vst.msk [vmem:[#allocation2 + $0xcc] sm:$0xf] %vm131, %v327
  %444 = vst.msk [vmem:[#allocation2 + $0xd0] sm:$0xf] %vm131, %v329
  %445 = vst.msk [vmem:[#allocation2 + $0xd4] sm:$0xf] %vm131, %v331
  %446 = vst.msk [vmem:[#allocation2 + $0xd8] sm:$0xf] %vm131, %v333
  %447 = vst.msk [vmem:[#allocation2 + $0xdc] sm:$0xf] %vm131, %v335
  %448 = vst.msk [vmem:[#allocation2 + $0xe0] sm:$0xf] %vm131, %v337
  %449 = vst.msk [vmem:[#allocation2 + $0xe4] sm:$0xf] %vm131, %v339
  %450 = vst.msk [vmem:[#allocation2 + $0xe8] sm:$0xf] %vm131, %v341
  %451 = vst.msk [vmem:[#allocation2 + $0xec] sm:$0xf] %vm131, %v343
  %452 = vst.msk [vmem:[#allocation2 + $0xf0] sm:$0xf] %vm131, %v345
  %453 = vst.msk [vmem:[#allocation2 + $0xf4] sm:$0xf] %vm131, %v347
  %454 = vst.msk [vmem:[#allocation2 + $0xf8] sm:$0xf] %vm131, %v349
  %455 = vst.msk [vmem:[#allocation2 + $0xfc] sm:$0xf] %vm131, %v351
  %vm456 = vcmask 93248
  %457 = vst.msk [vmem:[#allocation2] sm:$0xf] %vm456, 0
  %458 = vst.msk [vmem:[#allocation2 + $0x4] sm:$0xf] %vm456, 0
  %459 = vst.msk [vmem:[#allocation2 + $0x8] sm:$0xf] %vm456, 0
  %460 = vst.msk [vmem:[#allocation2 + $0xc] sm:$0xf] %vm456, 0
  %461 = vst.msk [vmem:[#allocation2 + $0x10] sm:$0xf] %vm456, 0
  %462 = vst.msk [vmem:[#allocation2 + $0x14] sm:$0xf] %vm456, 0
  %463 = vst.msk [vmem:[#allocation2 + $0x18] sm:$0xf] %vm456, 0
  %464 = vst.msk [vmem:[#allocation2 + $0x1c] sm:$0xf] %vm456, 0
  %v465 = vld [vmem:[%s0] sm:$0xf]
  %v466 = vld [vmem:[%s0 + $0x4] sm:$0xf]
  %v467 = vld [vmem:[%s0 + $0x8] sm:$0xf]
  %v468 = vld [vmem:[%s0 + $0xc] sm:$0xf]
  %v469 = vld [vmem:[%s0 + $0x10] sm:$0xf]
  %v470 = vld [vmem:[%s0 + $0x14] sm:$0xf]
  %v471 = vld [vmem:[%s0 + $0x18] sm:$0xf]
  %v472 = vld [vmem:[%s0 + $0x1c] sm:$0xf]
  %v473 = vld [vmem:[%s0 + $0x20] sm:$0xf]
  %v474 = vld [vmem:[%s0 + $0x24] sm:$0xf]
  %v475 = vld [vmem:[%s0 + $0x28] sm:$0xf]
  %v476 = vld [vmem:[%s0 + $0x2c] sm:$0xf]
  %v477 = vld [vmem:[%s0 + $0x30] sm:$0xf]
  %v478 = vld [vmem:[%s0 + $0x34] sm:$0xf]
  %v479 = vld [vmem:[%s0 + $0x38] sm:$0xf]
  %v480 = vld [vmem:[%s0 + $0x3c] sm:$0xf]
  %v481 = vld [vmem:[%s0 + $0x40] sm:$0xf]
  %v482 = vld [vmem:[%s0 + $0x44] sm:$0xf]
  %v483 = vld [vmem:[%s0 + $0x48] sm:$0xf]
  %v484 = vld [vmem:[%s0 + $0x4c] sm:$0xf]
  %v485 = vld [vmem:[%s0 + $0x50] sm:$0xf]
  %v486 = vld [vmem:[%s0 + $0x54] sm:$0xf]
  %v487 = vld [vmem:[%s0 + $0x58] sm:$0xf]
  %v488 = vld [vmem:[%s0 + $0x5c] sm:$0xf]
  %v489 = vld [vmem:[%s0 + $0x60] sm:$0xf]
  %v490 = vld [vmem:[%s0 + $0x64] sm:$0xf]
  %v491 = vld [vmem:[%s0 + $0x68] sm:$0xf]
  %v492 = vld [vmem:[%s0 + $0x6c] sm:$0xf]
  %v493 = vld [vmem:[%s0 + $0x70] sm:$0xf]
  %v494 = vld [vmem:[%s0 + $0x74] sm:$0xf]
  %v495 = vld [vmem:[%s0 + $0x78] sm:$0xf]
  %v496 = vld [vmem:[%s0 + $0x7c] sm:$0xf]
  %v497 = vld [vmem:[%s0 + $0x80] sm:$0xf]
  %v498 = vld [vmem:[%s0 + $0x84] sm:$0xf]
  %v499 = vld [vmem:[%s0 + $0x88] sm:$0xf]
  %v500 = vld [vmem:[%s0 + $0x8c] sm:$0xf]
  %v501 = vld [vmem:[%s0 + $0x90] sm:$0xf]
  %v502 = vld [vmem:[%s0 + $0x94] sm:$0xf]
  %v503 = vld [vmem:[%s0 + $0x98] sm:$0xf]
  %v504 = vld [vmem:[%s0 + $0x9c] sm:$0xf]
  %v505 = vld [vmem:[%s0 + $0xa0] sm:$0xf]
  %v506 = vld [vmem:[%s0 + $0xa4] sm:$0xf]
  %v507 = vld [vmem:[%s0 + $0xa8] sm:$0xf]
  %v508 = vld [vmem:[%s0 + $0xac] sm:$0xf]
  %v509 = vld [vmem:[%s0 + $0xb0] sm:$0xf]
  %v510 = vld [vmem:[%s0 + $0xb4] sm:$0xf]
  %v511 = vld [vmem:[%s0 + $0xb8] sm:$0xf]
  %v512 = vld [vmem:[%s0 + $0xbc] sm:$0xf]
  %v513 = vld [vmem:[%s0 + $0xc0] sm:$0xf]
  %v514 = vld [vmem:[%s0 + $0xc4] sm:$0xf]
  %v515 = vld [vmem:[%s0 + $0xc8] sm:$0xf]
  %v516 = vld [vmem:[%s0 + $0xcc] sm:$0xf]
  %v517 = vld [vmem:[%s0 + $0xd0] sm:$0xf]
  %v518 = vld [vmem:[%s0 + $0xd4] sm:$0xf]
  %v519 = vld [vmem:[%s0 + $0xd8] sm:$0xf]
  %v520 = vld [vmem:[%s0 + $0xdc] sm:$0xf]
  %577 = vrot.lane.b32.xlu0 %v465, 8
  %v578 = vpop.permute.xlu0 %577
  %579 = vrot.lane.b32.xlu0 %v466, 8
  %v580 = vpop.permute.xlu0 %579
  %581 = vrot.lane.b32.xlu0 %v467, 8
  %v582 = vpop.permute.xlu0 %581
  %583 = vrot.lane.b32.xlu0 %v468, 8
  %v584 = vpop.permute.xlu0 %583
  %585 = vrot.lane.b32.xlu0 %v469, 8
  %v586 = vpop.permute.xlu0 %585
  %587 = vrot.lane.b32.xlu0 %v470, 8
  %v588 = vpop.permute.xlu0 %587
  %589 = vrot.lane.b32.xlu0 %v471, 8
  %v590 = vpop.permute.xlu0 %589
  %591 = vrot.lane.b32.xlu0 %v472, 8
  %v592 = vpop.permute.xlu0 %591
  %593 = vrot.lane.b32.xlu0 %v473, 8
  %v594 = vpop.permute.xlu0 %593
  %595 = vrot.lane.b32.xlu0 %v474, 8
  %v596 = vpop.permute.xlu0 %595
  %597 = vrot.lane.b32.xlu0 %v475, 8
  %v598 = vpop.permute.xlu0 %597
  %599 = vrot.lane.b32.xlu0 %v476, 8
  %v600 = vpop.permute.xlu0 %599
  %601 = vrot.lane.b32.xlu0 %v477, 8
  %v602 = vpop.permute.xlu0 %601
  %603 = vrot.lane.b32.xlu0 %v478, 8
  %v604 = vpop.permute.xlu0 %603
  %605 = vrot.lane.b32.xlu0 %v479, 8
  %v606 = vpop.permute.xlu0 %605
  %607 = vrot.lane.b32.xlu0 %v480, 8
  %v608 = vpop.permute.xlu0 %607
  %609 = vrot.lane.b32.xlu0 %v481, 8
  %v610 = vpop.permute.xlu0 %609
  %611 = vrot.lane.b32.xlu0 %v482, 8
  %v612 = vpop.permute.xlu0 %611
  %613 = vrot.lane.b32.xlu0 %v483, 8
  %v614 = vpop.permute.xlu0 %613
  %615 = vrot.lane.b32.xlu0 %v484, 8
  %v616 = vpop.permute.xlu0 %615
  %617 = vrot.lane.b32.xlu0 %v485, 8
  %v618 = vpop.permute.xlu0 %617
  %619 = vrot.lane.b32.xlu0 %v486, 8
  %v620 = vpop.permute.xlu0 %619
  %621 = vrot.lane.b32.xlu0 %v487, 8
  %v622 = vpop.permute.xlu0 %621
  %623 = vrot.lane.b32.xlu0 %v488, 8
  %v624 = vpop.permute.xlu0 %623
  %625 = vrot.lane.b32.xlu0 %v489, 8
  %v626 = vpop.permute.xlu0 %625
  %627 = vrot.lane.b32.xlu0 %v490, 8
  %v628 = vpop.permute.xlu0 %627
  %629 = vrot.lane.b32.xlu0 %v491, 8
  %v630 = vpop.permute.xlu0 %629
  %631 = vrot.lane.b32.xlu0 %v492, 8
  %v632 = vpop.permute.xlu0 %631
  %633 = vrot.lane.b32.xlu0 %v493, 8
  %v634 = vpop.permute.xlu0 %633
  %635 = vrot.lane.b32.xlu0 %v494, 8
  %v636 = vpop.permute.xlu0 %635
  %637 = vrot.lane.b32.xlu0 %v495, 8
  %v638 = vpop.permute.xlu0 %637
  %639 = vrot.lane.b32.xlu0 %v496, 8
  %v640 = vpop.permute.xlu0 %639
  %641 = vrot.lane.b32.xlu0 %v497, 8
  %v642 = vpop.permute.xlu0 %641
  %643 = vrot.lane.b32.xlu0 %v498, 8
  %v644 = vpop.permute.xlu0 %643
  %645 = vrot.lane.b32.xlu0 %v499, 8
  %v646 = vpop.permute.xlu0 %645
  %647 = vrot.lane.b32.xlu0 %v500, 8
  %v648 = vpop.permute.xlu0 %647
  %649 = vrot.lane.b32.xlu0 %v501, 8
  %v650 = vpop.permute.xlu0 %649
  %651 = vrot.lane.b32.xlu0 %v502, 8
  %v652 = vpop.permute.xlu0 %651
  %653 = vrot.lane.b32.xlu0 %v503, 8
  %v654 = vpop.permute.xlu0 %653
  %655 = vrot.lane.b32.xlu0 %v504, 8
  %v656 = vpop.permute.xlu0 %655
  %657 = vrot.lane.b32.xlu0 %v505, 8
  %v658 = vpop.permute.xlu0 %657
  %659 = vrot.lane.b32.xlu0 %v506, 8
  %v660 = vpop.permute.xlu0 %659
  %661 = vrot.lane.b32.xlu0 %v507, 8
  %v662 = vpop.permute.xlu0 %661
  %663 = vrot.lane.b32.xlu0 %v508, 8
  %v664 = vpop.permute.xlu0 %663
  %665 = vrot.lane.b32.xlu0 %v509, 8
  %v666 = vpop.permute.xlu0 %665
  %667 = vrot.lane.b32.xlu0 %v510, 8
  %v668 = vpop.permute.xlu0 %667
  %669 = vrot.lane.b32.xlu0 %v511, 8
  %v670 = vpop.permute.xlu0 %669
  %671 = vrot.lane.b32.xlu0 %v512, 8
  %v672 = vpop.permute.xlu0 %671
  %673 = vrot.lane.b32.xlu0 %v513, 8
  %v674 = vpop.permute.xlu0 %673
  %675 = vrot.lane.b32.xlu0 %v514, 8
  %v676 = vpop.permute.xlu0 %675
  %677 = vrot.lane.b32.xlu0 %v515, 8
  %v678 = vpop.permute.xlu0 %677
  %679 = vrot.lane.b32.xlu0 %v516, 8
  %v680 = vpop.permute.xlu0 %679
  %681 = vrot.lane.b32.xlu0 %v517, 8
  %v682 = vpop.permute.xlu0 %681
  %683 = vrot.lane.b32.xlu0 %v518, 8
  %v684 = vpop.permute.xlu0 %683
  %685 = vrot.lane.b32.xlu0 %v519, 8
  %v686 = vpop.permute.xlu0 %685
  %687 = vrot.lane.b32.xlu0 %v520, 8
  %v688 = vpop.permute.xlu0 %687
  %745 = vst.msk [vmem:[#allocation2 + $0x20] sm:$0xf] %vm456, %v578
  %746 = vst.msk [vmem:[#allocation2 + $0x24] sm:$0xf] %vm456, %v580
  %747 = vst.msk [vmem:[#allocation2 + $0x28] sm:$0xf] %vm456, %v582
  %748 = vst.msk [vmem:[#allocation2 + $0x2c] sm:$0xf] %vm456, %v584
  %749 = vst.msk [vmem:[#allocation2 + $0x30] sm:$0xf] %vm456, %v586
  %750 = vst.msk [vmem:[#allocation2 + $0x34] sm:$0xf] %vm456, %v588
  %751 = vst.msk [vmem:[#allocation2 + $0x38] sm:$0xf] %vm456, %v590
  %752 = vst.msk [vmem:[#allocation2 + $0x3c] sm:$0xf] %vm456, %v592
  %753 = vst.msk [vmem:[#allocation2 + $0x40] sm:$0xf] %vm456, %v594
  %754 = vst.msk [vmem:[#allocation2 + $0x44] sm:$0xf] %vm456, %v596
  %755 = vst.msk [vmem:[#allocation2 + $0x48] sm:$0xf] %vm456, %v598
  %756 = vst.msk [vmem:[#allocation2 + $0x4c] sm:$0xf] %vm456, %v600
  %757 = vst.msk [vmem:[#allocation2 + $0x50] sm:$0xf] %vm456, %v602
  %758 = vst.msk [vmem:[#allocation2 + $0x54] sm:$0xf] %vm456, %v604
  %759 = vst.msk [vmem:[#allocation2 + $0x58] sm:$0xf] %vm456, %v606
  %760 = vst.msk [vmem:[#allocation2 + $0x5c] sm:$0xf] %vm456, %v608
  %761 = vst.msk [vmem:[#allocation2 + $0x60] sm:$0xf] %vm456, %v610
  %762 = vst.msk [vmem:[#allocation2 + $0x64] sm:$0xf] %vm456, %v612
  %763 = vst.msk [vmem:[#allocation2 + $0x68] sm:$0xf] %vm456, %v614
  %764 = vst.msk [vmem:[#allocation2 + $0x6c] sm:$0xf] %vm456, %v616
  %765 = vst.msk [vmem:[#allocation2 + $0x70] sm:$0xf] %vm456, %v618
  %766 = vst.msk [vmem:[#allocation2 + $0x74] sm:$0xf] %vm456, %v620
  %767 = vst.msk [vmem:[#allocation2 + $0x78] sm:$0xf] %vm456, %v622
  %768 = vst.msk [vmem:[#allocation2 + $0x7c] sm:$0xf] %vm456, %v624
  %769 = vst.msk [vmem:[#allocation2 + $0x80] sm:$0xf] %vm456, %v626
  %770 = vst.msk [vmem:[#allocation2 + $0x84] sm:$0xf] %vm456, %v628
  %771 = vst.msk [vmem:[#allocation2 + $0x88] sm:$0xf] %vm456, %v630
  %772 = vst.msk [vmem:[#allocation2 + $0x8c] sm:$0xf] %vm456, %v632
  %773 = vst.msk [vmem:[#allocation2 + $0x90] sm:$0xf] %vm456, %v634
  %774 = vst.msk [vmem:[#allocation2 + $0x94] sm:$0xf] %vm456, %v636
  %775 = vst.msk [vmem:[#allocation2 + $0x98] sm:$0xf] %vm456, %v638
  %776 = vst.msk [vmem:[#allocation2 + $0x9c] sm:$0xf] %vm456, %v640
  %777 = vst.msk [vmem:[#allocation2 + $0xa0] sm:$0xf] %vm456, %v642
  %778 = vst.msk [vmem:[#allocation2 + $0xa4] sm:$0xf] %vm456, %v644
  %779 = vst.msk [vmem:[#allocation2 + $0xa8] sm:$0xf] %vm456, %v646
  %780 = vst.msk [vmem:[#allocation2 + $0xac] sm:$0xf] %vm456, %v648
  %781 = vst.msk [vmem:[#allocation2 + $0xb0] sm:$0xf] %vm456, %v650
  %782 = vst.msk [vmem:[#allocation2 + $0xb4] sm:$0xf] %vm456, %v652
  %783 = vst.msk [vmem:[#allocation2 + $0xb8] sm:$0xf] %vm456, %v654
  %784 = vst.msk [vmem:[#allocation2 + $0xbc] sm:$0xf] %vm456, %v656
  %785 = vst.msk [vmem:[#allocation2 + $0xc0] sm:$0xf] %vm456, %v658
  %786 = vst.msk [vmem:[#allocation2 + $0xc4] sm:$0xf] %vm456, %v660
  %787 = vst.msk [vmem:[#allocation2 + $0xc8] sm:$0xf] %vm456, %v662
  %788 = vst.msk [vmem:[#allocation2 + $0xcc] sm:$0xf] %vm456, %v664
  %789 = vst.msk [vmem:[#allocation2 + $0xd0] sm:$0xf] %vm456, %v666
  %790 = vst.msk [vmem:[#allocation2 + $0xd4] sm:$0xf] %vm456, %v668
  %791 = vst.msk [vmem:[#allocation2 + $0xd8] sm:$0xf] %vm456, %v670
  %792 = vst.msk [vmem:[#allocation2 + $0xdc] sm:$0xf] %vm456, %v672
  %793 = vst.msk [vmem:[#allocation2 + $0xe0] sm:$0xf] %vm456, %v674
  %794 = vst.msk [vmem:[#allocation2 + $0xe4] sm:$0xf] %vm456, %v676
  %795 = vst.msk [vmem:[#allocation2 + $0xe8] sm:$0xf] %vm456, %v678
  %796 = vst.msk [vmem:[#allocation2 + $0xec] sm:$0xf] %vm456, %v680
  %797 = vst.msk [vmem:[#allocation2 + $0xf0] sm:$0xf] %vm456, %v682
  %798 = vst.msk [vmem:[#allocation2 + $0xf4] sm:$0xf] %vm456, %v684
  %799 = vst.msk [vmem:[#allocation2 + $0xf8] sm:$0xf] %vm456, %v686
  %800 = vst.msk [vmem:[#allocation2 + $0xfc] sm:$0xf] %vm456, %v688
  %vm801 = vcmask 126048
  %802 = vst.msk [vmem:[#allocation2] sm:$0xf] %vm801, 0
  %803 = vst.msk [vmem:[#allocation2 + $0x4] sm:$0xf] %vm801, 0
  %804 = vst.msk [vmem:[#allocation2 + $0x8] sm:$0xf] %vm801, 0
  %805 = vst.msk [vmem:[#allocation2 + $0xc] sm:$0xf] %vm801, 0
  %v806 = vld [vmem:[%s0] sm:$0xf]
  %v807 = vld [vmem:[%s0 + $0x4] sm:$0xf]
  %v808 = vld [vmem:[%s0 + $0x8] sm:$0xf]
  %v809 = vld [vmem:[%s0 + $0xc] sm:$0xf]
  %v810 = vld [vmem:[%s0 + $0x10] sm:$0xf]
  %v811 = vld [vmem:[%s0 + $0x14] sm:$0xf]
  %v812 = vld [vmem:[%s0 + $0x18] sm:$0xf]
  %v813 = vld [vmem:[%s0 + $0x1c] sm:$0xf]
  %v814 = vld [vmem:[%s0 + $0x20] sm:$0xf]
  %v815 = vld [vmem:[%s0 + $0x24] sm:$0xf]
  %v816 = vld [vmem:[%s0 + $0x28] sm:$0xf]
  %v817 = vld [vmem:[%s0 + $0x2c] sm:$0xf]
  %v818 = vld [vmem:[%s0 + $0x30] sm:$0xf]
  %v819 = vld [vmem:[%s0 + $0x34] sm:$0xf]
  %v820 = vld [vmem:[%s0 + $0x38] sm:$0xf]
  %v821 = vld [vmem:[%s0 + $0x3c] sm:$0xf]
  %v822 = vld [vmem:[%s0 + $0x40] sm:$0xf]
  %v823 = vld [vmem:[%s0 + $0x44] sm:$0xf]
  %v824 = vld [vmem:[%s0 + $0x48] sm:$0xf]
  %v825 = vld [vmem:[%s0 + $0x4c] sm:$0xf]
  %v826 = vld [vmem:[%s0 + $0x50] sm:$0xf]
  %v827 = vld [vmem:[%s0 + $0x54] sm:$0xf]
  %v828 = vld [vmem:[%s0 + $0x58] sm:$0xf]
  %v829 = vld [vmem:[%s0 + $0x5c] sm:$0xf]
  %v830 = vld [vmem:[%s0 + $0x60] sm:$0xf]
  %v831 = vld [vmem:[%s0 + $0x64] sm:$0xf]
  %v832 = vld [vmem:[%s0 + $0x68] sm:$0xf]
  %v833 = vld [vmem:[%s0 + $0x6c] sm:$0xf]
  %v834 = vld [vmem:[%s0 + $0x70] sm:$0xf]
  %v835 = vld [vmem:[%s0 + $0x74] sm:$0xf]
  %v836 = vld [vmem:[%s0 + $0x78] sm:$0xf]
  %v837 = vld [vmem:[%s0 + $0x7c] sm:$0xf]
  %v838 = vld [vmem:[%s0 + $0x80] sm:$0xf]
  %v839 = vld [vmem:[%s0 + $0x84] sm:$0xf]
  %v840 = vld [vmem:[%s0 + $0x88] sm:$0xf]
  %v841 = vld [vmem:[%s0 + $0x8c] sm:$0xf]
  %v842 = vld [vmem:[%s0 + $0x90] sm:$0xf]
  %v843 = vld [vmem:[%s0 + $0x94] sm:$0xf]
  %v844 = vld [vmem:[%s0 + $0x98] sm:$0xf]
  %v845 = vld [vmem:[%s0 + $0x9c] sm:$0xf]
  %v846 = vld [vmem:[%s0 + $0xa0] sm:$0xf]
  %v847 = vld [vmem:[%s0 + $0xa4] sm:$0xf]
  %v848 = vld [vmem:[%s0 + $0xa8] sm:$0xf]
  %v849 = vld [vmem:[%s0 + $0xac] sm:$0xf]
  %v850 = vld [vmem:[%s0 + $0xb0] sm:$0xf]
  %v851 = vld [vmem:[%s0 + $0xb4] sm:$0xf]
  %v852 = vld [vmem:[%s0 + $0xb8] sm:$0xf]
  %v853 = vld [vmem:[%s0 + $0xbc] sm:$0xf]
  %v854 = vld [vmem:[%s0 + $0xc0] sm:$0xf]
  %v855 = vld [vmem:[%s0 + $0xc4] sm:$0xf]
  %v856 = vld [vmem:[%s0 + $0xc8] sm:$0xf]
  %v857 = vld [vmem:[%s0 + $0xcc] sm:$0xf]
  %v858 = vld [vmem:[%s0 + $0xd0] sm:$0xf]
  %v859 = vld [vmem:[%s0 + $0xd4] sm:$0xf]
  %v860 = vld [vmem:[%s0 + $0xd8] sm:$0xf]
  %v861 = vld [vmem:[%s0 + $0xdc] sm:$0xf]
  %v862 = vld [vmem:[%s0 + $0xe0] sm:$0xf]
  %v863 = vld [vmem:[%s0 + $0xe4] sm:$0xf]
  %v864 = vld [vmem:[%s0 + $0xe8] sm:$0xf]
  %v865 = vld [vmem:[%s0 + $0xec] sm:$0xf]
  %926 = vrot.lane.b32.xlu0 %v806, 12
  %v927 = vpop.permute.xlu0 %926
  %928 = vrot.lane.b32.xlu0 %v807, 12
  %v929 = vpop.permute.xlu0 %928
  %930 = vrot.lane.b32.xlu0 %v808, 12
  %v931 = vpop.permute.xlu0 %930
  %932 = vrot.lane.b32.xlu0 %v809, 12
  %v933 = vpop.permute.xlu0 %932
  %934 = vrot.lane.b32.xlu0 %v810, 12
  %v935 = vpop.permute.xlu0 %934
  %936 = vrot.lane.b32.xlu0 %v811, 12
  %v937 = vpop.permute.xlu0 %936
  %938 = vrot.lane.b32.xlu0 %v812, 12
  %v939 = vpop.permute.xlu0 %938
  %940 = vrot.lane.b32.xlu0 %v813, 12
  %v941 = vpop.permute.xlu0 %940
  %942 = vrot.lane.b32.xlu0 %v814, 12
  %v943 = vpop.permute.xlu0 %942
  %944 = vrot.lane.b32.xlu0 %v815, 12
  %v945 = vpop.permute.xlu0 %944
  %946 = vrot.lane.b32.xlu0 %v816, 12
  %v947 = vpop.permute.xlu0 %946
  %948 = vrot.lane.b32.xlu0 %v817, 12
  %v949 = vpop.permute.xlu0 %948
  %950 = vrot.lane.b32.xlu0 %v818, 12
  %v951 = vpop.permute.xlu0 %950
  %952 = vrot.lane.b32.xlu0 %v819, 12
  %v953 = vpop.permute.xlu0 %952
  %954 = vrot.lane.b32.xlu0 %v820, 12
  %v955 = vpop.permute.xlu0 %954
  %956 = vrot.lane.b32.xlu0 %v821, 12
  %v957 = vpop.permute.xlu0 %956
  %958 = vrot.lane.b32.xlu0 %v822, 12
  %v959 = vpop.permute.xlu0 %958
  %960 = vrot.lane.b32.xlu0 %v823, 12
  %v961 = vpop.permute.xlu0 %960
  %962 = vrot.lane.b32.xlu0 %v824, 12
  %v963 = vpop.permute.xlu0 %962
  %964 = vrot.lane.b32.xlu0 %v825, 12
  %v965 = vpop.permute.xlu0 %964
  %966 = vrot.lane.b32.xlu0 %v826, 12
  %v967 = vpop.permute.xlu0 %966
  %968 = vrot.lane.b32.xlu0 %v827, 12
  %v969 = vpop.permute.xlu0 %968
  %970 = vrot.lane.b32.xlu0 %v828, 12
  %v971 = vpop.permute.xlu0 %970
  %972 = vrot.lane.b32.xlu0 %v829, 12
  %v973 = vpop.permute.xlu0 %972
  %974 = vrot.lane.b32.xlu0 %v830, 12
  %v975 = vpop.permute.xlu0 %974
  %976 = vrot.lane.b32.xlu0 %v831, 12
  %v977 = vpop.permute.xlu0 %976
  %978 = vrot.lane.b32.xlu0 %v832, 12
  %v979 = vpop.permute.xlu0 %978
  %980 = vrot.lane.b32.xlu0 %v833, 12
  %v981 = vpop.permute.xlu0 %980
  %982 = vrot.lane.b32.xlu0 %v834, 12
  %v983 = vpop.permute.xlu0 %982
  %984 = vrot.lane.b32.xlu0 %v835, 12
  %v985 = vpop.permute.xlu0 %984
  %986 = vrot.lane.b32.xlu0 %v836, 12
  %v987 = vpop.permute.xlu0 %986
  %988 = vrot.lane.b32.xlu0 %v837, 12
  %v989 = vpop.permute.xlu0 %988
  %990 = vrot.lane.b32.xlu0 %v838, 12
  %v991 = vpop.permute.xlu0 %990
  %992 = vrot.lane.b32.xlu0 %v839, 12
  %v993 = vpop.permute.xlu0 %992
  %994 = vrot.lane.b32.xlu0 %v840, 12
  %v995 = vpop.permute.xlu0 %994
  %996 = vrot.lane.b32.xlu0 %v841, 12
  %v997 = vpop.permute.xlu0 %996
  %998 = vrot.lane.b32.xlu0 %v842, 12
  %v999 = vpop.permute.xlu0 %998
  %1000 = vrot.lane.b32.xlu0 %v843, 12
  %v1001 = vpop.permute.xlu0 %1000
  %1002 = vrot.lane.b32.xlu0 %v844, 12
  %v1003 = vpop.permute.xlu0 %1002
  %1004 = vrot.lane.b32.xlu0 %v845, 12
  %v1005 = vpop.permute.xlu0 %1004
  %1006 = vrot.lane.b32.xlu0 %v846, 12
  %v1007 = vpop.permute.xlu0 %1006
  %1008 = vrot.lane.b32.xlu0 %v847, 12
  %v1009 = vpop.permute.xlu0 %1008
  %1010 = vrot.lane.b32.xlu0 %v848, 12
  %v1011 = vpop.permute.xlu0 %1010
  %1012 = vrot.lane.b32.xlu0 %v849, 12
  %v1013 = vpop.permute.xlu0 %1012
  %1014 = vrot.lane.b32.xlu0 %v850, 12
  %v1015 = vpop.permute.xlu0 %1014
  %1016 = vrot.lane.b32.xlu0 %v851, 12
  %v1017 = vpop.permute.xlu0 %1016
  %1018 = vrot.lane.b32.xlu0 %v852, 12
  %v1019 = vpop.permute.xlu0 %1018
  %1020 = vrot.lane.b32.xlu0 %v853, 12
  %v1021 = vpop.permute.xlu0 %1020
  %1022 = vrot.lane.b32.xlu0 %v854, 12
  %v1023 = vpop.permute.xlu0 %1022
  %1024 = vrot.lane.b32.xlu0 %v855, 12
  %v1025 = vpop.permute.xlu0 %1024
  %1026 = vrot.lane.b32.xlu0 %v856, 12
  %v1027 = vpop.permute.xlu0 %1026
  %1028 = vrot.lane.b32.xlu0 %v857, 12
  %v1029 = vpop.permute.xlu0 %1028
  %1030 = vrot.lane.b32.xlu0 %v858, 12
  %v1031 = vpop.permute.xlu0 %1030
  %1032 = vrot.lane.b32.xlu0 %v859, 12
  %v1033 = vpop.permute.xlu0 %1032
  %1034 = vrot.lane.b32.xlu0 %v860, 12
  %v1035 = vpop.permute.xlu0 %1034
  %1036 = vrot.lane.b32.xlu0 %v861, 12
  %v1037 = vpop.permute.xlu0 %1036
  %1038 = vrot.lane.b32.xlu0 %v862, 12
  %v1039 = vpop.permute.xlu0 %1038
  %1040 = vrot.lane.b32.xlu0 %v863, 12
  %v1041 = vpop.permute.xlu0 %1040
  %1042 = vrot.lane.b32.xlu0 %v864, 12
  %v1043 = vpop.permute.xlu0 %1042
  %1044 = vrot.lane.b32.xlu0 %v865, 12
  %v1045 = vpop.permute.xlu0 %1044
  %1106 = vst.msk [vmem:[#allocation2 + $0x10] sm:$0xf] %vm801, %v927
  %1107 = vst.msk [vmem:[#allocation2 + $0x14] sm:$0xf] %vm801, %v929
  %1108 = vst.msk [vmem:[#allocation2 + $0x18] sm:$0xf] %vm801, %v931
  %1109 = vst.msk [vmem:[#allocation2 + $0x1c] sm:$0xf] %vm801, %v933
  %1110 = vst.msk [vmem:[#allocation2 + $0x20] sm:$0xf] %vm801, %v935
  %1111 = vst.msk [vmem:[#allocation2 + $0x24] sm:$0xf] %vm801, %v937
  %1112 = vst.msk [vmem:[#allocation2 + $0x28] sm:$0xf] %vm801, %v939
  %1113 = vst.msk [vmem:[#allocation2 + $0x2c] sm:$0xf] %vm801, %v941
  %1114 = vst.msk [vmem:[#allocation2 + $0x30] sm:$0xf] %vm801, %v943
  %1115 = vst.msk [vmem:[#allocation2 + $0x34] sm:$0xf] %vm801, %v945
  %1116 = vst.msk [vmem:[#allocation2 + $0x38] sm:$0xf] %vm801, %v947
  %1117 = vst.msk [vmem:[#allocation2 + $0x3c] sm:$0xf] %vm801, %v949
  %1118 = vst.msk [vmem:[#allocation2 + $0x40] sm:$0xf] %vm801, %v951
  %1119 = vst.msk [vmem:[#allocation2 + $0x44] sm:$0xf] %vm801, %v953
  %1120 = vst.msk [vmem:[#allocation2 + $0x48] sm:$0xf] %vm801, %v955
  %1121 = vst.msk [vmem:[#allocation2 + $0x4c] sm:$0xf] %vm801, %v957
  %1122 = vst.msk [vmem:[#allocation2 + $0x50] sm:$0xf] %vm801, %v959
  %1123 = vst.msk [vmem:[#allocation2 + $0x54] sm:$0xf] %vm801, %v961
  %1124 = vst.msk [vmem:[#allocation2 + $0x58] sm:$0xf] %vm801, %v963
  %1125 = vst.msk [vmem:[#allocation2 + $0x5c] sm:$0xf] %vm801, %v965
  %1126 = vst.msk [vmem:[#allocation2 + $0x60] sm:$0xf] %vm801, %v967
  %1127 = vst.msk [vmem:[#allocation2 + $0x64] sm:$0xf] %vm801, %v969
  %1128 = vst.msk [vmem:[#allocation2 + $0x68] sm:$0xf] %vm801, %v971
  %1129 = vst.msk [vmem:[#allocation2 + $0x6c] sm:$0xf] %vm801, %v973
  %1130 = vst.msk [vmem:[#allocation2 + $0x70] sm:$0xf] %vm801, %v975
  %1131 = vst.msk [vmem:[#allocation2 + $0x74] sm:$0xf] %vm801, %v977
  %1132 = vst.msk [vmem:[#allocation2 + $0x78] sm:$0xf] %vm801, %v979
  %1133 = vst.msk [vmem:[#allocation2 + $0x7c] sm:$0xf] %vm801, %v981
  %1134 = vst.msk [vmem:[#allocation2 + $0x80] sm:$0xf] %vm801, %v983
  %1135 = vst.msk [vmem:[#allocation2 + $0x84] sm:$0xf] %vm801, %v985
  %1136 = vst.msk [vmem:[#allocation2 + $0x88] sm:$0xf] %vm801, %v987
  %1137 = vst.msk [vmem:[#allocation2 + $0x8c] sm:$0xf] %vm801, %v989
  %1138 = vst.msk [vmem:[#allocation2 + $0x90] sm:$0xf] %vm801, %v991
  %1139 = vst.msk [vmem:[#allocation2 + $0x94] sm:$0xf] %vm801, %v993
  %1140 = vst.msk [vmem:[#allocation2 + $0x98] sm:$0xf] %vm801, %v995
  %1141 = vst.msk [vmem:[#allocation2 + $0x9c] sm:$0xf] %vm801, %v997
  %1142 = vst.msk [vmem:[#allocation2 + $0xa0] sm:$0xf] %vm801, %v999
  %1143 = vst.msk [vmem:[#allocation2 + $0xa4] sm:$0xf] %vm801, %v1001
  %1144 = vst.msk [vmem:[#allocation2 + $0xa8] sm:$0xf] %vm801, %v1003
  %1145 = vst.msk [vmem:[#allocation2 + $0xac] sm:$0xf] %vm801, %v1005
  %1146 = vst.msk [vmem:[#allocation2 + $0xb0] sm:$0xf] %vm801, %v1007
  %1147 = vst.msk [vmem:[#allocation2 + $0xb4] sm:$0xf] %vm801, %v1009
  %1148 = vst.msk [vmem:[#allocation2 + $0xb8] sm:$0xf] %vm801, %v1011
  %1149 = vst.msk [vmem:[#allocation2 + $0xbc] sm:$0xf] %vm801, %v1013
  %1150 = vst.msk [vmem:[#allocation2 + $0xc0] sm:$0xf] %vm801, %v1015
  %1151 = vst.msk [vmem:[#allocation2 + $0xc4] sm:$0xf] %vm801, %v1017
  %1152 = vst.msk [vmem:[#allocation2 + $0xc8] sm:$0xf] %vm801, %v1019
  %1153 = vst.msk [vmem:[#allocation2 + $0xcc] sm:$0xf] %vm801, %v1021
  %1154 = vst.msk [vmem:[#allocation2 + $0xd0] sm:$0xf] %vm801, %v1023
  %1155 = vst.msk [vmem:[#allocation2 + $0xd4] sm:$0xf] %vm801, %v1025
  %1156 = vst.msk [vmem:[#allocation2 + $0xd8] sm:$0xf] %vm801, %v1027
  %1157 = vst.msk [vmem:[#allocation2 + $0xdc] sm:$0xf] %vm801, %v1029
  %1158 = vst.msk [vmem:[#allocation2 + $0xe0] sm:$0xf] %vm801, %v1031
  %1159 = vst.msk [vmem:[#allocation2 + $0xe4] sm:$0xf] %vm801, %v1033
  %1160 = vst.msk [vmem:[#allocation2 + $0xe8] sm:$0xf] %vm801, %v1035
  %1161 = vst.msk [vmem:[#allocation2 + $0xec] sm:$0xf] %vm801, %v1037
  %1162 = vst.msk [vmem:[#allocation2 + $0xf0] sm:$0xf] %vm801, %v1039
  %1163 = vst.msk [vmem:[#allocation2 + $0xf4] sm:$0xf] %vm801, %v1041
  %1164 = vst.msk [vmem:[#allocation2 + $0xf8] sm:$0xf] %vm801, %v1043
  %1165 = vst.msk [vmem:[#allocation2 + $0xfc] sm:$0xf] %vm801, %v1045
  %v1166 = vld [vmem:[%s0] sm:$0xf]
  %v1167 = vld [vmem:[%s0 + $0x4] sm:$0xf]
  %v1168 = vld [vmem:[%s0 + $0x8] sm:$0xf]
  %v1169 = vld [vmem:[%s0 + $0xc] sm:$0xf]
  %v1170 = vld [vmem:[%s0 + $0x10] sm:$0xf]
  %v1171 = vld [vmem:[%s0 + $0x14] sm:$0xf]
  %v1172 = vld [vmem:[%s0 + $0x18] sm:$0xf]
  %v1173 = vld [vmem:[%s0 + $0x1c] sm:$0xf]
  %v1174 = vld [vmem:[%s0 + $0x20] sm:$0xf]
  %v1175 = vld [vmem:[%s0 + $0x24] sm:$0xf]
  %v1176 = vld [vmem:[%s0 + $0x28] sm:$0xf]
  %v1177 = vld [vmem:[%s0 + $0x2c] sm:$0xf]
  %v1178 = vld [vmem:[%s0 + $0x30] sm:$0xf]
  %v1179 = vld [vmem:[%s0 + $0x34] sm:$0xf]
  %v1180 = vld [vmem:[%s0 + $0x38] sm:$0xf]
  %v1181 = vld [vmem:[%s0 + $0x3c] sm:$0xf]
  %v1182 = vld [vmem:[%s0 + $0x40] sm:$0xf]
  %v1183 = vld [vmem:[%s0 + $0x44] sm:$0xf]
  %v1184 = vld [vmem:[%s0 + $0x48] sm:$0xf]
  %v1185 = vld [vmem:[%s0 + $0x4c] sm:$0xf]
  %v1186 = vld [vmem:[%s0 + $0x50] sm:$0xf]
  %v1187 = vld [vmem:[%s0 + $0x54] sm:$0xf]
  %v1188 = vld [vmem:[%s0 + $0x58] sm:$0xf]
  %v1189 = vld [vmem:[%s0 + $0x5c] sm:$0xf]
  %v1190 = vld [vmem:[%s0 + $0x60] sm:$0xf]
  %v1191 = vld [vmem:[%s0 + $0x64] sm:$0xf]
  %v1192 = vld [vmem:[%s0 + $0x68] sm:$0xf]
  %v1193 = vld [vmem:[%s0 + $0x6c] sm:$0xf]
  %v1194 = vld [vmem:[%s0 + $0x70] sm:$0xf]
  %v1195 = vld [vmem:[%s0 + $0x74] sm:$0xf]
  %v1196 = vld [vmem:[%s0 + $0x78] sm:$0xf]
  %v1197 = vld [vmem:[%s0 + $0x7c] sm:$0xf]
  %v1198 = vld [vmem:[%s0 + $0x80] sm:$0xf]
  %v1199 = vld [vmem:[%s0 + $0x84] sm:$0xf]
  %v1200 = vld [vmem:[%s0 + $0x88] sm:$0xf]
  %v1201 = vld [vmem:[%s0 + $0x8c] sm:$0xf]
  %v1202 = vld [vmem:[%s0 + $0x90] sm:$0xf]
  %v1203 = vld [vmem:[%s0 + $0x94] sm:$0xf]
  %v1204 = vld [vmem:[%s0 + $0x98] sm:$0xf]
  %v1205 = vld [vmem:[%s0 + $0x9c] sm:$0xf]
  %v1206 = vld [vmem:[%s0 + $0xa0] sm:$0xf]
  %v1207 = vld [vmem:[%s0 + $0xa4] sm:$0xf]
  %v1208 = vld [vmem:[%s0 + $0xa8] sm:$0xf]
  %v1209 = vld [vmem:[%s0 + $0xac] sm:$0xf]
  %v1210 = vld [vmem:[%s0 + $0xb0] sm:$0xf]
  %v1211 = vld [vmem:[%s0 + $0xb4] sm:$0xf]
  %v1212 = vld [vmem:[%s0 + $0xb8] sm:$0xf]
  %v1213 = vld [vmem:[%s0 + $0xbc] sm:$0xf]
  %v1214 = vld [vmem:[%s0 + $0xc0] sm:$0xf]
  %v1215 = vld [vmem:[%s0 + $0xc4] sm:$0xf]
  %v1216 = vld [vmem:[%s0 + $0xc8] sm:$0xf]
  %v1217 = vld [vmem:[%s0 + $0xcc] sm:$0xf]
  %v1218 = vld [vmem:[%s0 + $0xd0] sm:$0xf]
  %v1219 = vld [vmem:[%s0 + $0xd4] sm:$0xf]
  %v1220 = vld [vmem:[%s0 + $0xd8] sm:$0xf]
  %v1221 = vld [vmem:[%s0 + $0xdc] sm:$0xf]
  %v1222 = vld [vmem:[%s0 + $0xe0] sm:$0xf]
  %v1223 = vld [vmem:[%s0 + $0xe4] sm:$0xf]
  %v1224 = vld [vmem:[%s0 + $0xe8] sm:$0xf]
  %v1225 = vld [vmem:[%s0 + $0xec] sm:$0xf]
  %v1226 = vld [vmem:[%s0 + $0xf0] sm:$0xf]
  %v1227 = vld [vmem:[%s0 + $0xf4] sm:$0xf]
  %v1228 = vld [vmem:[%s0 + $0xf8] sm:$0xf]
  %v1229 = vld [vmem:[%s0 + $0xfc] sm:$0xf]
  %1294 = vrot.lane.b32.xlu0 %v1166, 16
  %v1295 = vpop.permute.xlu0 %1294
  %1296 = vrot.lane.b32.xlu0 %v1167, 16
  %v1297 = vpop.permute.xlu0 %1296
  %1298 = vrot.lane.b32.xlu0 %v1168, 16
  %v1299 = vpop.permute.xlu0 %1298
  %1300 = vrot.lane.b32.xlu0 %v1169, 16
  %v1301 = vpop.permute.xlu0 %1300
  %1302 = vrot.lane.b32.xlu0 %v1170, 16
  %v1303 = vpop.permute.xlu0 %1302
  %1304 = vrot.lane.b32.xlu0 %v1171, 16
  %v1305 = vpop.permute.xlu0 %1304
  %1306 = vrot.lane.b32.xlu0 %v1172, 16
  %v1307 = vpop.permute.xlu0 %1306
  %1308 = vrot.lane.b32.xlu0 %v1173, 16
  %v1309 = vpop.permute.xlu0 %1308
  %1310 = vrot.lane.b32.xlu0 %v1174, 16
  %v1311 = vpop.permute.xlu0 %1310
  %1312 = vrot.lane.b32.xlu0 %v1175, 16
  %v1313 = vpop.permute.xlu0 %1312
  %1314 = vrot.lane.b32.xlu0 %v1176, 16
  %v1315 = vpop.permute.xlu0 %1314
  %1316 = vrot.lane.b32.xlu0 %v1177, 16
  %v1317 = vpop.permute.xlu0 %1316
  %1318 = vrot.lane.b32.xlu0 %v1178, 16
  %v1319 = vpop.permute.xlu0 %1318
  %1320 = vrot.lane.b32.xlu0 %v1179, 16
  %v1321 = vpop.permute.xlu0 %1320
  %1322 = vrot.lane.b32.xlu0 %v1180, 16
  %v1323 = vpop.permute.xlu0 %1322
  %1324 = vrot.lane.b32.xlu0 %v1181, 16
  %v1325 = vpop.permute.xlu0 %1324
  %1326 = vrot.lane.b32.xlu0 %v1182, 16
  %v1327 = vpop.permute.xlu0 %1326
  %1328 = vrot.lane.b32.xlu0 %v1183, 16
  %v1329 = vpop.permute.xlu0 %1328
  %1330 = vrot.lane.b32.xlu0 %v1184, 16
  %v1331 = vpop.permute.xlu0 %1330
  %1332 = vrot.lane.b32.xlu0 %v1185, 16
  %v1333 = vpop.permute.xlu0 %1332
  %1334 = vrot.lane.b32.xlu0 %v1186, 16
  %v1335 = vpop.permute.xlu0 %1334
  %1336 = vrot.lane.b32.xlu0 %v1187, 16
  %v1337 = vpop.permute.xlu0 %1336
  %1338 = vrot.lane.b32.xlu0 %v1188, 16
  %v1339 = vpop.permute.xlu0 %1338
  %1340 = vrot.lane.b32.xlu0 %v1189, 16
  %v1341 = vpop.permute.xlu0 %1340
  %1342 = vrot.lane.b32.xlu0 %v1190, 16
  %v1343 = vpop.permute.xlu0 %1342
  %1344 = vrot.lane.b32.xlu0 %v1191, 16
  %v1345 = vpop.permute.xlu0 %1344
  %1346 = vrot.lane.b32.xlu0 %v1192, 16
  %v1347 = vpop.permute.xlu0 %1346
  %1348 = vrot.lane.b32.xlu0 %v1193, 16
  %v1349 = vpop.permute.xlu0 %1348
  %1350 = vrot.lane.b32.xlu0 %v1194, 16
  %v1351 = vpop.permute.xlu0 %1350
  %1352 = vrot.lane.b32.xlu0 %v1195, 16
  %v1353 = vpop.permute.xlu0 %1352
  %1354 = vrot.lane.b32.xlu0 %v1196, 16
  %v1355 = vpop.permute.xlu0 %1354
  %1356 = vrot.lane.b32.xlu0 %v1197, 16
  %v1357 = vpop.permute.xlu0 %1356
  %1358 = vrot.lane.b32.xlu0 %v1198, 16
  %v1359 = vpop.permute.xlu0 %1358
  %1360 = vrot.lane.b32.xlu0 %v1199, 16
  %v1361 = vpop.permute.xlu0 %1360
  %1362 = vrot.lane.b32.xlu0 %v1200, 16
  %v1363 = vpop.permute.xlu0 %1362
  %1364 = vrot.lane.b32.xlu0 %v1201, 16
  %v1365 = vpop.permute.xlu0 %1364
  %1366 = vrot.lane.b32.xlu0 %v1202, 16
  %v1367 = vpop.permute.xlu0 %1366
  %1368 = vrot.lane.b32.xlu0 %v1203, 16
  %v1369 = vpop.permute.xlu0 %1368
  %1370 = vrot.lane.b32.xlu0 %v1204, 16
  %v1371 = vpop.permute.xlu0 %1370
  %1372 = vrot.lane.b32.xlu0 %v1205, 16
  %v1373 = vpop.permute.xlu0 %1372
  %1374 = vrot.lane.b32.xlu0 %v1206, 16
  %v1375 = vpop.permute.xlu0 %1374
  %1376 = vrot.lane.b32.xlu0 %v1207, 16
  %v1377 = vpop.permute.xlu0 %1376
  %1378 = vrot.lane.b32.xlu0 %v1208, 16
  %v1379 = vpop.permute.xlu0 %1378
  %1380 = vrot.lane.b32.xlu0 %v1209, 16
  %v1381 = vpop.permute.xlu0 %1380
  %1382 = vrot.lane.b32.xlu0 %v1210, 16
  %v1383 = vpop.permute.xlu0 %1382
  %1384 = vrot.lane.b32.xlu0 %v1211, 16
  %v1385 = vpop.permute.xlu0 %1384
  %1386 = vrot.lane.b32.xlu0 %v1212, 16
  %v1387 = vpop.permute.xlu0 %1386
  %1388 = vrot.lane.b32.xlu0 %v1213, 16
  %v1389 = vpop.permute.xlu0 %1388
  %1390 = vrot.lane.b32.xlu0 %v1214, 16
  %v1391 = vpop.permute.xlu0 %1390
  %1392 = vrot.lane.b32.xlu0 %v1215, 16
  %v1393 = vpop.permute.xlu0 %1392
  %1394 = vrot.lane.b32.xlu0 %v1216, 16
  %v1395 = vpop.permute.xlu0 %1394
  %1396 = vrot.lane.b32.xlu0 %v1217, 16
  %v1397 = vpop.permute.xlu0 %1396
  %1398 = vrot.lane.b32.xlu0 %v1218, 16
  %v1399 = vpop.permute.xlu0 %1398
  %1400 = vrot.lane.b32.xlu0 %v1219, 16
  %v1401 = vpop.permute.xlu0 %1400
  %1402 = vrot.lane.b32.xlu0 %v1220, 16
  %v1403 = vpop.permute.xlu0 %1402
  %1404 = vrot.lane.b32.xlu0 %v1221, 16
  %v1405 = vpop.permute.xlu0 %1404
  %1406 = vrot.lane.b32.xlu0 %v1222, 16
  %v1407 = vpop.permute.xlu0 %1406
  %1408 = vrot.lane.b32.xlu0 %v1223, 16
  %v1409 = vpop.permute.xlu0 %1408
  %1410 = vrot.lane.b32.xlu0 %v1224, 16
  %v1411 = vpop.permute.xlu0 %1410
  %1412 = vrot.lane.b32.xlu0 %v1225, 16
  %v1413 = vpop.permute.xlu0 %1412
  %1414 = vrot.lane.b32.xlu0 %v1226, 16
  %v1415 = vpop.permute.xlu0 %1414
  %1416 = vrot.lane.b32.xlu0 %v1227, 16
  %v1417 = vpop.permute.xlu0 %1416
  %1418 = vrot.lane.b32.xlu0 %v1228, 16
  %v1419 = vpop.permute.xlu0 %1418
  %1420 = vrot.lane.b32.xlu0 %v1229, 16
  %v1421 = vpop.permute.xlu0 %1420
  %vm1486 = vcmask 158848
  %1487 = vst.msk [vmem:[#allocation2] sm:$0xf] %vm1486, %v1295
  %1488 = vst.msk [vmem:[#allocation2 + $0x4] sm:$0xf] %vm1486, %v1297
  %1489 = vst.msk [vmem:[#allocation2 + $0x8] sm:$0xf] %vm1486, %v1299
  %1490 = vst.msk [vmem:[#allocation2 + $0xc] sm:$0xf] %vm1486, %v1301
  %1491 = vst.msk [vmem:[#allocation2 + $0x10] sm:$0xf] %vm1486, %v1303
  %1492 = vst.msk [vmem:[#allocation2 + $0x14] sm:$0xf] %vm1486, %v1305
  %1493 = vst.msk [vmem:[#allocation2 + $0x18] sm:$0xf] %vm1486, %v1307
  %1494 = vst.msk [vmem:[#allocation2 + $0x1c] sm:$0xf] %vm1486, %v1309
  %1495 = vst.msk [vmem:[#allocation2 + $0x20] sm:$0xf] %vm1486, %v1311
  %1496 = vst.msk [vmem:[#allocation2 + $0x24] sm:$0xf] %vm1486, %v1313
  %1497 = vst.msk [vmem:[#allocation2 + $0x28] sm:$0xf] %vm1486, %v1315
  %1498 = vst.msk [vmem:[#allocation2 + $0x2c] sm:$0xf] %vm1486, %v1317
  %1499 = vst.msk [vmem:[#allocation2 + $0x30] sm:$0xf] %vm1486, %v1319
  %1500 = vst.msk [vmem:[#allocation2 + $0x34] sm:$0xf] %vm1486, %v1321
  %1501 = vst.msk [vmem:[#allocation2 + $0x38] sm:$0xf] %vm1486, %v1323
  %1502 = vst.msk [vmem:[#allocation2 + $0x3c] sm:$0xf] %vm1486, %v1325
  %1503 = vst.msk [vmem:[#allocation2 + $0x40] sm:$0xf] %vm1486, %v1327
  %1504 = vst.msk [vmem:[#allocation2 + $0x44] sm:$0xf] %vm1486, %v1329
  %1505 = vst.msk [vmem:[#allocation2 + $0x48] sm:$0xf] %vm1486, %v1331
  %1506 = vst.msk [vmem:[#allocation2 + $0x4c] sm:$0xf] %vm1486, %v1333
  %1507 = vst.msk [vmem:[#allocation2 + $0x50] sm:$0xf] %vm1486, %v1335
  %1508 = vst.msk [vmem:[#allocation2 + $0x54] sm:$0xf] %vm1486, %v1337
  %1509 = vst.msk [vmem:[#allocation2 + $0x58] sm:$0xf] %vm1486, %v1339
  %1510 = vst.msk [vmem:[#allocation2 + $0x5c] sm:$0xf] %vm1486, %v1341
  %1511 = vst.msk [vmem:[#allocation2 + $0x60] sm:$0xf] %vm1486, %v1343
  %1512 = vst.msk [vmem:[#allocation2 + $0x64] sm:$0xf] %vm1486, %v1345
  %1513 = vst.msk [vmem:[#allocation2 + $0x68] sm:$0xf] %vm1486, %v1347
  %1514 = vst.msk [vmem:[#allocation2 + $0x6c] sm:$0xf] %vm1486, %v1349
  %1515 = vst.msk [vmem:[#allocation2 + $0x70] sm:$0xf] %vm1486, %v1351
  %1516 = vst.msk [vmem:[#allocation2 + $0x74] sm:$0xf] %vm1486, %v1353
  %1517 = vst.msk [vmem:[#allocation2 + $0x78] sm:$0xf] %vm1486, %v1355
  %1518 = vst.msk [vmem:[#allocation2 + $0x7c] sm:$0xf] %vm1486, %v1357
  %1519 = vst.msk [vmem:[#allocation2 + $0x80] sm:$0xf] %vm1486, %v1359
  %1520 = vst.msk [vmem:[#allocation2 + $0x84] sm:$0xf] %vm1486, %v1361
  %1521 = vst.msk [vmem:[#allocation2 + $0x88] sm:$0xf] %vm1486, %v1363
  %1522 = vst.msk [vmem:[#allocation2 + $0x8c] sm:$0xf] %vm1486, %v1365
  %1523 = vst.msk [vmem:[#allocation2 + $0x90] sm:$0xf] %vm1486, %v1367
  %1524 = vst.msk [vmem:[#allocation2 + $0x94] sm:$0xf] %vm1486, %v1369
  %1525 = vst.msk [vmem:[#allocation2 + $0x98] sm:$0xf] %vm1486, %v1371
  %1526 = vst.msk [vmem:[#allocation2 + $0x9c] sm:$0xf] %vm1486, %v1373
  %1527 = vst.msk [vmem:[#allocation2 + $0xa0] sm:$0xf] %vm1486, %v1375
  %1528 = vst.msk [vmem:[#allocation2 + $0xa4] sm:$0xf] %vm1486, %v1377
  %1529 = vst.msk [vmem:[#allocation2 + $0xa8] sm:$0xf] %vm1486, %v1379
  %1530 = vst.msk [vmem:[#allocation2 + $0xac] sm:$0xf] %vm1486, %v1381
  %1531 = vst.msk [vmem:[#allocation2 + $0xb0] sm:$0xf] %vm1486, %v1383
  %1532 = vst.msk [vmem:[#allocation2 + $0xb4] sm:$0xf] %vm1486, %v1385
  %1533 = vst.msk [vmem:[#allocation2 + $0xb8] sm:$0xf] %vm1486, %v1387
  %1534 = vst.msk [vmem:[#allocation2 + $0xbc] sm:$0xf] %vm1486, %v1389
  %1535 = vst.msk [vmem:[#allocation2 + $0xc0] sm:$0xf] %vm1486, %v1391
  %1536 = vst.msk [vmem:[#allocation2 + $0xc4] sm:$0xf] %vm1486, %v1393
  %1537 = vst.msk [vmem:[#allocation2 + $0xc8] sm:$0xf] %vm1486, %v1395
  %1538 = vst.msk [vmem:[#allocation2 + $0xcc] sm:$0xf] %vm1486, %v1397
  %1539 = vst.msk [vmem:[#allocation2 + $0xd0] sm:$0xf] %vm1486, %v1399
  %1540 = vst.msk [vmem:[#allocation2 + $0xd4] sm:$0xf] %vm1486, %v1401
  %1541 = vst.msk [vmem:[#allocation2 + $0xd8] sm:$0xf] %vm1486, %v1403
  %1542 = vst.msk [vmem:[#allocation2 + $0xdc] sm:$0xf] %vm1486, %v1405
  %1543 = vst.msk [vmem:[#allocation2 + $0xe0] sm:$0xf] %vm1486, %v1407
  %1544 = vst.msk [vmem:[#allocation2 + $0xe4] sm:$0xf] %vm1486, %v1409
  %1545 = vst.msk [vmem:[#allocation2 + $0xe8] sm:$0xf] %vm1486, %v1411
  %1546 = vst.msk [vmem:[#allocation2 + $0xec] sm:$0xf] %vm1486, %v1413
  %1547 = vst.msk [vmem:[#allocation2 + $0xf0] sm:$0xf] %vm1486, %v1415
  %1548 = vst.msk [vmem:[#allocation2 + $0xf4] sm:$0xf] %vm1486, %v1417
  %1549 = vst.msk [vmem:[#allocation2 + $0xf8] sm:$0xf] %vm1486, %v1419
  %1550 = vst.msk [vmem:[#allocation2 + $0xfc] sm:$0xf] %vm1486, %v1421
  %vm1551 = vcmask 191648
  %1552 = vst.msk [vmem:[#allocation2 + $0xf0] sm:$0xf] %vm1551, 0
  %1553 = vst.msk [vmem:[#allocation2 + $0xf4] sm:$0xf] %vm1551, 0
  %1554 = vst.msk [vmem:[#allocation2 + $0xf8] sm:$0xf] %vm1551, 0
  %1555 = vst.msk [vmem:[#allocation2 + $0xfc] sm:$0xf] %vm1551, 0
  %v1556 = vld [vmem:[%s0 + $0x10] sm:$0xf]
  %v1557 = vld [vmem:[%s0 + $0x14] sm:$0xf]
  %v1558 = vld [vmem:[%s0 + $0x18] sm:$0xf]
  %v1559 = vld [vmem:[%s0 + $0x1c] sm:$0xf]
  %v1560 = vld [vmem:[%s0 + $0x20] sm:$0xf]
  %v1561 = vld [vmem:[%s0 + $0x24] sm:$0xf]
  %v1562 = vld [vmem:[%s0 + $0x28] sm:$0xf]
  %v1563 = vld [vmem:[%s0 + $0x2c] sm:$0xf]
  %v1564 = vld [vmem:[%s0 + $0x30] sm:$0xf]
  %v1565 = vld [vmem:[%s0 + $0x34] sm:$0xf]
  %v1566 = vld [vmem:[%s0 + $0x38] sm:$0xf]
  %v1567 = vld [vmem:[%s0 + $0x3c] sm:$0xf]
  %v1568 = vld [vmem:[%s0 + $0x40] sm:$0xf]
  %v1569 = vld [vmem:[%s0 + $0x44] sm:$0xf]
  %v1570 = vld [vmem:[%s0 + $0x48] sm:$0xf]
  %v1571 = vld [vmem:[%s0 + $0x4c] sm:$0xf]
  %v1572 = vld [vmem:[%s0 + $0x50] sm:$0xf]
  %v1573 = vld [vmem:[%s0 + $0x54] sm:$0xf]
  %v1574 = vld [vmem:[%s0 + $0x58] sm:$0xf]
  %v1575 = vld [vmem:[%s0 + $0x5c] sm:$0xf]
  %v1576 = vld [vmem:[%s0 + $0x60] sm:$0xf]
  %v1577 = vld [vmem:[%s0 + $0x64] sm:$0xf]
  %v1578 = vld [vmem:[%s0 + $0x68] sm:$0xf]
  %v1579 = vld [vmem:[%s0 + $0x6c] sm:$0xf]
  %v1580 = vld [vmem:[%s0 + $0x70] sm:$0xf]
  %v1581 = vld [vmem:[%s0 + $0x74] sm:$0xf]
  %v1582 = vld [vmem:[%s0 + $0x78] sm:$0xf]
  %v1583 = vld [vmem:[%s0 + $0x7c] sm:$0xf]
  %v1584 = vld [vmem:[%s0 + $0x80] sm:$0xf]
  %v1585 = vld [vmem:[%s0 + $0x84] sm:$0xf]
  %v1586 = vld [vmem:[%s0 + $0x88] sm:$0xf]
  %v1587 = vld [vmem:[%s0 + $0x8c] sm:$0xf]
  %v1588 = vld [vmem:[%s0 + $0x90] sm:$0xf]
  %v1589 = vld [vmem:[%s0 + $0x94] sm:$0xf]
  %v1590 = vld [vmem:[%s0 + $0x98] sm:$0xf]
  %v1591 = vld [vmem:[%s0 + $0x9c] sm:$0xf]
  %v1592 = vld [vmem:[%s0 + $0xa0] sm:$0xf]
  %v1593 = vld [vmem:[%s0 + $0xa4] sm:$0xf]
  %v1594 = vld [vmem:[%s0 + $0xa8] sm:$0xf]
  %v1595 = vld [vmem:[%s0 + $0xac] sm:$0xf]
  %v1596 = vld [vmem:[%s0 + $0xb0] sm:$0xf]
  %v1597 = vld [vmem:[%s0 + $0xb4] sm:$0xf]
  %v1598 = vld [vmem:[%s0 + $0xb8] sm:$0xf]
  %v1599 = vld [vmem:[%s0 + $0xbc] sm:$0xf]
  %v1600 = vld [vmem:[%s0 + $0xc0] sm:$0xf]
  %v1601 = vld [vmem:[%s0 + $0xc4] sm:$0xf]
  %v1602 = vld [vmem:[%s0 + $0xc8] sm:$0xf]
  %v1603 = vld [vmem:[%s0 + $0xcc] sm:$0xf]
  %v1604 = vld [vmem:[%s0 + $0xd0] sm:$0xf]
  %v1605 = vld [vmem:[%s0 + $0xd4] sm:$0xf]
  %v1606 = vld [vmem:[%s0 + $0xd8] sm:$0xf]
  %v1607 = vld [vmem:[%s0 + $0xdc] sm:$0xf]
  %v1608 = vld [vmem:[%s0 + $0xe0] sm:$0xf]
  %v1609 = vld [vmem:[%s0 + $0xe4] sm:$0xf]
  %v1610 = vld [vmem:[%s0 + $0xe8] sm:$0xf]
  %v1611 = vld [vmem:[%s0 + $0xec] sm:$0xf]
  %v1612 = vld [vmem:[%s0 + $0xf0] sm:$0xf]
  %v1613 = vld [vmem:[%s0 + $0xf4] sm:$0xf]
  %v1614 = vld [vmem:[%s0 + $0xf8] sm:$0xf]
  %v1615 = vld [vmem:[%s0 + $0xfc] sm:$0xf]
  %1676 = vrot.lane.b32.xlu0 %v1556, 20
  %v1677 = vpop.permute.xlu0 %1676
  %1678 = vrot.lane.b32.xlu0 %v1557, 20
  %v1679 = vpop.permute.xlu0 %1678
  %1680 = vrot.lane.b32.xlu0 %v1558, 20
  %v1681 = vpop.permute.xlu0 %1680
  %1682 = vrot.lane.b32.xlu0 %v1559, 20
  %v1683 = vpop.permute.xlu0 %1682
  %1684 = vrot.lane.b32.xlu0 %v1560, 20
  %v1685 = vpop.permute.xlu0 %1684
  %1686 = vrot.lane.b32.xlu0 %v1561, 20
  %v1687 = vpop.permute.xlu0 %1686
  %1688 = vrot.lane.b32.xlu0 %v1562, 20
  %v1689 = vpop.permute.xlu0 %1688
  %1690 = vrot.lane.b32.xlu0 %v1563, 20
  %v1691 = vpop.permute.xlu0 %1690
  %1692 = vrot.lane.b32.xlu0 %v1564, 20
  %v1693 = vpop.permute.xlu0 %1692
  %1694 = vrot.lane.b32.xlu0 %v1565, 20
  %v1695 = vpop.permute.xlu0 %1694
  %1696 = vrot.lane.b32.xlu0 %v1566, 20
  %v1697 = vpop.permute.xlu0 %1696
  %1698 = vrot.lane.b32.xlu0 %v1567, 20
  %v1699 = vpop.permute.xlu0 %1698
  %1700 = vrot.lane.b32.xlu0 %v1568, 20
  %v1701 = vpop.permute.xlu0 %1700
  %1702 = vrot.lane.b32.xlu0 %v1569, 20
  %v1703 = vpop.permute.xlu0 %1702
  %1704 = vrot.lane.b32.xlu0 %v1570, 20
  %v1705 = vpop.permute.xlu0 %1704
  %1706 = vrot.lane.b32.xlu0 %v1571, 20
  %v1707 = vpop.permute.xlu0 %1706
  %1708 = vrot.lane.b32.xlu0 %v1572, 20
  %v1709 = vpop.permute.xlu0 %1708
  %1710 = vrot.lane.b32.xlu0 %v1573, 20
  %v1711 = vpop.permute.xlu0 %1710
  %1712 = vrot.lane.b32.xlu0 %v1574, 20
  %v1713 = vpop.permute.xlu0 %1712
  %1714 = vrot.lane.b32.xlu0 %v1575, 20
  %v1715 = vpop.permute.xlu0 %1714
  %1716 = vrot.lane.b32.xlu0 %v1576, 20
  %v1717 = vpop.permute.xlu0 %1716
  %1718 = vrot.lane.b32.xlu0 %v1577, 20
  %v1719 = vpop.permute.xlu0 %1718
  %1720 = vrot.lane.b32.xlu0 %v1578, 20
  %v1721 = vpop.permute.xlu0 %1720
  %1722 = vrot.lane.b32.xlu0 %v1579, 20
  %v1723 = vpop.permute.xlu0 %1722
  %1724 = vrot.lane.b32.xlu0 %v1580, 20
  %v1725 = vpop.permute.xlu0 %1724
  %1726 = vrot.lane.b32.xlu0 %v1581, 20
  %v1727 = vpop.permute.xlu0 %1726
  %1728 = vrot.lane.b32.xlu0 %v1582, 20
  %v1729 = vpop.permute.xlu0 %1728
  %1730 = vrot.lane.b32.xlu0 %v1583, 20
  %v1731 = vpop.permute.xlu0 %1730
  %1732 = vrot.lane.b32.xlu0 %v1584, 20
  %v1733 = vpop.permute.xlu0 %1732
  %1734 = vrot.lane.b32.xlu0 %v1585, 20
  %v1735 = vpop.permute.xlu0 %1734
  %1736 = vrot.lane.b32.xlu0 %v1586, 20
  %v1737 = vpop.permute.xlu0 %1736
  %1738 = vrot.lane.b32.xlu0 %v1587, 20
  %v1739 = vpop.permute.xlu0 %1738
  %1740 = vrot.lane.b32.xlu0 %v1588, 20
  %v1741 = vpop.permute.xlu0 %1740
  %1742 = vrot.lane.b32.xlu0 %v1589, 20
  %v1743 = vpop.permute.xlu0 %1742
  %1744 = vrot.lane.b32.xlu0 %v1590, 20
  %v1745 = vpop.permute.xlu0 %1744
  %1746 = vrot.lane.b32.xlu0 %v1591, 20
  %v1747 = vpop.permute.xlu0 %1746
  %1748 = vrot.lane.b32.xlu0 %v1592, 20
  %v1749 = vpop.permute.xlu0 %1748
  %1750 = vrot.lane.b32.xlu0 %v1593, 20
  %v1751 = vpop.permute.xlu0 %1750
  %1752 = vrot.lane.b32.xlu0 %v1594, 20
  %v1753 = vpop.permute.xlu0 %1752
  %1754 = vrot.lane.b32.xlu0 %v1595, 20
  %v1755 = vpop.permute.xlu0 %1754
  %1756 = vrot.lane.b32.xlu0 %v1596, 20
  %v1757 = vpop.permute.xlu0 %1756
  %1758 = vrot.lane.b32.xlu0 %v1597, 20
  %v1759 = vpop.permute.xlu0 %1758
  %1760 = vrot.lane.b32.xlu0 %v1598, 20
  %v1761 = vpop.permute.xlu0 %1760
  %1762 = vrot.lane.b32.xlu0 %v1599, 20
  %v1763 = vpop.permute.xlu0 %1762
  %1764 = vrot.lane.b32.xlu0 %v1600, 20
  %v1765 = vpop.permute.xlu0 %1764
  %1766 = vrot.lane.b32.xlu0 %v1601, 20
  %v1767 = vpop.permute.xlu0 %1766
  %1768 = vrot.lane.b32.xlu0 %v1602, 20
  %v1769 = vpop.permute.xlu0 %1768
  %1770 = vrot.lane.b32.xlu0 %v1603, 20
  %v1771 = vpop.permute.xlu0 %1770
  %1772 = vrot.lane.b32.xlu0 %v1604, 20
  %v1773 = vpop.permute.xlu0 %1772
  %1774 = vrot.lane.b32.xlu0 %v1605, 20
  %v1775 = vpop.permute.xlu0 %1774
  %1776 = vrot.lane.b32.xlu0 %v1606, 20
  %v1777 = vpop.permute.xlu0 %1776
  %1778 = vrot.lane.b32.xlu0 %v1607, 20
  %v1779 = vpop.permute.xlu0 %1778
  %1780 = vrot.lane.b32.xlu0 %v1608, 20
  %v1781 = vpop.permute.xlu0 %1780
  %1782 = vrot.lane.b32.xlu0 %v1609, 20
  %v1783 = vpop.permute.xlu0 %1782
  %1784 = vrot.lane.b32.xlu0 %v1610, 20
  %v1785 = vpop.permute.xlu0 %1784
  %1786 = vrot.lane.b32.xlu0 %v1611, 20
  %v1787 = vpop.permute.xlu0 %1786
  %1788 = vrot.lane.b32.xlu0 %v1612, 20
  %v1789 = vpop.permute.xlu0 %1788
  %1790 = vrot.lane.b32.xlu0 %v1613, 20
  %v1791 = vpop.permute.xlu0 %1790
  %1792 = vrot.lane.b32.xlu0 %v1614, 20
  %v1793 = vpop.permute.xlu0 %1792
  %1794 = vrot.lane.b32.xlu0 %v1615, 20
  %v1795 = vpop.permute.xlu0 %1794
  %1856 = vst.msk [vmem:[#allocation2] sm:$0xf] %vm1551, %v1677
  %1857 = vst.msk [vmem:[#allocation2 + $0x4] sm:$0xf] %vm1551, %v1679
  %1858 = vst.msk [vmem:[#allocation2 + $0x8] sm:$0xf] %vm1551, %v1681
  %1859 = vst.msk [vmem:[#allocation2 + $0xc] sm:$0xf] %vm1551, %v1683
  %1860 = vst.msk [vmem:[#allocation2 + $0x10] sm:$0xf] %vm1551, %v1685
  %1861 = vst.msk [vmem:[#allocation2 + $0x14] sm:$0xf] %vm1551, %v1687
  %1862 = vst.msk [vmem:[#allocation2 + $0x18] sm:$0xf] %vm1551, %v1689
  %1863 = vst.msk [vmem:[#allocation2 + $0x1c] sm:$0xf] %vm1551, %v1691
  %1864 = vst.msk [vmem:[#allocation2 + $0x20] sm:$0xf] %vm1551, %v1693
  %1865 = vst.msk [vmem:[#allocation2 + $0x24] sm:$0xf] %vm1551, %v1695
  %1866 = vst.msk [vmem:[#allocation2 + $0x28] sm:$0xf] %vm1551, %v1697
  %1867 = vst.msk [vmem:[#allocation2 + $0x2c] sm:$0xf] %vm1551, %v1699
  %1868 = vst.msk [vmem:[#allocation2 + $0x30] sm:$0xf] %vm1551, %v1701
  %1869 = vst.msk [vmem:[#allocation2 + $0x34] sm:$0xf] %vm1551, %v1703
  %1870 = vst.msk [vmem:[#allocation2 + $0x38] sm:$0xf] %vm1551, %v1705
  %1871 = vst.msk [vmem:[#allocation2 + $0x3c] sm:$0xf] %vm1551, %v1707
  %1872 = vst.msk [vmem:[#allocation2 + $0x40] sm:$0xf] %vm1551, %v1709
  %1873 = vst.msk [vmem:[#allocation2 + $0x44] sm:$0xf] %vm1551, %v1711
  %1874 = vst.msk [vmem:[#allocation2 + $0x48] sm:$0xf] %vm1551, %v1713
  %1875 = vst.msk [vmem:[#allocation2 + $0x4c] sm:$0xf] %vm1551, %v1715
  %1876 = vst.msk [vmem:[#allocation2 + $0x50] sm:$0xf] %vm1551, %v1717
  %1877 = vst.msk [vmem:[#allocation2 + $0x54] sm:$0xf] %vm1551, %v1719
  %1878 = vst.msk [vmem:[#allocation2 + $0x58] sm:$0xf] %vm1551, %v1721
  %1879 = vst.msk [vmem:[#allocation2 + $0x5c] sm:$0xf] %vm1551, %v1723
  %1880 = vst.msk [vmem:[#allocation2 + $0x60] sm:$0xf] %vm1551, %v1725
  %1881 = vst.msk [vmem:[#allocation2 + $0x64] sm:$0xf] %vm1551, %v1727
  %1882 = vst.msk [vmem:[#allocation2 + $0x68] sm:$0xf] %vm1551, %v1729
  %1883 = vst.msk [vmem:[#allocation2 + $0x6c] sm:$0xf] %vm1551, %v1731
  %1884 = vst.msk [vmem:[#allocation2 + $0x70] sm:$0xf] %vm1551, %v1733
  %1885 = vst.msk [vmem:[#allocation2 + $0x74] sm:$0xf] %vm1551, %v1735
  %1886 = vst.msk [vmem:[#allocation2 + $0x78] sm:$0xf] %vm1551, %v1737
  %1887 = vst.msk [vmem:[#allocation2 + $0x7c] sm:$0xf] %vm1551, %v1739
  %1888 = vst.msk [vmem:[#allocation2 + $0x80] sm:$0xf] %vm1551, %v1741
  %1889 = vst.msk [vmem:[#allocation2 + $0x84] sm:$0xf] %vm1551, %v1743
  %1890 = vst.msk [vmem:[#allocation2 + $0x88] sm:$0xf] %vm1551, %v1745
  %1891 = vst.msk [vmem:[#allocation2 + $0x8c] sm:$0xf] %vm1551, %v1747
  %1892 = vst.msk [vmem:[#allocation2 + $0x90] sm:$0xf] %vm1551, %v1749
  %1893 = vst.msk [vmem:[#allocation2 + $0x94] sm:$0xf] %vm1551, %v1751
  %1894 = vst.msk [vmem:[#allocation2 + $0x98] sm:$0xf] %vm1551, %v1753
  %1895 = vst.msk [vmem:[#allocation2 + $0x9c] sm:$0xf] %vm1551, %v1755
  %1896 = vst.msk [vmem:[#allocation2 + $0xa0] sm:$0xf] %vm1551, %v1757
  %1897 = vst.msk [vmem:[#allocation2 + $0xa4] sm:$0xf] %vm1551, %v1759
  %1898 = vst.msk [vmem:[#allocation2 + $0xa8] sm:$0xf] %vm1551, %v1761
  %1899 = vst.msk [vmem:[#allocation2 + $0xac] sm:$0xf] %vm1551, %v1763
  %1900 = vst.msk [vmem:[#allocation2 + $0xb0] sm:$0xf] %vm1551, %v1765
  %1901 = vst.msk [vmem:[#allocation2 + $0xb4] sm:$0xf] %vm1551, %v1767
  %1902 = vst.msk [vmem:[#allocation2 + $0xb8] sm:$0xf] %vm1551, %v1769
  %1903 = vst.msk [vmem:[#allocation2 + $0xbc] sm:$0xf] %vm1551, %v1771
  %1904 = vst.msk [vmem:[#allocation2 + $0xc0] sm:$0xf] %vm1551, %v1773
  %1905 = vst.msk [vmem:[#allocation2 + $0xc4] sm:$0xf] %vm1551, %v1775
  %1906 = vst.msk [vmem:[#allocation2 + $0xc8] sm:$0xf] %vm1551, %v1777
  %1907 = vst.msk [vmem:[#allocation2 + $0xcc] sm:$0xf] %vm1551, %v1779
  %1908 = vst.msk [vmem:[#allocation2 + $0xd0] sm:$0xf] %vm1551, %v1781
  %1909 = vst.msk [vmem:[#allocation2 + $0xd4] sm:$0xf] %vm1551, %v1783
  %1910 = vst.msk [vmem:[#allocation2 + $0xd8] sm:$0xf] %vm1551, %v1785
  %1911 = vst.msk [vmem:[#allocation2 + $0xdc] sm:$0xf] %vm1551, %v1787
  %1912 = vst.msk [vmem:[#allocation2 + $0xe0] sm:$0xf] %vm1551, %v1789
  %1913 = vst.msk [vmem:[#allocation2 + $0xe4] sm:$0xf] %vm1551, %v1791
  %1914 = vst.msk [vmem:[#allocation2 + $0xe8] sm:$0xf] %vm1551, %v1793
  %1915 = vst.msk [vmem:[#allocation2 + $0xec] sm:$0xf] %vm1551, %v1795
  %vm1916 = vcmask 224448
  %1917 = vst.msk [vmem:[#allocation2 + $0xe0] sm:$0xf] %vm1916, 0
  %1918 = vst.msk [vmem:[#allocation2 + $0xe4] sm:$0xf] %vm1916, 0
  %1919 = vst.msk [vmem:[#allocation2 + $0xe8] sm:$0xf] %vm1916, 0
  %1920 = vst.msk [vmem:[#allocation2 + $0xec] sm:$0xf] %vm1916, 0
  %1921 = vst.msk [vmem:[#allocation2 + $0xf0] sm:$0xf] %vm1916, 0
  %1922 = vst.msk [vmem:[#allocation2 + $0xf4] sm:$0xf] %vm1916, 0
  %1923 = vst.msk [vmem:[#allocation2 + $0xf8] sm:$0xf] %vm1916, 0
  %1924 = vst.msk [vmem:[#allocation2 + $0xfc] sm:$0xf] %vm1916, 0
  %v1925 = vld [vmem:[%s0 + $0x20] sm:$0xf]
  %v1926 = vld [vmem:[%s0 + $0x24] sm:$0xf]
  %v1927 = vld [vmem:[%s0 + $0x28] sm:$0xf]
  %v1928 = vld [vmem:[%s0 + $0x2c] sm:$0xf]
  %v1929 = vld [vmem:[%s0 + $0x30] sm:$0xf]
  %v1930 = vld [vmem:[%s0 + $0x34] sm:$0xf]
  %v1931 = vld [vmem:[%s0 + $0x38] sm:$0xf]
  %v1932 = vld [vmem:[%s0 + $0x3c] sm:$0xf]
  %v1933 = vld [vmem:[%s0 + $0x40] sm:$0xf]
  %v1934 = vld [vmem:[%s0 + $0x44] sm:$0xf]
  %v1935 = vld [vmem:[%s0 + $0x48] sm:$0xf]
  %v1936 = vld [vmem:[%s0 + $0x4c] sm:$0xf]
  %v1937 = vld [vmem:[%s0 + $0x50] sm:$0xf]
  %v1938 = vld [vmem:[%s0 + $0x54] sm:$0xf]
  %v1939 = vld [vmem:[%s0 + $0x58] sm:$0xf]
  %v1940 = vld [vmem:[%s0 + $0x5c] sm:$0xf]
  %v1941 = vld [vmem:[%s0 + $0x60] sm:$0xf]
  %v1942 = vld [vmem:[%s0 + $0x64] sm:$0xf]
  %v1943 = vld [vmem:[%s0 + $0x68] sm:$0xf]
  %v1944 = vld [vmem:[%s0 + $0x6c] sm:$0xf]
  %v1945 = vld [vmem:[%s0 + $0x70] sm:$0xf]
  %v1946 = vld [vmem:[%s0 + $0x74] sm:$0xf]
  %v1947 = vld [vmem:[%s0 + $0x78] sm:$0xf]
  %v1948 = vld [vmem:[%s0 + $0x7c] sm:$0xf]
  %v1949 = vld [vmem:[%s0 + $0x80] sm:$0xf]
  %v1950 = vld [vmem:[%s0 + $0x84] sm:$0xf]
  %v1951 = vld [vmem:[%s0 + $0x88] sm:$0xf]
  %v1952 = vld [vmem:[%s0 + $0x8c] sm:$0xf]
  %v1953 = vld [vmem:[%s0 + $0x90] sm:$0xf]
  %v1954 = vld [vmem:[%s0 + $0x94] sm:$0xf]
  %v1955 = vld [vmem:[%s0 + $0x98] sm:$0xf]
  %v1956 = vld [vmem:[%s0 + $0x9c] sm:$0xf]
  %v1957 = vld [vmem:[%s0 + $0xa0] sm:$0xf]
  %v1958 = vld [vmem:[%s0 + $0xa4] sm:$0xf]
  %v1959 = vld [vmem:[%s0 + $0xa8] sm:$0xf]
  %v1960 = vld [vmem:[%s0 + $0xac] sm:$0xf]
  %v1961 = vld [vmem:[%s0 + $0xb0] sm:$0xf]
  %v1962 = vld [vmem:[%s0 + $0xb4] sm:$0xf]
  %v1963 = vld [vmem:[%s0 + $0xb8] sm:$0xf]
  %v1964 = vld [vmem:[%s0 + $0xbc] sm:$0xf]
  %v1965 = vld [vmem:[%s0 + $0xc0] sm:$0xf]
  %v1966 = vld [vmem:[%s0 + $0xc4] sm:$0xf]
  %v1967 = vld [vmem:[%s0 + $0xc8] sm:$0xf]
  %v1968 = vld [vmem:[%s0 + $0xcc] sm:$0xf]
  %v1969 = vld [vmem:[%s0 + $0xd0] sm:$0xf]
  %v1970 = vld [vmem:[%s0 + $0xd4] sm:$0xf]
  %v1971 = vld [vmem:[%s0 + $0xd8] sm:$0xf]
  %v1972 = vld [vmem:[%s0 + $0xdc] sm:$0xf]
  %v1973 = vld [vmem:[%s0 + $0xe0] sm:$0xf]
  %v1974 = vld [vmem:[%s0 + $0xe4] sm:$0xf]
  %v1975 = vld [vmem:[%s0 + $0xe8] sm:$0xf]
  %v1976 = vld [vmem:[%s0 + $0xec] sm:$0xf]
  %v1977 = vld [vmem:[%s0 + $0xf0] sm:$0xf]
  %v1978 = vld [vmem:[%s0 + $0xf4] sm:$0xf]
  %v1979 = vld [vmem:[%s0 + $0xf8] sm:$0xf]
  %v1980 = vld [vmem:[%s0 + $0xfc] sm:$0xf]
  %2037 = vrot.lane.b32.xlu0 %v1925, 24
  %v2038 = vpop.permute.xlu0 %2037
  %2039 = vrot.lane.b32.xlu0 %v1926, 24
  %v2040 = vpop.permute.xlu0 %2039
  %2041 = vrot.lane.b32.xlu0 %v1927, 24
  %v2042 = vpop.permute.xlu0 %2041
  %2043 = vrot.lane.b32.xlu0 %v1928, 24
  %v2044 = vpop.permute.xlu0 %2043
  %2045 = vrot.lane.b32.xlu0 %v1929, 24
  %v2046 = vpop.permute.xlu0 %2045
  %2047 = vrot.lane.b32.xlu0 %v1930, 24
  %v2048 = vpop.permute.xlu0 %2047
  %2049 = vrot.lane.b32.xlu0 %v1931, 24
  %v2050 = vpop.permute.xlu0 %2049
  %2051 = vrot.lane.b32.xlu0 %v1932, 24
  %v2052 = vpop.permute.xlu0 %2051
  %2053 = vrot.lane.b32.xlu0 %v1933, 24
  %v2054 = vpop.permute.xlu0 %2053
  %2055 = vrot.lane.b32.xlu0 %v1934, 24
  %v2056 = vpop.permute.xlu0 %2055
  %2057 = vrot.lane.b32.xlu0 %v1935, 24
  %v2058 = vpop.permute.xlu0 %2057
  %2059 = vrot.lane.b32.xlu0 %v1936, 24
  %v2060 = vpop.permute.xlu0 %2059
  %2061 = vrot.lane.b32.xlu0 %v1937, 24
  %v2062 = vpop.permute.xlu0 %2061
  %2063 = vrot.lane.b32.xlu0 %v1938, 24
  %v2064 = vpop.permute.xlu0 %2063
  %2065 = vrot.lane.b32.xlu0 %v1939, 24
  %v2066 = vpop.permute.xlu0 %2065
  %2067 = vrot.lane.b32.xlu0 %v1940, 24
  %v2068 = vpop.permute.xlu0 %2067
  %2069 = vrot.lane.b32.xlu0 %v1941, 24
  %v2070 = vpop.permute.xlu0 %2069
  %2071 = vrot.lane.b32.xlu0 %v1942, 24
  %v2072 = vpop.permute.xlu0 %2071
  %2073 = vrot.lane.b32.xlu0 %v1943, 24
  %v2074 = vpop.permute.xlu0 %2073
  %2075 = vrot.lane.b32.xlu0 %v1944, 24
  %v2076 = vpop.permute.xlu0 %2075
  %2077 = vrot.lane.b32.xlu0 %v1945, 24
  %v2078 = vpop.permute.xlu0 %2077
  %2079 = vrot.lane.b32.xlu0 %v1946, 24
  %v2080 = vpop.permute.xlu0 %2079
  %2081 = vrot.lane.b32.xlu0 %v1947, 24
  %v2082 = vpop.permute.xlu0 %2081
  %2083 = vrot.lane.b32.xlu0 %v1948, 24
  %v2084 = vpop.permute.xlu0 %2083
  %2085 = vrot.lane.b32.xlu0 %v1949, 24
  %v2086 = vpop.permute.xlu0 %2085
  %2087 = vrot.lane.b32.xlu0 %v1950, 24
  %v2088 = vpop.permute.xlu0 %2087
  %2089 = vrot.lane.b32.xlu0 %v1951, 24
  %v2090 = vpop.permute.xlu0 %2089
  %2091 = vrot.lane.b32.xlu0 %v1952, 24
  %v2092 = vpop.permute.xlu0 %2091
  %2093 = vrot.lane.b32.xlu0 %v1953, 24
  %v2094 = vpop.permute.xlu0 %2093
  %2095 = vrot.lane.b32.xlu0 %v1954, 24
  %v2096 = vpop.permute.xlu0 %2095
  %2097 = vrot.lane.b32.xlu0 %v1955, 24
  %v2098 = vpop.permute.xlu0 %2097
  %2099 = vrot.lane.b32.xlu0 %v1956, 24
  %v2100 = vpop.permute.xlu0 %2099
  %2101 = vrot.lane.b32.xlu0 %v1957, 24
  %v2102 = vpop.permute.xlu0 %2101
  %2103 = vrot.lane.b32.xlu0 %v1958, 24
  %v2104 = vpop.permute.xlu0 %2103
  %2105 = vrot.lane.b32.xlu0 %v1959, 24
  %v2106 = vpop.permute.xlu0 %2105
  %2107 = vrot.lane.b32.xlu0 %v1960, 24
  %v2108 = vpop.permute.xlu0 %2107
  %2109 = vrot.lane.b32.xlu0 %v1961, 24
  %v2110 = vpop.permute.xlu0 %2109
  %2111 = vrot.lane.b32.xlu0 %v1962, 24
  %v2112 = vpop.permute.xlu0 %2111
  %2113 = vrot.lane.b32.xlu0 %v1963, 24
  %v2114 = vpop.permute.xlu0 %2113
  %2115 = vrot.lane.b32.xlu0 %v1964, 24
  %v2116 = vpop.permute.xlu0 %2115
  %2117 = vrot.lane.b32.xlu0 %v1965, 24
  %v2118 = vpop.permute.xlu0 %2117
  %2119 = vrot.lane.b32.xlu0 %v1966, 24
  %v2120 = vpop.permute.xlu0 %2119
  %2121 = vrot.lane.b32.xlu0 %v1967, 24
  %v2122 = vpop.permute.xlu0 %2121
  %2123 = vrot.lane.b32.xlu0 %v1968, 24
  %v2124 = vpop.permute.xlu0 %2123
  %2125 = vrot.lane.b32.xlu0 %v1969, 24
  %v2126 = vpop.permute.xlu0 %2125
  %2127 = vrot.lane.b32.xlu0 %v1970, 24
  %v2128 = vpop.permute.xlu0 %2127
  %2129 = vrot.lane.b32.xlu0 %v1971, 24
  %v2130 = vpop.permute.xlu0 %2129
  %2131 = vrot.lane.b32.xlu0 %v1972, 24
  %v2132 = vpop.permute.xlu0 %2131
  %2133 = vrot.lane.b32.xlu0 %v1973, 24
  %v2134 = vpop.permute.xlu0 %2133
  %2135 = vrot.lane.b32.xlu0 %v1974, 24
  %v2136 = vpop.permute.xlu0 %2135
  %2137 = vrot.lane.b32.xlu0 %v1975, 24
  %v2138 = vpop.permute.xlu0 %2137
  %2139 = vrot.lane.b32.xlu0 %v1976, 24
  %v2140 = vpop.permute.xlu0 %2139
  %2141 = vrot.lane.b32.xlu0 %v1977, 24
  %v2142 = vpop.permute.xlu0 %2141
  %2143 = vrot.lane.b32.xlu0 %v1978, 24
  %v2144 = vpop.permute.xlu0 %2143
  %2145 = vrot.lane.b32.xlu0 %v1979, 24
  %v2146 = vpop.permute.xlu0 %2145
  %2147 = vrot.lane.b32.xlu0 %v1980, 24
  %v2148 = vpop.permute.xlu0 %2147
  %2205 = vst.msk [vmem:[#allocation2] sm:$0xf] %vm1916, %v2038
  %2206 = vst.msk [vmem:[#allocation2 + $0x4] sm:$0xf] %vm1916, %v2040
  %2207 = vst.msk [vmem:[#allocation2 + $0x8] sm:$0xf] %vm1916, %v2042
  %2208 = vst.msk [vmem:[#allocation2 + $0xc] sm:$0xf] %vm1916, %v2044
  %2209 = vst.msk [vmem:[#allocation2 + $0x10] sm:$0xf] %vm1916, %v2046
  %2210 = vst.msk [vmem:[#allocation2 + $0x14] sm:$0xf] %vm1916, %v2048
  %2211 = vst.msk [vmem:[#allocation2 + $0x18] sm:$0xf] %vm1916, %v2050
  %2212 = vst.msk [vmem:[#allocation2 + $0x1c] sm:$0xf] %vm1916, %v2052
  %2213 = vst.msk [vmem:[#allocation2 + $0x20] sm:$0xf] %vm1916, %v2054
  %2214 = vst.msk [vmem:[#allocation2 + $0x24] sm:$0xf] %vm1916, %v2056
  %2215 = vst.msk [vmem:[#allocation2 + $0x28] sm:$0xf] %vm1916, %v2058
  %2216 = vst.msk [vmem:[#allocation2 + $0x2c] sm:$0xf] %vm1916, %v2060
  %2217 = vst.msk [vmem:[#allocation2 + $0x30] sm:$0xf] %vm1916, %v2062
  %2218 = vst.msk [vmem:[#allocation2 + $0x34] sm:$0xf] %vm1916, %v2064
  %2219 = vst.msk [vmem:[#allocation2 + $0x38] sm:$0xf] %vm1916, %v2066
  %2220 = vst.msk [vmem:[#allocation2 + $0x3c] sm:$0xf] %vm1916, %v2068
  %2221 = vst.msk [vmem:[#allocation2 + $0x40] sm:$0xf] %vm1916, %v2070
  %2222 = vst.msk [vmem:[#allocation2 + $0x44] sm:$0xf] %vm1916, %v2072
  %2223 = vst.msk [vmem:[#allocation2 + $0x48] sm:$0xf] %vm1916, %v2074
  %2224 = vst.msk [vmem:[#allocation2 + $0x4c] sm:$0xf] %vm1916, %v2076
  %2225 = vst.msk [vmem:[#allocation2 + $0x50] sm:$0xf] %vm1916, %v2078
  %2226 = vst.msk [vmem:[#allocation2 + $0x54] sm:$0xf] %vm1916, %v2080
  %2227 = vst.msk [vmem:[#allocation2 + $0x58] sm:$0xf] %vm1916, %v2082
  %2228 = vst.msk [vmem:[#allocation2 + $0x5c] sm:$0xf] %vm1916, %v2084
  %2229 = vst.msk [vmem:[#allocation2 + $0x60] sm:$0xf] %vm1916, %v2086
  %2230 = vst.msk [vmem:[#allocation2 + $0x64] sm:$0xf] %vm1916, %v2088
  %2231 = vst.msk [vmem:[#allocation2 + $0x68] sm:$0xf] %vm1916, %v2090
  %2232 = vst.msk [vmem:[#allocation2 + $0x6c] sm:$0xf] %vm1916, %v2092
  %2233 = vst.msk [vmem:[#allocation2 + $0x70] sm:$0xf] %vm1916, %v2094
  %2234 = vst.msk [vmem:[#allocation2 + $0x74] sm:$0xf] %vm1916, %v2096
  %2235 = vst.msk [vmem:[#allocation2 + $0x78] sm:$0xf] %vm1916, %v2098
  %2236 = vst.msk [vmem:[#allocation2 + $0x7c] sm:$0xf] %vm1916, %v2100
  %2237 = vst.msk [vmem:[#allocation2 + $0x80] sm:$0xf] %vm1916, %v2102
  %2238 = vst.msk [vmem:[#allocation2 + $0x84] sm:$0xf] %vm1916, %v2104
  %2239 = vst.msk [vmem:[#allocation2 + $0x88] sm:$0xf] %vm1916, %v2106
  %2240 = vst.msk [vmem:[#allocation2 + $0x8c] sm:$0xf] %vm1916, %v2108
  %2241 = vst.msk [vmem:[#allocation2 + $0x90] sm:$0xf] %vm1916, %v2110
  %2242 = vst.msk [vmem:[#allocation2 + $0x94] sm:$0xf] %vm1916, %v2112
  %2243 = vst.msk [vmem:[#allocation2 + $0x98] sm:$0xf] %vm1916, %v2114
  %2244 = vst.msk [vmem:[#allocation2 + $0x9c] sm:$0xf] %vm1916, %v2116
  %2245 = vst.msk [vmem:[#allocation2 + $0xa0] sm:$0xf] %vm1916, %v2118
  %2246 = vst.msk [vmem:[#allocation2 + $0xa4] sm:$0xf] %vm1916, %v2120
  %2247 = vst.msk [vmem:[#allocation2 + $0xa8] sm:$0xf] %vm1916, %v2122
  %2248 = vst.msk [vmem:[#allocation2 + $0xac] sm:$0xf] %vm1916, %v2124
  %2249 = vst.msk [vmem:[#allocation2 + $0xb0] sm:$0xf] %vm1916, %v2126
  %2250 = vst.msk [vmem:[#allocation2 + $0xb4] sm:$0xf] %vm1916, %v2128
  %2251 = vst.msk [vmem:[#allocation2 + $0xb8] sm:$0xf] %vm1916, %v2130
  %2252 = vst.msk [vmem:[#allocation2 + $0xbc] sm:$0xf] %vm1916, %v2132
  %2253 = vst.msk [vmem:[#allocation2 + $0xc0] sm:$0xf] %vm1916, %v2134
  %2254 = vst.msk [vmem:[#allocation2 + $0xc4] sm:$0xf] %vm1916, %v2136
  %2255 = vst.msk [vmem:[#allocation2 + $0xc8] sm:$0xf] %vm1916, %v2138
  %2256 = vst.msk [vmem:[#allocation2 + $0xcc] sm:$0xf] %vm1916, %v2140
  %2257 = vst.msk [vmem:[#allocation2 + $0xd0] sm:$0xf] %vm1916, %v2142
  %2258 = vst.msk [vmem:[#allocation2 + $0xd4] sm:$0xf] %vm1916, %v2144
  %2259 = vst.msk [vmem:[#allocation2 + $0xd8] sm:$0xf] %vm1916, %v2146
  %2260 = vst.msk [vmem:[#allocation2 + $0xdc] sm:$0xf] %vm1916, %v2148
  %vm2261 = vcmask 257248
  %2262 = vst.msk [vmem:[#allocation2 + $0xd0] sm:$0xf] %vm2261, 0
  %2263 = vst.msk [vmem:[#allocation2 + $0xd4] sm:$0xf] %vm2261, 0
  %2264 = vst.msk [vmem:[#allocation2 + $0xd8] sm:$0xf] %vm2261, 0
  %2265 = vst.msk [vmem:[#allocation2 + $0xdc] sm:$0xf] %vm2261, 0
  %2266 = vst.msk [vmem:[#allocation2 + $0xe0] sm:$0xf] %vm2261, 0
  %2267 = vst.msk [vmem:[#allocation2 + $0xe4] sm:$0xf] %vm2261, 0
  %2268 = vst.msk [vmem:[#allocation2 + $0xe8] sm:$0xf] %vm2261, 0
  %2269 = vst.msk [vmem:[#allocation2 + $0xec] sm:$0xf] %vm2261, 0
  %2270 = vst.msk [vmem:[#allocation2 + $0xf0] sm:$0xf] %vm2261, 0
  %2271 = vst.msk [vmem:[#allocation2 + $0xf4] sm:$0xf] %vm2261, 0
  %2272 = vst.msk [vmem:[#allocation2 + $0xf8] sm:$0xf] %vm2261, 0
  %2273 = vst.msk [vmem:[#allocation2 + $0xfc] sm:$0xf] %vm2261, 0
  %v2274 = vld [vmem:[%s0 + $0x30] sm:$0xf]
  %v2275 = vld [vmem:[%s0 + $0x34] sm:$0xf]
  %v2276 = vld [vmem:[%s0 + $0x38] sm:$0xf]
  %v2277 = vld [vmem:[%s0 + $0x3c] sm:$0xf]
  %v2278 = vld [vmem:[%s0 + $0x40] sm:$0xf]
  %v2279 = vld [vmem:[%s0 + $0x44] sm:$0xf]
  %v2280 = vld [vmem:[%s0 + $0x48] sm:$0xf]
  %v2281 = vld [vmem:[%s0 + $0x4c] sm:$0xf]
  %v2282 = vld [vmem:[%s0 + $0x50] sm:$0xf]
  %v2283 = vld [vmem:[%s0 + $0x54] sm:$0xf]
  %v2284 = vld [vmem:[%s0 + $0x58] sm:$0xf]
  %v2285 = vld [vmem:[%s0 + $0x5c] sm:$0xf]
  %v2286 = vld [vmem:[%s0 + $0x60] sm:$0xf]
  %v2287 = vld [vmem:[%s0 + $0x64] sm:$0xf]
  %v2288 = vld [vmem:[%s0 + $0x68] sm:$0xf]
  %v2289 = vld [vmem:[%s0 + $0x6c] sm:$0xf]
  %v2290 = vld [vmem:[%s0 + $0x70] sm:$0xf]
  %v2291 = vld [vmem:[%s0 + $0x74] sm:$0xf]
  %v2292 = vld [vmem:[%s0 + $0x78] sm:$0xf]
  %v2293 = vld [vmem:[%s0 + $0x7c] sm:$0xf]
  %v2294 = vld [vmem:[%s0 + $0x80] sm:$0xf]
  %v2295 = vld [vmem:[%s0 + $0x84] sm:$0xf]
  %v2296 = vld [vmem:[%s0 + $0x88] sm:$0xf]
  %v2297 = vld [vmem:[%s0 + $0x8c] sm:$0xf]
  %v2298 = vld [vmem:[%s0 + $0x90] sm:$0xf]
  %v2299 = vld [vmem:[%s0 + $0x94] sm:$0xf]
  %v2300 = vld [vmem:[%s0 + $0x98] sm:$0xf]
  %v2301 = vld [vmem:[%s0 + $0x9c] sm:$0xf]
  %v2302 = vld [vmem:[%s0 + $0xa0] sm:$0xf]
  %v2303 = vld [vmem:[%s0 + $0xa4] sm:$0xf]
  %v2304 = vld [vmem:[%s0 + $0xa8] sm:$0xf]
  %v2305 = vld [vmem:[%s0 + $0xac] sm:$0xf]
  %v2306 = vld [vmem:[%s0 + $0xb0] sm:$0xf]
  %v2307 = vld [vmem:[%s0 + $0xb4] sm:$0xf]
  %v2308 = vld [vmem:[%s0 + $0xb8] sm:$0xf]
  %v2309 = vld [vmem:[%s0 + $0xbc] sm:$0xf]
  %v2310 = vld [vmem:[%s0 + $0xc0] sm:$0xf]
  %v2311 = vld [vmem:[%s0 + $0xc4] sm:$0xf]
  %v2312 = vld [vmem:[%s0 + $0xc8] sm:$0xf]
  %v2313 = vld [vmem:[%s0 + $0xcc] sm:$0xf]
  %v2314 = vld [vmem:[%s0 + $0xd0] sm:$0xf]
  %v2315 = vld [vmem:[%s0 + $0xd4] sm:$0xf]
  %v2316 = vld [vmem:[%s0 + $0xd8] sm:$0xf]
  %v2317 = vld [vmem:[%s0 + $0xdc] sm:$0xf]
  %v2318 = vld [vmem:[%s0 + $0xe0] sm:$0xf]
  %v2319 = vld [vmem:[%s0 + $0xe4] sm:$0xf]
  %v2320 = vld [vmem:[%s0 + $0xe8] sm:$0xf]
  %v2321 = vld [vmem:[%s0 + $0xec] sm:$0xf]
  %v2322 = vld [vmem:[%s0 + $0xf0] sm:$0xf]
  %v2323 = vld [vmem:[%s0 + $0xf4] sm:$0xf]
  %v2324 = vld [vmem:[%s0 + $0xf8] sm:$0xf]
  %v2325 = vld [vmem:[%s0 + $0xfc] sm:$0xf]
  %2378 = vrot.lane.b32.xlu0 %v2274, 28
  %v2379 = vpop.permute.xlu0 %2378
  %2380 = vrot.lane.b32.xlu0 %v2275, 28
  %v2381 = vpop.permute.xlu0 %2380
  %2382 = vrot.lane.b32.xlu0 %v2276, 28
  %v2383 = vpop.permute.xlu0 %2382
  %2384 = vrot.lane.b32.xlu0 %v2277, 28
  %v2385 = vpop.permute.xlu0 %2384
  %2386 = vrot.lane.b32.xlu0 %v2278, 28
  %v2387 = vpop.permute.xlu0 %2386
  %2388 = vrot.lane.b32.xlu0 %v2279, 28
  %v2389 = vpop.permute.xlu0 %2388
  %2390 = vrot.lane.b32.xlu0 %v2280, 28
  %v2391 = vpop.permute.xlu0 %2390
  %2392 = vrot.lane.b32.xlu0 %v2281, 28
  %v2393 = vpop.permute.xlu0 %2392
  %2394 = vrot.lane.b32.xlu0 %v2282, 28
  %v2395 = vpop.permute.xlu0 %2394
  %2396 = vrot.lane.b32.xlu0 %v2283, 28
  %v2397 = vpop.permute.xlu0 %2396
  %2398 = vrot.lane.b32.xlu0 %v2284, 28
  %v2399 = vpop.permute.xlu0 %2398
  %2400 = vrot.lane.b32.xlu0 %v2285, 28
  %v2401 = vpop.permute.xlu0 %2400
  %2402 = vrot.lane.b32.xlu0 %v2286, 28
  %v2403 = vpop.permute.xlu0 %2402
  %2404 = vrot.lane.b32.xlu0 %v2287, 28
  %v2405 = vpop.permute.xlu0 %2404
  %2406 = vrot.lane.b32.xlu0 %v2288, 28
  %v2407 = vpop.permute.xlu0 %2406
  %2408 = vrot.lane.b32.xlu0 %v2289, 28
  %v2409 = vpop.permute.xlu0 %2408
  %2410 = vrot.lane.b32.xlu0 %v2290, 28
  %v2411 = vpop.permute.xlu0 %2410
  %2412 = vrot.lane.b32.xlu0 %v2291, 28
  %v2413 = vpop.permute.xlu0 %2412
  %2414 = vrot.lane.b32.xlu0 %v2292, 28
  %v2415 = vpop.permute.xlu0 %2414
  %2416 = vrot.lane.b32.xlu0 %v2293, 28
  %v2417 = vpop.permute.xlu0 %2416
  %2418 = vrot.lane.b32.xlu0 %v2294, 28
  %v2419 = vpop.permute.xlu0 %2418
  %2420 = vrot.lane.b32.xlu0 %v2295, 28
  %v2421 = vpop.permute.xlu0 %2420
  %2422 = vrot.lane.b32.xlu0 %v2296, 28
  %v2423 = vpop.permute.xlu0 %2422
  %2424 = vrot.lane.b32.xlu0 %v2297, 28
  %v2425 = vpop.permute.xlu0 %2424
  %2426 = vrot.lane.b32.xlu0 %v2298, 28
  %v2427 = vpop.permute.xlu0 %2426
  %2428 = vrot.lane.b32.xlu0 %v2299, 28
  %v2429 = vpop.permute.xlu0 %2428
  %2430 = vrot.lane.b32.xlu0 %v2300, 28
  %v2431 = vpop.permute.xlu0 %2430
  %2432 = vrot.lane.b32.xlu0 %v2301, 28
  %v2433 = vpop.permute.xlu0 %2432
  %2434 = vrot.lane.b32.xlu0 %v2302, 28
  %v2435 = vpop.permute.xlu0 %2434
  %2436 = vrot.lane.b32.xlu0 %v2303, 28
  %v2437 = vpop.permute.xlu0 %2436
  %2438 = vrot.lane.b32.xlu0 %v2304, 28
  %v2439 = vpop.permute.xlu0 %2438
  %2440 = vrot.lane.b32.xlu0 %v2305, 28
  %v2441 = vpop.permute.xlu0 %2440
  %2442 = vrot.lane.b32.xlu0 %v2306, 28
  %v2443 = vpop.permute.xlu0 %2442
  %2444 = vrot.lane.b32.xlu0 %v2307, 28
  %v2445 = vpop.permute.xlu0 %2444
  %2446 = vrot.lane.b32.xlu0 %v2308, 28
  %v2447 = vpop.permute.xlu0 %2446
  %2448 = vrot.lane.b32.xlu0 %v2309, 28
  %v2449 = vpop.permute.xlu0 %2448
  %2450 = vrot.lane.b32.xlu0 %v2310, 28
  %v2451 = vpop.permute.xlu0 %2450
  %2452 = vrot.lane.b32.xlu0 %v2311, 28
  %v2453 = vpop.permute.xlu0 %2452
  %2454 = vrot.lane.b32.xlu0 %v2312, 28
  %v2455 = vpop.permute.xlu0 %2454
  %2456 = vrot.lane.b32.xlu0 %v2313, 28
  %v2457 = vpop.permute.xlu0 %2456
  %2458 = vrot.lane.b32.xlu0 %v2314, 28
  %v2459 = vpop.permute.xlu0 %2458
  %2460 = vrot.lane.b32.xlu0 %v2315, 28
  %v2461 = vpop.permute.xlu0 %2460
  %2462 = vrot.lane.b32.xlu0 %v2316, 28
  %v2463 = vpop.permute.xlu0 %2462
  %2464 = vrot.lane.b32.xlu0 %v2317, 28
  %v2465 = vpop.permute.xlu0 %2464
  %2466 = vrot.lane.b32.xlu0 %v2318, 28
  %v2467 = vpop.permute.xlu0 %2466
  %2468 = vrot.lane.b32.xlu0 %v2319, 28
  %v2469 = vpop.permute.xlu0 %2468
  %2470 = vrot.lane.b32.xlu0 %v2320, 28
  %v2471 = vpop.permute.xlu0 %2470
  %2472 = vrot.lane.b32.xlu0 %v2321, 28
  %v2473 = vpop.permute.xlu0 %2472
  %2474 = vrot.lane.b32.xlu0 %v2322, 28
  %v2475 = vpop.permute.xlu0 %2474
  %2476 = vrot.lane.b32.xlu0 %v2323, 28
  %v2477 = vpop.permute.xlu0 %2476
  %2478 = vrot.lane.b32.xlu0 %v2324, 28
  %v2479 = vpop.permute.xlu0 %2478
  %2480 = vrot.lane.b32.xlu0 %v2325, 28
  %v2481 = vpop.permute.xlu0 %2480
  %2534 = vst.msk [vmem:[#allocation2] sm:$0xf] %vm2261, %v2379
  %2535 = vst.msk [vmem:[#allocation2 + $0x4] sm:$0xf] %vm2261, %v2381
  %2536 = vst.msk [vmem:[#allocation2 + $0x8] sm:$0xf] %vm2261, %v2383
  %2537 = vst.msk [vmem:[#allocation2 + $0xc] sm:$0xf] %vm2261, %v2385
  %2538 = vst.msk [vmem:[#allocation2 + $0x10] sm:$0xf] %vm2261, %v2387
  %2539 = vst.msk [vmem:[#allocation2 + $0x14] sm:$0xf] %vm2261, %v2389
  %2540 = vst.msk [vmem:[#allocation2 + $0x18] sm:$0xf] %vm2261, %v2391
  %2541 = vst.msk [vmem:[#allocation2 + $0x1c] sm:$0xf] %vm2261, %v2393
  %2542 = vst.msk [vmem:[#allocation2 + $0x20] sm:$0xf] %vm2261, %v2395
  %2543 = vst.msk [vmem:[#allocation2 + $0x24] sm:$0xf] %vm2261, %v2397
  %2544 = vst.msk [vmem:[#allocation2 + $0x28] sm:$0xf] %vm2261, %v2399
  %2545 = vst.msk [vmem:[#allocation2 + $0x2c] sm:$0xf] %vm2261, %v2401
  %2546 = vst.msk [vmem:[#allocation2 + $0x30] sm:$0xf] %vm2261, %v2403
  %2547 = vst.msk [vmem:[#allocation2 + $0x34] sm:$0xf] %vm2261, %v2405
  %2548 = vst.msk [vmem:[#allocation2 + $0x38] sm:$0xf] %vm2261, %v2407
  %2549 = vst.msk [vmem:[#allocation2 + $0x3c] sm:$0xf] %vm2261, %v2409
  %2550 = vst.msk [vmem:[#allocation2 + $0x40] sm:$0xf] %vm2261, %v2411
  %2551 = vst.msk [vmem:[#allocation2 + $0x44] sm:$0xf] %vm2261, %v2413
  %2552 = vst.msk [vmem:[#allocation2 + $0x48] sm:$0xf] %vm2261, %v2415
  %2553 = vst.msk [vmem:[#allocation2 + $0x4c] sm:$0xf] %vm2261, %v2417
  %2554 = vst.msk [vmem:[#allocation2 + $0x50] sm:$0xf] %vm2261, %v2419
  %2555 = vst.msk [vmem:[#allocation2 + $0x54] sm:$0xf] %vm2261, %v2421
  %2556 = vst.msk [vmem:[#allocation2 + $0x58] sm:$0xf] %vm2261, %v2423
  %2557 = vst.msk [vmem:[#allocation2 + $0x5c] sm:$0xf] %vm2261, %v2425
  %2558 = vst.msk [vmem:[#allocation2 + $0x60] sm:$0xf] %vm2261, %v2427
  %2559 = vst.msk [vmem:[#allocation2 + $0x64] sm:$0xf] %vm2261, %v2429
  %2560 = vst.msk [vmem:[#allocation2 + $0x68] sm:$0xf] %vm2261, %v2431
  %2561 = vst.msk [vmem:[#allocation2 + $0x6c] sm:$0xf] %vm2261, %v2433
  %2562 = vst.msk [vmem:[#allocation2 + $0x70] sm:$0xf] %vm2261, %v2435
  %2563 = vst.msk [vmem:[#allocation2 + $0x74] sm:$0xf] %vm2261, %v2437
  %2564 = vst.msk [vmem:[#allocation2 + $0x78] sm:$0xf] %vm2261, %v2439
  %2565 = vst.msk [vmem:[#allocation2 + $0x7c] sm:$0xf] %vm2261, %v2441
  %2566 = vst.msk [vmem:[#allocation2 + $0x80] sm:$0xf] %vm2261, %v2443
  %2567 = vst.msk [vmem:[#allocation2 + $0x84] sm:$0xf] %vm2261, %v2445
  %2568 = vst.msk [vmem:[#allocation2 + $0x88] sm:$0xf] %vm2261, %v2447
  %2569 = vst.msk [vmem:[#allocation2 + $0x8c] sm:$0xf] %vm2261, %v2449
  %2570 = vst.msk [vmem:[#allocation2 + $0x90] sm:$0xf] %vm2261, %v2451
  %2571 = vst.msk [vmem:[#allocation2 + $0x94] sm:$0xf] %vm2261, %v2453
  %2572 = vst.msk [vmem:[#allocation2 + $0x98] sm:$0xf] %vm2261, %v2455
  %2573 = vst.msk [vmem:[#allocation2 + $0x9c] sm:$0xf] %vm2261, %v2457
  %2574 = vst.msk [vmem:[#allocation2 + $0xa0] sm:$0xf] %vm2261, %v2459
  %2575 = vst.msk [vmem:[#allocation2 + $0xa4] sm:$0xf] %vm2261, %v2461
  %2576 = vst.msk [vmem:[#allocation2 + $0xa8] sm:$0xf] %vm2261, %v2463
  %2577 = vst.msk [vmem:[#allocation2 + $0xac] sm:$0xf] %vm2261, %v2465
  %2578 = vst.msk [vmem:[#allocation2 + $0xb0] sm:$0xf] %vm2261, %v2467
  %2579 = vst.msk [vmem:[#allocation2 + $0xb4] sm:$0xf] %vm2261, %v2469
  %2580 = vst.msk [vmem:[#allocation2 + $0xb8] sm:$0xf] %vm2261, %v2471
  %2581 = vst.msk [vmem:[#allocation2 + $0xbc] sm:$0xf] %vm2261, %v2473
  %2582 = vst.msk [vmem:[#allocation2 + $0xc0] sm:$0xf] %vm2261, %v2475
  %2583 = vst.msk [vmem:[#allocation2 + $0xc4] sm:$0xf] %vm2261, %v2477
  %2584 = vst.msk [vmem:[#allocation2 + $0xc8] sm:$0xf] %vm2261, %v2479
  %2585 = vst.msk [vmem:[#allocation2 + $0xcc] sm:$0xf] %vm2261, %v2481
  %vm2586 = vcmask 290048
  %2587 = vst.msk [vmem:[#allocation2 + $0xc0] sm:$0xf] %vm2586, 0
  %2588 = vst.msk [vmem:[#allocation2 + $0xc4] sm:$0xf] %vm2586, 0
  %2589 = vst.msk [vmem:[#allocation2 + $0xc8] sm:$0xf] %vm2586, 0
  %2590 = vst.msk [vmem:[#allocation2 + $0xcc] sm:$0xf] %vm2586, 0
  %2591 = vst.msk [vmem:[#allocation2 + $0xd0] sm:$0xf] %vm2586, 0
  %2592 = vst.msk [vmem:[#allocation2 + $0xd4] sm:$0xf] %vm2586, 0
  %2593 = vst.msk [vmem:[#allocation2 + $0xd8] sm:$0xf] %vm2586, 0
  %2594 = vst.msk [vmem:[#allocation2 + $0xdc] sm:$0xf] %vm2586, 0
  %2595 = vst.msk [vmem:[#allocation2 + $0xe0] sm:$0xf] %vm2586, 0
  %2596 = vst.msk [vmem:[#allocation2 + $0xe4] sm:$0xf] %vm2586, 0
  %2597 = vst.msk [vmem:[#allocation2 + $0xe8] sm:$0xf] %vm2586, 0
  %2598 = vst.msk [vmem:[#allocation2 + $0xec] sm:$0xf] %vm2586, 0
  %2599 = vst.msk [vmem:[#allocation2 + $0xf0] sm:$0xf] %vm2586, 0
  %2600 = vst.msk [vmem:[#allocation2 + $0xf4] sm:$0xf] %vm2586, 0
  %2601 = vst.msk [vmem:[#allocation2 + $0xf8] sm:$0xf] %vm2586, 0
  %2602 = vst.msk [vmem:[#allocation2 + $0xfc] sm:$0xf] %vm2586, 0
  %v2603 = vld [vmem:[%s0 + $0x40] sm:$0xf]
  %v2604 = vld [vmem:[%s0 + $0x44] sm:$0xf]
  %v2605 = vld [vmem:[%s0 + $0x48] sm:$0xf]
  %v2606 = vld [vmem:[%s0 + $0x4c] sm:$0xf]
  %v2607 = vld [vmem:[%s0 + $0x50] sm:$0xf]
  %v2608 = vld [vmem:[%s0 + $0x54] sm:$0xf]
  %v2609 = vld [vmem:[%s0 + $0x58] sm:$0xf]
  %v2610 = vld [vmem:[%s0 + $0x5c] sm:$0xf]
  %v2611 = vld [vmem:[%s0 + $0x60] sm:$0xf]
  %v2612 = vld [vmem:[%s0 + $0x64] sm:$0xf]
  %v2613 = vld [vmem:[%s0 + $0x68] sm:$0xf]
  %v2614 = vld [vmem:[%s0 + $0x6c] sm:$0xf]
  %v2615 = vld [vmem:[%s0 + $0x70] sm:$0xf]
  %v2616 = vld [vmem:[%s0 + $0x74] sm:$0xf]
  %v2617 = vld [vmem:[%s0 + $0x78] sm:$0xf]
  %v2618 = vld [vmem:[%s0 + $0x7c] sm:$0xf]
  %v2619 = vld [vmem:[%s0 + $0x80] sm:$0xf]
  %v2620 = vld [vmem:[%s0 + $0x84] sm:$0xf]
  %v2621 = vld [vmem:[%s0 + $0x88] sm:$0xf]
  %v2622 = vld [vmem:[%s0 + $0x8c] sm:$0xf]
  %v2623 = vld [vmem:[%s0 + $0x90] sm:$0xf]
  %v2624 = vld [vmem:[%s0 + $0x94] sm:$0xf]
  %v2625 = vld [vmem:[%s0 + $0x98] sm:$0xf]
  %v2626 = vld [vmem:[%s0 + $0x9c] sm:$0xf]
  %v2627 = vld [vmem:[%s0 + $0xa0] sm:$0xf]
  %v2628 = vld [vmem:[%s0 + $0xa4] sm:$0xf]
  %v2629 = vld [vmem:[%s0 + $0xa8] sm:$0xf]
  %v2630 = vld [vmem:[%s0 + $0xac] sm:$0xf]
  %v2631 = vld [vmem:[%s0 + $0xb0] sm:$0xf]
  %v2632 = vld [vmem:[%s0 + $0xb4] sm:$0xf]
  %v2633 = vld [vmem:[%s0 + $0xb8] sm:$0xf]
  %v2634 = vld [vmem:[%s0 + $0xbc] sm:$0xf]
  %v2635 = vld [vmem:[%s0 + $0xc0] sm:$0xf]
  %v2636 = vld [vmem:[%s0 + $0xc4] sm:$0xf]
  %v2637 = vld [vmem:[%s0 + $0xc8] sm:$0xf]
  %v2638 = vld [vmem:[%s0 + $0xcc] sm:$0xf]
  %v2639 = vld [vmem:[%s0 + $0xd0] sm:$0xf]
  %v2640 = vld [vmem:[%s0 + $0xd4] sm:$0xf]
  %v2641 = vld [vmem:[%s0 + $0xd8] sm:$0xf]
  %v2642 = vld [vmem:[%s0 + $0xdc] sm:$0xf]
  %v2643 = vld [vmem:[%s0 + $0xe0] sm:$0xf]
  %v2644 = vld [vmem:[%s0 + $0xe4] sm:$0xf]
  %v2645 = vld [vmem:[%s0 + $0xe8] sm:$0xf]
  %v2646 = vld [vmem:[%s0 + $0xec] sm:$0xf]
  %v2647 = vld [vmem:[%s0 + $0xf0] sm:$0xf]
  %v2648 = vld [vmem:[%s0 + $0xf4] sm:$0xf]
  %v2649 = vld [vmem:[%s0 + $0xf8] sm:$0xf]
  %v2650 = vld [vmem:[%s0 + $0xfc] sm:$0xf]
  %2699 = vrot.lane.b32.xlu0 %v2603, 32
  %v2700 = vpop.permute.xlu0 %2699
  %2701 = vrot.lane.b32.xlu0 %v2604, 32
  %v2702 = vpop.permute.xlu0 %2701
  %2703 = vrot.lane.b32.xlu0 %v2605, 32
  %v2704 = vpop.permute.xlu0 %2703
  %2705 = vrot.lane.b32.xlu0 %v2606, 32
  %v2706 = vpop.permute.xlu0 %2705
  %2707 = vrot.lane.b32.xlu0 %v2607, 32
  %v2708 = vpop.permute.xlu0 %2707
  %2709 = vrot.lane.b32.xlu0 %v2608, 32
  %v2710 = vpop.permute.xlu0 %2709
  %2711 = vrot.lane.b32.xlu0 %v2609, 32
  %v2712 = vpop.permute.xlu0 %2711
  %2713 = vrot.lane.b32.xlu0 %v2610, 32
  %v2714 = vpop.permute.xlu0 %2713
  %2715 = vrot.lane.b32.xlu0 %v2611, 32
  %v2716 = vpop.permute.xlu0 %2715
  %2717 = vrot.lane.b32.xlu0 %v2612, 32
  %v2718 = vpop.permute.xlu0 %2717
  %2719 = vrot.lane.b32.xlu0 %v2613, 32
  %v2720 = vpop.permute.xlu0 %2719
  %2721 = vrot.lane.b32.xlu0 %v2614, 32
  %v2722 = vpop.permute.xlu0 %2721
  %2723 = vrot.lane.b32.xlu0 %v2615, 32
  %v2724 = vpop.permute.xlu0 %2723
  %2725 = vrot.lane.b32.xlu0 %v2616, 32
  %v2726 = vpop.permute.xlu0 %2725
  %2727 = vrot.lane.b32.xlu0 %v2617, 32
  %v2728 = vpop.permute.xlu0 %2727
  %2729 = vrot.lane.b32.xlu0 %v2618, 32
  %v2730 = vpop.permute.xlu0 %2729
  %2731 = vrot.lane.b32.xlu0 %v2619, 32
  %v2732 = vpop.permute.xlu0 %2731
  %2733 = vrot.lane.b32.xlu0 %v2620, 32
  %v2734 = vpop.permute.xlu0 %2733
  %2735 = vrot.lane.b32.xlu0 %v2621, 32
  %v2736 = vpop.permute.xlu0 %2735
  %2737 = vrot.lane.b32.xlu0 %v2622, 32
  %v2738 = vpop.permute.xlu0 %2737
  %2739 = vrot.lane.b32.xlu0 %v2623, 32
  %v2740 = vpop.permute.xlu0 %2739
  %2741 = vrot.lane.b32.xlu0 %v2624, 32
  %v2742 = vpop.permute.xlu0 %2741
  %2743 = vrot.lane.b32.xlu0 %v2625, 32
  %v2744 = vpop.permute.xlu0 %2743
  %2745 = vrot.lane.b32.xlu0 %v2626, 32
  %v2746 = vpop.permute.xlu0 %2745
  %2747 = vrot.lane.b32.xlu0 %v2627, 32
  %v2748 = vpop.permute.xlu0 %2747
  %2749 = vrot.lane.b32.xlu0 %v2628, 32
  %v2750 = vpop.permute.xlu0 %2749
  %2751 = vrot.lane.b32.xlu0 %v2629, 32
  %v2752 = vpop.permute.xlu0 %2751
  %2753 = vrot.lane.b32.xlu0 %v2630, 32
  %v2754 = vpop.permute.xlu0 %2753
  %2755 = vrot.lane.b32.xlu0 %v2631, 32
  %v2756 = vpop.permute.xlu0 %2755
  %2757 = vrot.lane.b32.xlu0 %v2632, 32
  %v2758 = vpop.permute.xlu0 %2757
  %2759 = vrot.lane.b32.xlu0 %v2633, 32
  %v2760 = vpop.permute.xlu0 %2759
  %2761 = vrot.lane.b32.xlu0 %v2634, 32
  %v2762 = vpop.permute.xlu0 %2761
  %2763 = vrot.lane.b32.xlu0 %v2635, 32
  %v2764 = vpop.permute.xlu0 %2763
  %2765 = vrot.lane.b32.xlu0 %v2636, 32
  %v2766 = vpop.permute.xlu0 %2765
  %2767 = vrot.lane.b32.xlu0 %v2637, 32
  %v2768 = vpop.permute.xlu0 %2767
  %2769 = vrot.lane.b32.xlu0 %v2638, 32
  %v2770 = vpop.permute.xlu0 %2769
  %2771 = vrot.lane.b32.xlu0 %v2639, 32
  %v2772 = vpop.permute.xlu0 %2771
  %2773 = vrot.lane.b32.xlu0 %v2640, 32
  %v2774 = vpop.permute.xlu0 %2773
  %2775 = vrot.lane.b32.xlu0 %v2641, 32
  %v2776 = vpop.permute.xlu0 %2775
  %2777 = vrot.lane.b32.xlu0 %v2642, 32
  %v2778 = vpop.permute.xlu0 %2777
  %2779 = vrot.lane.b32.xlu0 %v2643, 32
  %v2780 = vpop.permute.xlu0 %2779
  %2781 = vrot.lane.b32.xlu0 %v2644, 32
  %v2782 = vpop.permute.xlu0 %2781
  %2783 = vrot.lane.b32.xlu0 %v2645, 32
  %v2784 = vpop.permute.xlu0 %2783
  %2785 = vrot.lane.b32.xlu0 %v2646, 32
  %v2786 = vpop.permute.xlu0 %2785
  %2787 = vrot.lane.b32.xlu0 %v2647, 32
  %v2788 = vpop.permute.xlu0 %2787
  %2789 = vrot.lane.b32.xlu0 %v2648, 32
  %v2790 = vpop.permute.xlu0 %2789
  %2791 = vrot.lane.b32.xlu0 %v2649, 32
  %v2792 = vpop.permute.xlu0 %2791
  %2793 = vrot.lane.b32.xlu0 %v2650, 32
  %v2794 = vpop.permute.xlu0 %2793
  %2843 = vst.msk [vmem:[#allocation2] sm:$0xf] %vm2586, %v2700
  %2844 = vst.msk [vmem:[#allocation2 + $0x4] sm:$0xf] %vm2586, %v2702
  %2845 = vst.msk [vmem:[#allocation2 + $0x8] sm:$0xf] %vm2586, %v2704
  %2846 = vst.msk [vmem:[#allocation2 + $0xc] sm:$0xf] %vm2586, %v2706
  %2847 = vst.msk [vmem:[#allocation2 + $0x10] sm:$0xf] %vm2586, %v2708
  %2848 = vst.msk [vmem:[#allocation2 + $0x14] sm:$0xf] %vm2586, %v2710
  %2849 = vst.msk [vmem:[#allocation2 + $0x18] sm:$0xf] %vm2586, %v2712
  %2850 = vst.msk [vmem:[#allocation2 + $0x1c] sm:$0xf] %vm2586, %v2714
  %2851 = vst.msk [vmem:[#allocation2 + $0x20] sm:$0xf] %vm2586, %v2716
  %2852 = vst.msk [vmem:[#allocation2 + $0x24] sm:$0xf] %vm2586, %v2718
  %2853 = vst.msk [vmem:[#allocation2 + $0x28] sm:$0xf] %vm2586, %v2720
  %2854 = vst.msk [vmem:[#allocation2 + $0x2c] sm:$0xf] %vm2586, %v2722
  %2855 = vst.msk [vmem:[#allocation2 + $0x30] sm:$0xf] %vm2586, %v2724
  %2856 = vst.msk [vmem:[#allocation2 + $0x34] sm:$0xf] %vm2586, %v2726
  %2857 = vst.msk [vmem:[#allocation2 + $0x38] sm:$0xf] %vm2586, %v2728
  %2858 = vst.msk [vmem:[#allocation2 + $0x3c] sm:$0xf] %vm2586, %v2730
  %2859 = vst.msk [vmem:[#allocation2 + $0x40] sm:$0xf] %vm2586, %v2732
  %2860 = vst.msk [vmem:[#allocation2 + $0x44] sm:$0xf] %vm2586, %v2734
  %2861 = vst.msk [vmem:[#allocation2 + $0x48] sm:$0xf] %vm2586, %v2736
  %2862 = vst.msk [vmem:[#allocation2 + $0x4c] sm:$0xf] %vm2586, %v2738
  %2863 = vst.msk [vmem:[#allocation2 + $0x50] sm:$0xf] %vm2586, %v2740
  %2864 = vst.msk [vmem:[#allocation2 + $0x54] sm:$0xf] %vm2586, %v2742
  %2865 = vst.msk [vmem:[#allocation2 + $0x58] sm:$0xf] %vm2586, %v2744
  %2866 = vst.msk [vmem:[#allocation2 + $0x5c] sm:$0xf] %vm2586, %v2746
  %2867 = vst.msk [vmem:[#allocation2 + $0x60] sm:$0xf] %vm2586, %v2748
  %2868 = vst.msk [vmem:[#allocation2 + $0x64] sm:$0xf] %vm2586, %v2750
  %2869 = vst.msk [vmem:[#allocation2 + $0x68] sm:$0xf] %vm2586, %v2752
  %2870 = vst.msk [vmem:[#allocation2 + $0x6c] sm:$0xf] %vm2586, %v2754
  %2871 = vst.msk [vmem:[#allocation2 + $0x70] sm:$0xf] %vm2586, %v2756
  %2872 = vst.msk [vmem:[#allocation2 + $0x74] sm:$0xf] %vm2586, %v2758
  %2873 = vst.msk [vmem:[#allocation2 + $0x78] sm:$0xf] %vm2586, %v2760
  %2874 = vst.msk [vmem:[#allocation2 + $0x7c] sm:$0xf] %vm2586, %v2762
  %2875 = vst.msk [vmem:[#allocation2 + $0x80] sm:$0xf] %vm2586, %v2764
  %2876 = vst.msk [vmem:[#allocation2 + $0x84] sm:$0xf] %vm2586, %v2766
  %2877 = vst.msk [vmem:[#allocation2 + $0x88] sm:$0xf] %vm2586, %v2768
  %2878 = vst.msk [vmem:[#allocation2 + $0x8c] sm:$0xf] %vm2586, %v2770
  %2879 = vst.msk [vmem:[#allocation2 + $0x90] sm:$0xf] %vm2586, %v2772
  %2880 = vst.msk [vmem:[#allocation2 + $0x94] sm:$0xf] %vm2586, %v2774
  %2881 = vst.msk [vmem:[#allocation2 + $0x98] sm:$0xf] %vm2586, %v2776
  %2882 = vst.msk [vmem:[#allocation2 + $0x9c] sm:$0xf] %vm2586, %v2778
  %2883 = vst.msk [vmem:[#allocation2 + $0xa0] sm:$0xf] %vm2586, %v2780
  %2884 = vst.msk [vmem:[#allocation2 + $0xa4] sm:$0xf] %vm2586, %v2782
  %2885 = vst.msk [vmem:[#allocation2 + $0xa8] sm:$0xf] %vm2586, %v2784
  %2886 = vst.msk [vmem:[#allocation2 + $0xac] sm:$0xf] %vm2586, %v2786
  %2887 = vst.msk [vmem:[#allocation2 + $0xb0] sm:$0xf] %vm2586, %v2788
  %2888 = vst.msk [vmem:[#allocation2 + $0xb4] sm:$0xf] %vm2586, %v2790
  %2889 = vst.msk [vmem:[#allocation2 + $0xb8] sm:$0xf] %vm2586, %v2792
  %2890 = vst.msk [vmem:[#allocation2 + $0xbc] sm:$0xf] %vm2586, %v2794
  %v2891 = vld [vmem:[#allocation2] sm:$0xf]
  %v2892 = vld [vmem:[#allocation2 + $0x4] sm:$0xf]
  %v2893 = vld [vmem:[#allocation2 + $0x8] sm:$0xf]
  %v2894 = vld [vmem:[#allocation2 + $0xc] sm:$0xf]
  %v2895 = vld [vmem:[#allocation2 + $0x10] sm:$0xf]
  %v2896 = vld [vmem:[#allocation2 + $0x14] sm:$0xf]
  %v2897 = vld [vmem:[#allocation2 + $0x18] sm:$0xf]
  %v2898 = vld [vmem:[#allocation2 + $0x1c] sm:$0xf]
  %v2899 = vld [vmem:[#allocation2 + $0x20] sm:$0xf]
  %v2900 = vld [vmem:[#allocation2 + $0x24] sm:$0xf]
  %v2901 = vld [vmem:[#allocation2 + $0x28] sm:$0xf]
  %v2902 = vld [vmem:[#allocation2 + $0x2c] sm:$0xf]
  %v2903 = vld [vmem:[#allocation2 + $0x30] sm:$0xf]
  %v2904 = vld [vmem:[#allocation2 + $0x34] sm:$0xf]
  %v2905 = vld [vmem:[#allocation2 + $0x38] sm:$0xf]
  %v2906 = vld [vmem:[#allocation2 + $0x3c] sm:$0xf]
  %v2907 = vld [vmem:[#allocation2 + $0x40] sm:$0xf]
  %v2908 = vld [vmem:[#allocation2 + $0x44] sm:$0xf]
  %v2909 = vld [vmem:[#allocation2 + $0x48] sm:$0xf]
  %v2910 = vld [vmem:[#allocation2 + $0x4c] sm:$0xf]
  %v2911 = vld [vmem:[#allocation2 + $0x50] sm:$0xf]
  %v2912 = vld [vmem:[#allocation2 + $0x54] sm:$0xf]
  %v2913 = vld [vmem:[#allocation2 + $0x58] sm:$0xf]
  %v2914 = vld [vmem:[#allocation2 + $0x5c] sm:$0xf]
  %v2915 = vld [vmem:[#allocation2 + $0x60] sm:$0xf]
  %v2916 = vld [vmem:[#allocation2 + $0x64] sm:$0xf]
  %v2917 = vld [vmem:[#allocation2 + $0x68] sm:$0xf]
  %v2918 = vld [vmem:[#allocation2 + $0x6c] sm:$0xf]
  %v2919 = vld [vmem:[#allocation2 + $0x70] sm:$0xf]
  %v2920 = vld [vmem:[#allocation2 + $0x74] sm:$0xf]
  %v2921 = vld [vmem:[#allocation2 + $0x78] sm:$0xf]
  %v2922 = vld [vmem:[#allocation2 + $0x7c] sm:$0xf]
  %v2923 = vld [vmem:[#allocation2 + $0x80] sm:$0xf]
  %v2924 = vld [vmem:[#allocation2 + $0x84] sm:$0xf]
  %v2925 = vld [vmem:[#allocation2 + $0x88] sm:$0xf]
  %v2926 = vld [vmem:[#allocation2 + $0x8c] sm:$0xf]
  %v2927 = vld [vmem:[#allocation2 + $0x90] sm:$0xf]
  %v2928 = vld [vmem:[#allocation2 + $0x94] sm:$0xf]
  %v2929 = vld [vmem:[#allocation2 + $0x98] sm:$0xf]
  %v2930 = vld [vmem:[#allocation2 + $0x9c] sm:$0xf]
  %v2931 = vld [vmem:[#allocation2 + $0xa0] sm:$0xf]
  %v2932 = vld [vmem:[#allocation2 + $0xa4] sm:$0xf]
  %v2933 = vld [vmem:[#allocation2 + $0xa8] sm:$0xf]
  %v2934 = vld [vmem:[#allocation2 + $0xac] sm:$0xf]
  %v2935 = vld [vmem:[#allocation2 + $0xb0] sm:$0xf]
  %v2936 = vld [vmem:[#allocation2 + $0xb4] sm:$0xf]
  %v2937 = vld [vmem:[#allocation2 + $0xb8] sm:$0xf]
  %v2938 = vld [vmem:[#allocation2 + $0xbc] sm:$0xf]
  %v2939 = vld [vmem:[#allocation2 + $0xc0] sm:$0xf]
  %v2940 = vld [vmem:[#allocation2 + $0xc4] sm:$0xf]
  %v2941 = vld [vmem:[#allocation2 + $0xc8] sm:$0xf]
  %v2942 = vld [vmem:[#allocation2 + $0xcc] sm:$0xf]
  %v2943 = vld [vmem:[#allocation2 + $0xd0] sm:$0xf]
  %v2944 = vld [vmem:[#allocation2 + $0xd4] sm:$0xf]
  %v2945 = vld [vmem:[#allocation2 + $0xd8] sm:$0xf]
  %v2946 = vld [vmem:[#allocation2 + $0xdc] sm:$0xf]
  %v2947 = vld [vmem:[#allocation2 + $0xe0] sm:$0xf]
  %v2948 = vld [vmem:[#allocation2 + $0xe4] sm:$0xf]
  %v2949 = vld [vmem:[#allocation2 + $0xe8] sm:$0xf]
  %v2950 = vld [vmem:[#allocation2 + $0xec] sm:$0xf]
  %v2951 = vld [vmem:[#allocation2 + $0xf0] sm:$0xf]
  %v2952 = vld [vmem:[#allocation2 + $0xf4] sm:$0xf]
  %v2953 = vld [vmem:[#allocation2 + $0xf8] sm:$0xf]
  %v2954 = vld [vmem:[#allocation2 + $0xfc] sm:$0xf]
  %v2955 = vld [vmem:[%s1] sm:$0xf]
  %v2956 = vld [vmem:[%s1 + $0x4] sm:$0xf]
  %v2957 = vld [vmem:[%s1 + $0x8] sm:$0xf]
  %v2958 = vld [vmem:[%s1 + $0xc] sm:$0xf]
  %v2959 = vld [vmem:[%s1 + $0x10] sm:$0x3]
  %v3024 = vunpack.c.l.b16 %v2891
  %v3025 = vunpack.c.l.b16 %v2892
  %v3026 = vunpack.c.l.b16 %v2893
  %v3027 = vunpack.c.l.b16 %v2894
  %v3028 = vunpack.c.l.b16 %v2895
  %v3029 = vunpack.c.l.b16 %v2896
  %v3030 = vunpack.c.l.b16 %v2897
  %v3031 = vunpack.c.l.b16 %v2898
  %v3032 = vunpack.c.l.b16 %v2899
  %v3033 = vunpack.c.l.b16 %v2900
  %v3034 = vunpack.c.l.b16 %v2901
  %v3035 = vunpack.c.l.b16 %v2902
  %v3036 = vunpack.c.l.b16 %v2903
  %v3037 = vunpack.c.l.b16 %v2904
  %v3038 = vunpack.c.l.b16 %v2905
  %v3039 = vunpack.c.l.b16 %v2906
  %v3040 = vunpack.c.l.b16 %v2907
  %v3041 = vunpack.c.l.b16 %v2908
  %v3042 = vunpack.c.l.b16 %v2909
  %v3043 = vunpack.c.l.b16 %v2910
  %v3044 = vunpack.c.l.b16 %v2911
  %v3045 = vunpack.c.l.b16 %v2912
  %v3046 = vunpack.c.l.b16 %v2913
  %v3047 = vunpack.c.l.b16 %v2914
  %v3048 = vunpack.c.l.b16 %v2915
  %v3049 = vunpack.c.l.b16 %v2916
  %v3050 = vunpack.c.l.b16 %v2917
  %v3051 = vunpack.c.l.b16 %v2918
  %v3052 = vunpack.c.l.b16 %v2919
  %v3053 = vunpack.c.l.b16 %v2920
  %v3054 = vunpack.c.l.b16 %v2921
  %v3055 = vunpack.c.l.b16 %v2922
  %v3056 = vunpack.c.l.b16 %v2923
  %v3057 = vunpack.c.l.b16 %v2924
  %v3058 = vunpack.c.l.b16 %v2925
  %v3059 = vunpack.c.l.b16 %v2926
  %v3060 = vunpack.c.l.b16 %v2927
  %v3061 = vunpack.c.l.b16 %v2928
  %v3062 = vunpack.c.l.b16 %v2929
  %v3063 = vunpack.c.l.b16 %v2930
  %v3064 = vunpack.c.l.b16 %v2931
  %v3065 = vunpack.c.l.b16 %v2932
  %v3066 = vunpack.c.l.b16 %v2933
  %v3067 = vunpack.c.l.b16 %v2934
  %v3068 = vunpack.c.l.b16 %v2935
  %v3069 = vunpack.c.l.b16 %v2936
  %v3070 = vunpack.c.l.b16 %v2937
  %v3071 = vunpack.c.l.b16 %v2938
  %v3072 = vunpack.c.l.b16 %v2939
  %v3073 = vunpack.c.l.b16 %v2940
  %v3074 = vunpack.c.l.b16 %v2941
  %v3075 = vunpack.c.l.b16 %v2942
  %v3076 = vunpack.c.l.b16 %v2943
  %v3077 = vunpack.c.l.b16 %v2944
  %v3078 = vunpack.c.l.b16 %v2945
  %v3079 = vunpack.c.l.b16 %v2946
  %v3080 = vunpack.c.l.b16 %v2947
  %v3081 = vunpack.c.l.b16 %v2948
  %v3082 = vunpack.c.l.b16 %v2949
  %v3083 = vunpack.c.l.b16 %v2950
  %v3084 = vunpack.c.l.b16 %v2951
  %v3085 = vunpack.c.l.b16 %v2952
  %v3086 = vunpack.c.l.b16 %v2953
  %v3087 = vunpack.c.l.b16 %v2954
  %v3088 = vpack.c.b16 %v3025, %v3024
  %v3089 = vpack.c.b16 %v3027, %v3026
  %v3090 = vpack.c.b16 %v3029, %v3028
  %v3091 = vpack.c.b16 %v3031, %v3030
  %v3092 = vpack.c.b16 %v3033, %v3032
  %v3093 = vpack.c.b16 %v3035, %v3034
  %v3094 = vpack.c.b16 %v3037, %v3036
  %v3095 = vpack.c.b16 %v3039, %v3038
  %v3096 = vpack.c.b16 %v3041, %v3040
  %v3097 = vpack.c.b16 %v3043, %v3042
  %v3098 = vpack.c.b16 %v3045, %v3044
  %v3099 = vpack.c.b16 %v3047, %v3046
  %v3100 = vpack.c.b16 %v3049, %v3048
  %v3101 = vpack.c.b16 %v3051, %v3050
  %v3102 = vpack.c.b16 %v3053, %v3052
  %v3103 = vpack.c.b16 %v3055, %v3054
  %v3104 = vpack.c.b16 %v3057, %v3056
  %v3105 = vpack.c.b16 %v3059, %v3058
  %v3106 = vpack.c.b16 %v3061, %v3060
  %v3107 = vpack.c.b16 %v3063, %v3062
  %v3108 = vpack.c.b16 %v3065, %v3064
  %v3109 = vpack.c.b16 %v3067, %v3066
  %v3110 = vpack.c.b16 %v3069, %v3068
  %v3111 = vpack.c.b16 %v3071, %v3070
  %v3112 = vpack.c.b16 %v3073, %v3072
  %v3113 = vpack.c.b16 %v3075, %v3074
  %v3114 = vpack.c.b16 %v3077, %v3076
  %v3115 = vpack.c.b16 %v3079, %v3078
  %v3116 = vpack.c.b16 %v3081, %v3080
  %v3117 = vpack.c.b16 %v3083, %v3082
  %v3118 = vpack.c.b16 %v3085, %v3084
  %v3119 = vpack.c.b16 %v3087, %v3086
  %v3125 = vunpack.c.l.b16 %v2955
  %v3126 = vunpack.c.l.b16 %v2956
  %v3127 = vunpack.c.l.b16 %v2957
  %v3128 = vunpack.c.l.b16 %v2958
  %v3129 = vunpack.c.l.b16 %v2959
  %v3130 = vpack.c.b16 %v3126, %v3125
  %v3131 = vpack.c.b16 %v3128, %v3127
  %v3132 = vpack.c.b16 %v3129, %v3129
  %vm3135 = vcmask 293888
  %v3137 = vsel %vm3135, %v3088, 0
  %v3140 = vsel %vm3135, %v3089, 0
  %v3143 = vsel %vm3135, %v3090, 0
  %v3146 = vsel %vm3135, %v3091, 0
  %v3149 = vsel %vm3135, %v3092, 0
  %v3152 = vsel %vm3135, %v3093, 0
  %v3155 = vsel %vm3135, %v3094, 0
  %v3158 = vsel %vm3135, %v3095, 0
  %v3161 = vsel %vm3135, %v3096, 0
  %v3164 = vsel %vm3135, %v3097, 0
  %v3167 = vsel %vm3135, %v3098, 0
  %v3170 = vsel %vm3135, %v3099, 0
  %v3173 = vsel %vm3135, %v3100, 0
  %v3176 = vsel %vm3135, %v3101, 0
  %v3179 = vsel %vm3135, %v3102, 0
  %v3182 = vsel %vm3135, %v3103, 0
  %v3185 = vsel %vm3135, %v3104, 0
  %v3188 = vsel %vm3135, %v3105, 0
  %v3191 = vsel %vm3135, %v3106, 0
  %v3194 = vsel %vm3135, %v3107, 0
  %v3197 = vsel %vm3135, %v3108, 0
  %v3200 = vsel %vm3135, %v3109, 0
  %v3203 = vsel %vm3135, %v3110, 0
  %v3206 = vsel %vm3135, %v3111, 0
  %v3209 = vsel %vm3135, %v3112, 0
  %v3212 = vsel %vm3135, %v3113, 0
  %v3215 = vsel %vm3135, %v3114, 0
  %v3218 = vsel %vm3135, %v3115, 0
  %v3221 = vsel %vm3135, %v3116, 0
  %v3224 = vsel %vm3135, %v3117, 0
  %v3227 = vsel %vm3135, %v3118, 0
  %v3230 = vsel %vm3135, %v3119, 0
  %vm3232 = vcmask 1041408
  %v3234 = vsel %vm3232, %v3132, 0
  %3236 = vmatpush.bf16.msra.mxu0 0
  %3237 = vmatpush.bf16.msra.mxu0 0
  %3238 = vmatpush.bf16.msra.mxu0 0
  %3239 = vmatpush.bf16.msra.mxu0 0
  %3240 = vmatpush.bf16.msra.mxu0 0
  %3241 = vmatpush.bf16.msra.mxu0 %v3234
  %3242 = vmatpush.bf16.msra.mxu0 %v3131
  %3243 = vmatpush.bf16.msra.mxu0 %v3130
  %3244 = vmatmul.bf16.gmra.mxu0 %v3137
  %v3245 = vpop.f32.mrf.mxu0
  %v3246 = vadd.f32 0.0, %v3245
  %v3247 = vpop.f32.mrf.mxu0
  %v3248 = vadd.f32 0.0, %v3247
  %3249 = vmatmul.bf16.gmra.mxu0 %v3140
  %v3250 = vpop.f32.mrf.mxu0
  %v3251 = vadd.f32 0.0, %v3250
  %v3252 = vpop.f32.mrf.mxu0
  %v3253 = vadd.f32 0.0, %v3252
  %3254 = vmatmul.bf16.gmra.mxu0 %v3143
  %v3255 = vpop.f32.mrf.mxu0
  %v3256 = vadd.f32 0.0, %v3255
  %v3257 = vpop.f32.mrf.mxu0
  %v3258 = vadd.f32 0.0, %v3257
  %3259 = vmatmul.bf16.gmra.mxu0 %v3146
  %v3260 = vpop.f32.mrf.mxu0
  %v3261 = vadd.f32 0.0, %v3260
  %v3262 = vpop.f32.mrf.mxu0
  %v3263 = vadd.f32 0.0, %v3262
  %3264 = vmatmul.bf16.gmra.mxu0 %v3149
  %v3265 = vpop.f32.mrf.mxu0
  %v3266 = vadd.f32 0.0, %v3265
  %v3267 = vpop.f32.mrf.mxu0
  %v3268 = vadd.f32 0.0, %v3267
  %3269 = vmatmul.bf16.gmra.mxu0 %v3152
  %v3270 = vpop.f32.mrf.mxu0
  %v3271 = vadd.f32 0.0, %v3270
  %v3272 = vpop.f32.mrf.mxu0
  %v3273 = vadd.f32 0.0, %v3272
  %3274 = vmatmul.bf16.gmra.mxu0 %v3155
  %v3275 = vpop.f32.mrf.mxu0
  %v3276 = vadd.f32 0.0, %v3275
  %v3277 = vpop.f32.mrf.mxu0
  %v3278 = vadd.f32 0.0, %v3277
  %3279 = vmatmul.bf16.gmra.mxu0 %v3158
  %v3280 = vpop.f32.mrf.mxu0
  %v3281 = vadd.f32 0.0, %v3280
  %v3282 = vpop.f32.mrf.mxu0
  %v3283 = vadd.f32 0.0, %v3282
  %3284 = vmatmul.bf16.gmra.mxu0 %v3161
  %v3285 = vpop.f32.mrf.mxu0
  %v3286 = vadd.f32 0.0, %v3285
  %v3287 = vpop.f32.mrf.mxu0
  %v3288 = vadd.f32 0.0, %v3287
  %3289 = vmatmul.bf16.gmra.mxu0 %v3164
  %v3290 = vpop.f32.mrf.mxu0
  %v3291 = vadd.f32 0.0, %v3290
  %v3292 = vpop.f32.mrf.mxu0
  %v3293 = vadd.f32 0.0, %v3292
  %3294 = vmatmul.bf16.gmra.mxu0 %v3167
  %v3295 = vpop.f32.mrf.mxu0
  %v3296 = vadd.f32 0.0, %v3295
  %v3297 = vpop.f32.mrf.mxu0
  %v3298 = vadd.f32 0.0, %v3297
  %3299 = vmatmul.bf16.gmra.mxu0 %v3170
  %v3300 = vpop.f32.mrf.mxu0
  %v3301 = vadd.f32 0.0, %v3300
  %v3302 = vpop.f32.mrf.mxu0
  %v3303 = vadd.f32 0.0, %v3302
  %3304 = vmatmul.bf16.gmra.mxu0 %v3173
  %v3305 = vpop.f32.mrf.mxu0
  %v3306 = vadd.f32 0.0, %v3305
  %v3307 = vpop.f32.mrf.mxu0
  %v3308 = vadd.f32 0.0, %v3307
  %3309 = vmatmul.bf16.gmra.mxu0 %v3176
  %v3310 = vpop.f32.mrf.mxu0
  %v3311 = vadd.f32 0.0, %v3310
  %v3312 = vpop.f32.mrf.mxu0
  %v3313 = vadd.f32 0.0, %v3312
  %3314 = vmatmul.bf16.gmra.mxu0 %v3179
  %v3315 = vpop.f32.mrf.mxu0
  %v3316 = vadd.f32 0.0, %v3315
  %v3317 = vpop.f32.mrf.mxu0
  %v3318 = vadd.f32 0.0, %v3317
  %3319 = vmatmul.bf16.gmra.mxu0 %v3182
  %v3320 = vpop.f32.mrf.mxu0
  %v3321 = vadd.f32 0.0, %v3320
  %v3322 = vpop.f32.mrf.mxu0
  %v3323 = vadd.f32 0.0, %v3322
  %3324 = vmatmul.bf16.gmra.mxu0 %v3185
  %v3325 = vpop.f32.mrf.mxu0
  %v3326 = vadd.f32 0.0, %v3325
  %v3327 = vpop.f32.mrf.mxu0
  %v3328 = vadd.f32 0.0, %v3327
  %3329 = vmatmul.bf16.gmra.mxu0 %v3188
  %v3330 = vpop.f32.mrf.mxu0
  %v3331 = vadd.f32 0.0, %v3330
  %v3332 = vpop.f32.mrf.mxu0
  %v3333 = vadd.f32 0.0, %v3332
  %3334 = vmatmul.bf16.gmra.mxu0 %v3191
  %v3335 = vpop.f32.mrf.mxu0
  %v3336 = vadd.f32 0.0, %v3335
  %v3337 = vpop.f32.mrf.mxu0
  %v3338 = vadd.f32 0.0, %v3337
  %3339 = vmatmul.bf16.gmra.mxu0 %v3194
  %v3340 = vpop.f32.mrf.mxu0
  %v3341 = vadd.f32 0.0, %v3340
  %v3342 = vpop.f32.mrf.mxu0
  %v3343 = vadd.f32 0.0, %v3342
  %3344 = vmatmul.bf16.gmra.mxu0 %v3197
  %v3345 = vpop.f32.mrf.mxu0
  %v3346 = vadd.f32 0.0, %v3345
  %v3347 = vpop.f32.mrf.mxu0
  %v3348 = vadd.f32 0.0, %v3347
  %3349 = vmatmul.bf16.gmra.mxu0 %v3200
  %v3350 = vpop.f32.mrf.mxu0
  %v3351 = vadd.f32 0.0, %v3350
  %v3352 = vpop.f32.mrf.mxu0
  %v3353 = vadd.f32 0.0, %v3352
  %3354 = vmatmul.bf16.gmra.mxu0 %v3203
  %v3355 = vpop.f32.mrf.mxu0
  %v3356 = vadd.f32 0.0, %v3355
  %v3357 = vpop.f32.mrf.mxu0
  %v3358 = vadd.f32 0.0, %v3357
  %3359 = vmatmul.bf16.gmra.mxu0 %v3206
  %v3360 = vpop.f32.mrf.mxu0
  %v3361 = vadd.f32 0.0, %v3360
  %v3362 = vpop.f32.mrf.mxu0
  %v3363 = vadd.f32 0.0, %v3362
  %3364 = vmatmul.bf16.gmra.mxu0 %v3209
  %v3365 = vpop.f32.mrf.mxu0
  %v3366 = vadd.f32 0.0, %v3365
  %v3367 = vpop.f32.mrf.mxu0
  %v3368 = vadd.f32 0.0, %v3367
  %3369 = vmatmul.bf16.gmra.mxu0 %v3212
  %v3370 = vpop.f32.mrf.mxu0
  %v3371 = vadd.f32 0.0, %v3370
  %v3372 = vpop.f32.mrf.mxu0
  %v3373 = vadd.f32 0.0, %v3372
  %3374 = vmatmul.bf16.gmra.mxu0 %v3215
  %v3375 = vpop.f32.mrf.mxu0
  %v3376 = vadd.f32 0.0, %v3375
  %v3377 = vpop.f32.mrf.mxu0
  %v3378 = vadd.f32 0.0, %v3377
  %3379 = vmatmul.bf16.gmra.mxu0 %v3218
  %v3380 = vpop.f32.mrf.mxu0
  %v3381 = vadd.f32 0.0, %v3380
  %v3382 = vpop.f32.mrf.mxu0
  %v3383 = vadd.f32 0.0, %v3382
  %3384 = vmatmul.bf16.gmra.mxu0 %v3221
  %v3385 = vpop.f32.mrf.mxu0
  %v3386 = vadd.f32 0.0, %v3385
  %v3387 = vpop.f32.mrf.mxu0
  %v3388 = vadd.f32 0.0, %v3387
  %3389 = vmatmul.bf16.gmra.mxu0 %v3224
  %v3390 = vpop.f32.mrf.mxu0
  %v3391 = vadd.f32 0.0, %v3390
  %v3392 = vpop.f32.mrf.mxu0
  %v3393 = vadd.f32 0.0, %v3392
  %3394 = vmatmul.bf16.gmra.mxu0 %v3227
  %v3395 = vpop.f32.mrf.mxu0
  %v3396 = vadd.f32 0.0, %v3395
  %v3397 = vpop.f32.mrf.mxu0
  %v3398 = vadd.f32 0.0, %v3397
  %3399 = vmatmul.bf16.gmra.mxu0 %v3230
  %v3400 = vpop.f32.mrf.mxu0
  %v3401 = vadd.f32 0.0, %v3400
  %v3402 = vpop.f32.mrf.mxu0
  %v3403 = vadd.f32 0.0, %v3402
  %3404 = vdwg.mxu0
  %vm3405 = vcmask 261120
  %v3406 = vsel %vm3405, %v3246, 0.0
  %v3407 = vsel %vm3405, %v3248, 0.0
  %v3408 = vadd.f32 %v3406, %v3407
  %v3409 = vsel %vm3405, %v3251, 0.0
  %v3410 = vadd.f32 %v3408, %v3409
  %v3411 = vsel %vm3405, %v3253, 0.0
  %v3412 = vadd.f32 %v3410, %v3411
  %v3413 = vsel %vm3405, %v3256, 0.0
  %v3414 = vadd.f32 %v3412, %v3413
  %v3415 = vsel %vm3405, %v3258, 0.0
  %v3416 = vadd.f32 %v3414, %v3415
  %v3417 = vsel %vm3405, %v3261, 0.0
  %v3418 = vadd.f32 %v3416, %v3417
  %v3419 = vsel %vm3405, %v3263, 0.0
  %v3420 = vadd.f32 %v3418, %v3419
  %v3421 = vsel %vm3405, %v3266, 0.0
  %v3422 = vadd.f32 %v3420, %v3421
  %v3423 = vsel %vm3405, %v3268, 0.0
  %v3424 = vadd.f32 %v3422, %v3423
  %v3425 = vsel %vm3405, %v3271, 0.0
  %v3426 = vadd.f32 %v3424, %v3425
  %v3427 = vsel %vm3405, %v3273, 0.0
  %v3428 = vadd.f32 %v3426, %v3427
  %v3429 = vsel %vm3405, %v3276, 0.0
  %v3430 = vadd.f32 %v3428, %v3429
  %v3431 = vsel %vm3405, %v3278, 0.0
  %v3432 = vadd.f32 %v3430, %v3431
  %v3433 = vsel %vm3405, %v3281, 0.0
  %v3434 = vadd.f32 %v3432, %v3433
  %v3435 = vsel %vm3405, %v3283, 0.0
  %v3436 = vadd.f32 %v3434, %v3435
  %v3437 = vsel %vm3405, %v3286, 0.0
  %v3438 = vadd.f32 %v3436, %v3437
  %v3439 = vsel %vm3405, %v3288, 0.0
  %v3440 = vadd.f32 %v3438, %v3439
  %v3441 = vsel %vm3405, %v3291, 0.0
  %v3442 = vadd.f32 %v3440, %v3441
  %v3443 = vsel %vm3405, %v3293, 0.0
  %v3444 = vadd.f32 %v3442, %v3443
  %v3445 = vsel %vm3405, %v3296, 0.0
  %v3446 = vadd.f32 %v3444, %v3445
  %v3447 = vsel %vm3405, %v3298, 0.0
  %v3448 = vadd.f32 %v3446, %v3447
  %v3449 = vsel %vm3405, %v3301, 0.0
  %v3450 = vadd.f32 %v3448, %v3449
  %v3451 = vsel %vm3405, %v3303, 0.0
  %v3452 = vadd.f32 %v3450, %v3451
  %v3453 = vsel %vm3405, %v3306, 0.0
  %v3454 = vadd.f32 %v3452, %v3453
  %v3455 = vsel %vm3405, %v3308, 0.0
  %v3456 = vadd.f32 %v3454, %v3455
  %v3457 = vsel %vm3405, %v3311, 0.0
  %v3458 = vadd.f32 %v3456, %v3457
  %v3459 = vsel %vm3405, %v3313, 0.0
  %v3460 = vadd.f32 %v3458, %v3459
  %v3461 = vsel %vm3405, %v3316, 0.0
  %v3462 = vadd.f32 %v3460, %v3461
  %v3463 = vsel %vm3405, %v3318, 0.0
  %v3464 = vadd.f32 %v3462, %v3463
  %v3465 = vsel %vm3405, %v3321, 0.0
  %v3466 = vadd.f32 %v3464, %v3465
  %v3467 = vsel %vm3405, %v3323, 0.0
  %v3468 = vadd.f32 %v3466, %v3467
  %v3469 = vsel %vm3405, %v3326, 0.0
  %v3470 = vadd.f32 %v3468, %v3469
  %v3471 = vsel %vm3405, %v3328, 0.0
  %v3472 = vadd.f32 %v3470, %v3471
  %v3473 = vsel %vm3405, %v3331, 0.0
  %v3474 = vadd.f32 %v3472, %v3473
  %v3475 = vsel %vm3405, %v3333, 0.0
  %v3476 = vadd.f32 %v3474, %v3475
  %v3477 = vsel %vm3405, %v3336, 0.0
  %v3478 = vadd.f32 %v3476, %v3477
  %v3479 = vsel %vm3405, %v3338, 0.0
  %v3480 = vadd.f32 %v3478, %v3479
  %v3481 = vsel %vm3405, %v3341, 0.0
  %v3482 = vadd.f32 %v3480, %v3481
  %v3483 = vsel %vm3405, %v3343, 0.0
  %v3484 = vadd.f32 %v3482, %v3483
  %v3485 = vsel %vm3405, %v3346, 0.0
  %v3486 = vadd.f32 %v3484, %v3485
  %v3487 = vsel %vm3405, %v3348, 0.0
  %v3488 = vadd.f32 %v3486, %v3487
  %v3489 = vsel %vm3405, %v3351, 0.0
  %v3490 = vadd.f32 %v3488, %v3489
  %v3491 = vsel %vm3405, %v3353, 0.0
  %v3492 = vadd.f32 %v3490, %v3491
  %v3493 = vsel %vm3405, %v3356, 0.0
  %v3494 = vadd.f32 %v3492, %v3493
  %v3495 = vsel %vm3405, %v3358, 0.0
  %v3496 = vadd.f32 %v3494, %v3495
  %v3497 = vsel %vm3405, %v3361, 0.0
  %v3498 = vadd.f32 %v3496, %v3497
  %v3499 = vsel %vm3405, %v3363, 0.0
  %v3500 = vadd.f32 %v3498, %v3499
  %v3501 = vsel %vm3405, %v3366, 0.0
  %v3502 = vadd.f32 %v3500, %v3501
  %v3503 = vsel %vm3405, %v3368, 0.0
  %v3504 = vadd.f32 %v3502, %v3503
  %v3505 = vsel %vm3405, %v3371, 0.0
  %v3506 = vadd.f32 %v3504, %v3505
  %v3507 = vsel %vm3405, %v3373, 0.0
  %v3508 = vadd.f32 %v3506, %v3507
  %v3509 = vsel %vm3405, %v3376, 0.0
  %v3510 = vadd.f32 %v3508, %v3509
  %v3511 = vsel %vm3405, %v3378, 0.0
  %v3512 = vadd.f32 %v3510, %v3511
  %v3513 = vsel %vm3405, %v3381, 0.0
  %v3514 = vadd.f32 %v3512, %v3513
  %v3515 = vsel %vm3405, %v3383, 0.0
  %v3516 = vadd.f32 %v3514, %v3515
  %v3517 = vsel %vm3405, %v3386, 0.0
  %v3518 = vadd.f32 %v3516, %v3517
  %v3519 = vsel %vm3405, %v3388, 0.0
  %v3520 = vadd.f32 %v3518, %v3519
  %v3521 = vsel %vm3405, %v3391, 0.0
  %v3522 = vadd.f32 %v3520, %v3521
  %v3523 = vsel %vm3405, %v3393, 0.0
  %v3524 = vadd.f32 %v3522, %v3523
  %v3525 = vsel %vm3405, %v3396, 0.0
  %v3526 = vadd.f32 %v3524, %v3525
  %v3527 = vsel %vm3405, %v3398, 0.0
  %v3528 = vadd.f32 %v3526, %v3527
  %v3529 = vsel %vm3405, %v3401, 0.0
  %v3530 = vadd.f32 %v3528, %v3529
  %v3531 = vsel %vm3405, %v3403, 0.0
  %v3532 = vadd.f32 %v3530, %v3531
  %v3533 = vrot.slane %v3532, 4
  %v3534 = vadd.f32 %v3532, %v3533
  %v3535 = vrot.slane %v3534, 2
  %v3536 = vadd.f32 %v3534, %v3535
  %v3537 = vrot.slane %v3536, 1
  %v3538 = vadd.f32 %v3536, %v3537
  %v3539 = vrcp.pop 512.0
  %v3540 = vmul.f32 512.0, %v3539
  %v3541 = vsub.f32 1.0, %v3540
  %v3542 = vmul.f32 %v3539, %v3541
  %v3543 = vadd.f32 %v3539, %v3542
  %vm3544 = vweird.f32 %v3539
  %v3545 = vsel %vm3544, %v3539, %v3543
  %v3546 = vmul.f32 %v3538, %v3545
  %v3547 = vsub.f32 %v3246, %v3546
  %v3548 = vsub.f32 %v3248, %v3546
  %v3549 = vsub.f32 %v3251, %v3546
  %v3550 = vsub.f32 %v3253, %v3546
  %v3551 = vsub.f32 %v3256, %v3546
  %v3552 = vsub.f32 %v3258, %v3546
  %v3553 = vsub.f32 %v3261, %v3546
  %v3554 = vsub.f32 %v3263, %v3546
  %v3555 = vsub.f32 %v3266, %v3546
  %v3556 = vsub.f32 %v3268, %v3546
  %v3557 = vsub.f32 %v3271, %v3546
  %v3558 = vsub.f32 %v3273, %v3546
  %v3559 = vsub.f32 %v3276, %v3546
  %v3560 = vsub.f32 %v3278, %v3546
  %v3561 = vsub.f32 %v3281, %v3546
  %v3562 = vsub.f32 %v3283, %v3546
  %v3563 = vsub.f32 %v3286, %v3546
  %v3564 = vsub.f32 %v3288, %v3546
  %v3565 = vsub.f32 %v3291, %v3546
  %v3566 = vsub.f32 %v3293, %v3546
  %v3567 = vsub.f32 %v3296, %v3546
  %v3568 = vsub.f32 %v3298, %v3546
  %v3569 = vsub.f32 %v3301, %v3546
  %v3570 = vsub.f32 %v3303, %v3546
  %v3571 = vsub.f32 %v3306, %v3546
  %v3572 = vsub.f32 %v3308, %v3546
  %v3573 = vsub.f32 %v3311, %v3546
  %v3574 = vsub.f32 %v3313, %v3546
  %v3575 = vsub.f32 %v3316, %v3546
  %v3576 = vsub.f32 %v3318, %v3546
  %v3577 = vsub.f32 %v3321, %v3546
  %v3578 = vsub.f32 %v3323, %v3546
  %v3579 = vsub.f32 %v3326, %v3546
  %v3580 = vsub.f32 %v3328, %v3546
  %v3581 = vsub.f32 %v3331, %v3546
  %v3582 = vsub.f32 %v3333, %v3546
  %v3583 = vsub.f32 %v3336, %v3546
  %v3584 = vsub.f32 %v3338, %v3546
  %v3585 = vsub.f32 %v3341, %v3546
  %v3586 = vsub.f32 %v3343, %v3546
  %v3587 = vsub.f32 %v3346, %v3546
  %v3588 = vsub.f32 %v3348, %v3546
  %v3589 = vsub.f32 %v3351, %v3546
  %v3590 = vsub.f32 %v3353, %v3546
  %v3591 = vsub.f32 %v3356, %v3546
  %v3592 = vsub.f32 %v3358, %v3546
  %v3593 = vsub.f32 %v3361, %v3546
  %v3594 = vsub.f32 %v3363, %v3546
  %v3595 = vsub.f32 %v3366, %v3546
  %v3596 = vsub.f32 %v3368, %v3546
  %v3597 = vsub.f32 %v3371, %v3546
  %v3598 = vsub.f32 %v3373, %v3546
  %v3599 = vsub.f32 %v3376, %v3546
  %v3600 = vsub.f32 %v3378, %v3546
  %v3601 = vsub.f32 %v3381, %v3546
  %v3602 = vsub.f32 %v3383, %v3546
  %v3603 = vsub.f32 %v3386, %v3546
  %v3604 = vsub.f32 %v3388, %v3546
  %v3605 = vsub.f32 %v3391, %v3546
  %v3606 = vsub.f32 %v3393, %v3546
  %v3607 = vsub.f32 %v3396, %v3546
  %v3608 = vsub.f32 %v3398, %v3546
  %v3609 = vsub.f32 %v3401, %v3546
  %v3610 = vsub.f32 %v3403, %v3546
  %v3611 = vmul.f32 %v3547, %v3547
  %v3612 = vmul.f32 %v3548, %v3548
  %v3613 = vmul.f32 %v3549, %v3549
  %v3614 = vmul.f32 %v3550, %v3550
  %v3615 = vmul.f32 %v3551, %v3551
  %v3616 = vmul.f32 %v3552, %v3552
  %v3617 = vmul.f32 %v3553, %v3553
  %v3618 = vmul.f32 %v3554, %v3554
  %v3619 = vmul.f32 %v3555, %v3555
  %v3620 = vmul.f32 %v3556, %v3556
  %v3621 = vmul.f32 %v3557, %v3557
  %v3622 = vmul.f32 %v3558, %v3558
  %v3623 = vmul.f32 %v3559, %v3559
  %v3624 = vmul.f32 %v3560, %v3560
  %v3625 = vmul.f32 %v3561, %v3561
  %v3626 = vmul.f32 %v3562, %v3562
  %v3627 = vmul.f32 %v3563, %v3563
  %v3628 = vmul.f32 %v3564, %v3564
  %v3629 = vmul.f32 %v3565, %v3565
  %v3630 = vmul.f32 %v3566, %v3566
  %v3631 = vmul.f32 %v3567, %v3567
  %v3632 = vmul.f32 %v3568, %v3568
  %v3633 = vmul.f32 %v3569, %v3569
  %v3634 = vmul.f32 %v3570, %v3570
  %v3635 = vmul.f32 %v3571, %v3571
  %v3636 = vmul.f32 %v3572, %v3572
  %v3637 = vmul.f32 %v3573, %v3573
  %v3638 = vmul.f32 %v3574, %v3574
  %v3639 = vmul.f32 %v3575, %v3575
  %v3640 = vmul.f32 %v3576, %v3576
  %v3641 = vmul.f32 %v3577, %v3577
  %v3642 = vmul.f32 %v3578, %v3578
  %v3643 = vmul.f32 %v3579, %v3579
  %v3644 = vmul.f32 %v3580, %v3580
  %v3645 = vmul.f32 %v3581, %v3581
  %v3646 = vmul.f32 %v3582, %v3582
  %v3647 = vmul.f32 %v3583, %v3583
  %v3648 = vmul.f32 %v3584, %v3584
  %v3649 = vmul.f32 %v3585, %v3585
  %v3650 = vmul.f32 %v3586, %v3586
  %v3651 = vmul.f32 %v3587, %v3587
  %v3652 = vmul.f32 %v3588, %v3588
  %v3653 = vmul.f32 %v3589, %v3589
  %v3654 = vmul.f32 %v3590, %v3590
  %v3655 = vmul.f32 %v3591, %v3591
  %v3656 = vmul.f32 %v3592, %v3592
  %v3657 = vmul.f32 %v3593, %v3593
  %v3658 = vmul.f32 %v3594, %v3594
  %v3659 = vmul.f32 %v3595, %v3595
  %v3660 = vmul.f32 %v3596, %v3596
  %v3661 = vmul.f32 %v3597, %v3597
  %v3662 = vmul.f32 %v3598, %v3598
  %v3663 = vmul.f32 %v3599, %v3599
  %v3664 = vmul.f32 %v3600, %v3600
  %v3665 = vmul.f32 %v3601, %v3601
  %v3666 = vmul.f32 %v3602, %v3602
  %v3667 = vmul.f32 %v3603, %v3603
  %v3668 = vmul.f32 %v3604, %v3604
  %v3669 = vmul.f32 %v3605, %v3605
  %v3670 = vmul.f32 %v3606, %v3606
  %v3671 = vmul.f32 %v3607, %v3607
  %v3672 = vmul.f32 %v3608, %v3608
  %v3673 = vmul.f32 %v3609, %v3609
  %v3674 = vmul.f32 %v3610, %v3610
  %v3675 = vsel %vm3405, %v3611, 0.0
  %v3676 = vsel %vm3405, %v3612, 0.0
  %v3677 = vadd.f32 %v3675, %v3676
  %v3678 = vsel %vm3405, %v3613, 0.0
  %v3679 = vadd.f32 %v3677, %v3678
  %v3680 = vsel %vm3405, %v3614, 0.0
  %v3681 = vadd.f32 %v3679, %v3680
  %v3682 = vsel %vm3405, %v3615, 0.0
  %v3683 = vadd.f32 %v3681, %v3682
  %v3684 = vsel %vm3405, %v3616, 0.0
  %v3685 = vadd.f32 %v3683, %v3684
  %v3686 = vsel %vm3405, %v3617, 0.0
  %v3687 = vadd.f32 %v3685, %v3686
  %v3688 = vsel %vm3405, %v3618, 0.0
  %v3689 = vadd.f32 %v3687, %v3688
  %v3690 = vsel %vm3405, %v3619, 0.0
  %v3691 = vadd.f32 %v3689, %v3690
  %v3692 = vsel %vm3405, %v3620, 0.0
  %v3693 = vadd.f32 %v3691, %v3692
  %v3694 = vsel %vm3405, %v3621, 0.0
  %v3695 = vadd.f32 %v3693, %v3694
  %v3696 = vsel %vm3405, %v3622, 0.0
  %v3697 = vadd.f32 %v3695, %v3696
  %v3698 = vsel %vm3405, %v3623, 0.0
  %v3699 = vadd.f32 %v3697, %v3698
  %v3700 = vsel %vm3405, %v3624, 0.0
  %v3701 = vadd.f32 %v3699, %v3700
  %v3702 = vsel %vm3405, %v3625, 0.0
  %v3703 = vadd.f32 %v3701, %v3702
  %v3704 = vsel %vm3405, %v3626, 0.0
  %v3705 = vadd.f32 %v3703, %v3704
  %v3706 = vsel %vm3405, %v3627, 0.0
  %v3707 = vadd.f32 %v3705, %v3706
  %v3708 = vsel %vm3405, %v3628, 0.0
  %v3709 = vadd.f32 %v3707, %v3708
  %v3710 = vsel %vm3405, %v3629, 0.0
  %v3711 = vadd.f32 %v3709, %v3710
  %v3712 = vsel %vm3405, %v3630, 0.0
  %v3713 = vadd.f32 %v3711, %v3712
  %v3714 = vsel %vm3405, %v3631, 0.0
  %v3715 = vadd.f32 %v3713, %v3714
  %v3716 = vsel %vm3405, %v3632, 0.0
  %v3717 = vadd.f32 %v3715, %v3716
  %v3718 = vsel %vm3405, %v3633, 0.0
  %v3719 = vadd.f32 %v3717, %v3718
  %v3720 = vsel %vm3405, %v3634, 0.0
  %v3721 = vadd.f32 %v3719, %v3720
  %v3722 = vsel %vm3405, %v3635, 0.0
  %v3723 = vadd.f32 %v3721, %v3722
  %v3724 = vsel %vm3405, %v3636, 0.0
  %v3725 = vadd.f32 %v3723, %v3724
  %v3726 = vsel %vm3405, %v3637, 0.0
  %v3727 = vadd.f32 %v3725, %v3726
  %v3728 = vsel %vm3405, %v3638, 0.0
  %v3729 = vadd.f32 %v3727, %v3728
  %v3730 = vsel %vm3405, %v3639, 0.0
  %v3731 = vadd.f32 %v3729, %v3730
  %v3732 = vsel %vm3405, %v3640, 0.0
  %v3733 = vadd.f32 %v3731, %v3732
  %v3734 = vsel %vm3405, %v3641, 0.0
  %v3735 = vadd.f32 %v3733, %v3734
  %v3736 = vsel %vm3405, %v3642, 0.0
  %v3737 = vadd.f32 %v3735, %v3736
  %v3738 = vsel %vm3405, %v3643, 0.0
  %v3739 = vadd.f32 %v3737, %v3738
  %v3740 = vsel %vm3405, %v3644, 0.0
  %v3741 = vadd.f32 %v3739, %v3740
  %v3742 = vsel %vm3405, %v3645, 0.0
  %v3743 = vadd.f32 %v3741, %v3742
  %v3744 = vsel %vm3405, %v3646, 0.0
  %v3745 = vadd.f32 %v3743, %v3744
  %v3746 = vsel %vm3405, %v3647, 0.0
  %v3747 = vadd.f32 %v3745, %v3746
  %v3748 = vsel %vm3405, %v3648, 0.0
  %v3749 = vadd.f32 %v3747, %v3748
  %v3750 = vsel %vm3405, %v3649, 0.0
  %v3751 = vadd.f32 %v3749, %v3750
  %v3752 = vsel %vm3405, %v3650, 0.0
  %v3753 = vadd.f32 %v3751, %v3752
  %v3754 = vsel %vm3405, %v3651, 0.0
  %v3755 = vadd.f32 %v3753, %v3754
  %v3756 = vsel %vm3405, %v3652, 0.0
  %v3757 = vadd.f32 %v3755, %v3756
  %v3758 = vsel %vm3405, %v3653, 0.0
  %v3759 = vadd.f32 %v3757, %v3758
  %v3760 = vsel %vm3405, %v3654, 0.0
  %v3761 = vadd.f32 %v3759, %v3760
  %v3762 = vsel %vm3405, %v3655, 0.0
  %v3763 = vadd.f32 %v3761, %v3762
  %v3764 = vsel %vm3405, %v3656, 0.0
  %v3765 = vadd.f32 %v3763, %v3764
  %v3766 = vsel %vm3405, %v3657, 0.0
  %v3767 = vadd.f32 %v3765, %v3766
  %v3768 = vsel %vm3405, %v3658, 0.0
  %v3769 = vadd.f32 %v3767, %v3768
  %v3770 = vsel %vm3405, %v3659, 0.0
  %v3771 = vadd.f32 %v3769, %v3770
  %v3772 = vsel %vm3405, %v3660, 0.0
  %v3773 = vadd.f32 %v3771, %v3772
  %v3774 = vsel %vm3405, %v3661, 0.0
  %v3775 = vadd.f32 %v3773, %v3774
  %v3776 = vsel %vm3405, %v3662, 0.0
  %v3777 = vadd.f32 %v3775, %v3776
  %v3778 = vsel %vm3405, %v3663, 0.0
  %v3779 = vadd.f32 %v3777, %v3778
  %v3780 = vsel %vm3405, %v3664, 0.0
  %v3781 = vadd.f32 %v3779, %v3780
  %v3782 = vsel %vm3405, %v3665, 0.0
  %v3783 = vadd.f32 %v3781, %v3782
  %v3784 = vsel %vm3405, %v3666, 0.0
  %v3785 = vadd.f32 %v3783, %v3784
  %v3786 = vsel %vm3405, %v3667, 0.0
  %v3787 = vadd.f32 %v3785, %v3786
  %v3788 = vsel %vm3405, %v3668, 0.0
  %v3789 = vadd.f32 %v3787, %v3788
  %v3790 = vsel %vm3405, %v3669, 0.0
  %v3791 = vadd.f32 %v3789, %v3790
  %v3792 = vsel %vm3405, %v3670, 0.0
  %v3793 = vadd.f32 %v3791, %v3792
  %v3794 = vsel %vm3405, %v3671, 0.0
  %v3795 = vadd.f32 %v3793, %v3794
  %v3796 = vsel %vm3405, %v3672, 0.0
  %v3797 = vadd.f32 %v3795, %v3796
  %v3798 = vsel %vm3405, %v3673, 0.0
  %v3799 = vadd.f32 %v3797, %v3798
  %v3800 = vsel %vm3405, %v3674, 0.0
  %v3801 = vadd.f32 %v3799, %v3800
  %v3802 = vrot.slane %v3801, 4
  %v3803 = vadd.f32 %v3801, %v3802
  %v3804 = vrot.slane %v3803, 2
  %v3805 = vadd.f32 %v3803, %v3804
  %v3806 = vrot.slane %v3805, 1
  %v3807 = vadd.f32 %v3805, %v3806
  %v3808 = vmul.f32 %v3807, %v3545
  %v3809 = vadd.f32 %v3808, 1e-05
  %v3810 = vrsqrt.pop %v3809
  %v3811 = vmul.f32 %v3810, %v3809
  %v3812 = vmul.f32 %v3811, %v3810
  %v3813 = vmul.f32 0.5, %v3812
  %v3814 = vsub.f32 1.5, %v3813
  %v3815 = vmul.f32 %v3810, %v3814
  %vm3816 = vweird.f32 %v3809
  %vm3817 = vweird.f32 %v3810
  %vm3818 = vmor %vm3816, %vm3817
  %v3819 = vsel %vm3818, %v3810, %v3815
  %v3820 = vld [vmem:[%s2] sm:$0x1]
  %v3821 = vmul.f32 %v3819, %v3820
  %v3822 = vperm.slane %v3821, 0
  %v3823 = vmul.f32 %v3547, %v3822
  %v3824 = vmul.f32 %v3548, %v3822
  %v3825 = vmul.f32 %v3549, %v3822
  %v3826 = vmul.f32 %v3550, %v3822
  %v3827 = vmul.f32 %v3551, %v3822
  %v3828 = vmul.f32 %v3552, %v3822
  %v3829 = vmul.f32 %v3553, %v3822
  %v3830 = vmul.f32 %v3554, %v3822
  %v3831 = vmul.f32 %v3555, %v3822
  %v3832 = vmul.f32 %v3556, %v3822
  %v3833 = vmul.f32 %v3557, %v3822
  %v3834 = vmul.f32 %v3558, %v3822
  %v3835 = vmul.f32 %v3559, %v3822
  %v3836 = vmul.f32 %v3560, %v3822
  %v3837 = vmul.f32 %v3561, %v3822
  %v3838 = vmul.f32 %v3562, %v3822
  %v3839 = vmul.f32 %v3563, %v3822
  %v3840 = vmul.f32 %v3564, %v3822
  %v3841 = vmul.f32 %v3565, %v3822
  %v3842 = vmul.f32 %v3566, %v3822
  %v3843 = vmul.f32 %v3567, %v3822
  %v3844 = vmul.f32 %v3568, %v3822
  %v3845 = vmul.f32 %v3569, %v3822
  %v3846 = vmul.f32 %v3570, %v3822
  %v3847 = vmul.f32 %v3571, %v3822
  %v3848 = vmul.f32 %v3572, %v3822
  %v3849 = vmul.f32 %v3573, %v3822
  %v3850 = vmul.f32 %v3574, %v3822
  %v3851 = vmul.f32 %v3575, %v3822
  %v3852 = vmul.f32 %v3576, %v3822
  %v3853 = vmul.f32 %v3577, %v3822
  %v3854 = vmul.f32 %v3578, %v3822
  %v3855 = vmul.f32 %v3579, %v3822
  %v3856 = vmul.f32 %v3580, %v3822
  %v3857 = vmul.f32 %v3581, %v3822
  %v3858 = vmul.f32 %v3582, %v3822
  %v3859 = vmul.f32 %v3583, %v3822
  %v3860 = vmul.f32 %v3584, %v3822
  %v3861 = vmul.f32 %v3585, %v3822
  %v3862 = vmul.f32 %v3586, %v3822
  %v3863 = vmul.f32 %v3587, %v3822
  %v3864 = vmul.f32 %v3588, %v3822
  %v3865 = vmul.f32 %v3589, %v3822
  %v3866 = vmul.f32 %v3590, %v3822
  %v3867 = vmul.f32 %v3591, %v3822
  %v3868 = vmul.f32 %v3592, %v3822
  %v3869 = vmul.f32 %v3593, %v3822
  %v3870 = vmul.f32 %v3594, %v3822
  %v3871 = vmul.f32 %v3595, %v3822
  %v3872 = vmul.f32 %v3596, %v3822
  %v3873 = vmul.f32 %v3597, %v3822
  %v3874 = vmul.f32 %v3598, %v3822
  %v3875 = vmul.f32 %v3599, %v3822
  %v3876 = vmul.f32 %v3600, %v3822
  %v3877 = vmul.f32 %v3601, %v3822
  %v3878 = vmul.f32 %v3602, %v3822
  %v3879 = vmul.f32 %v3603, %v3822
  %v3880 = vmul.f32 %v3604, %v3822
  %v3881 = vmul.f32 %v3605, %v3822
  %v3882 = vmul.f32 %v3606, %v3822
  %v3883 = vmul.f32 %v3607, %v3822
  %v3884 = vmul.f32 %v3608, %v3822
  %v3885 = vmul.f32 %v3609, %v3822
  %v3886 = vmul.f32 %v3610, %v3822
  %v3887 = vld [vmem:[%s3] sm:$0x1]
  %v3889 = vperm.slane %v3887, 0
  %v3891 = vadd.f32 %v3823, %v3889
  %v3892 = vadd.f32 %v3824, %v3889
  %v3893 = vadd.f32 %v3825, %v3889
  %v3894 = vadd.f32 %v3826, %v3889
  %v3895 = vadd.f32 %v3827, %v3889
  %v3896 = vadd.f32 %v3828, %v3889
  %v3897 = vadd.f32 %v3829, %v3889
  %v3898 = vadd.f32 %v3830, %v3889
  %v3899 = vadd.f32 %v3831, %v3889
  %v3900 = vadd.f32 %v3832, %v3889
  %v3901 = vadd.f32 %v3833, %v3889
  %v3902 = vadd.f32 %v3834, %v3889
  %v3903 = vadd.f32 %v3835, %v3889
  %v3904 = vadd.f32 %v3836, %v3889
  %v3905 = vadd.f32 %v3837, %v3889
  %v3906 = vadd.f32 %v3838, %v3889
  %v3907 = vadd.f32 %v3839, %v3889
  %v3908 = vadd.f32 %v3840, %v3889
  %v3909 = vadd.f32 %v3841, %v3889
  %v3910 = vadd.f32 %v3842, %v3889
  %v3911 = vadd.f32 %v3843, %v3889
  %v3912 = vadd.f32 %v3844, %v3889
  %v3913 = vadd.f32 %v3845, %v3889
  %v3914 = vadd.f32 %v3846, %v3889
  %v3915 = vadd.f32 %v3847, %v3889
  %v3916 = vadd.f32 %v3848, %v3889
  %v3917 = vadd.f32 %v3849, %v3889
  %v3918 = vadd.f32 %v3850, %v3889
  %v3919 = vadd.f32 %v3851, %v3889
  %v3920 = vadd.f32 %v3852, %v3889
  %v3921 = vadd.f32 %v3853, %v3889
  %v3922 = vadd.f32 %v3854, %v3889
  %v3923 = vadd.f32 %v3855, %v3889
  %v3924 = vadd.f32 %v3856, %v3889
  %v3925 = vadd.f32 %v3857, %v3889
  %v3926 = vadd.f32 %v3858, %v3889
  %v3927 = vadd.f32 %v3859, %v3889
  %v3928 = vadd.f32 %v3860, %v3889
  %v3929 = vadd.f32 %v3861, %v3889
  %v3930 = vadd.f32 %v3862, %v3889
  %v3931 = vadd.f32 %v3863, %v3889
  %v3932 = vadd.f32 %v3864, %v3889
  %v3933 = vadd.f32 %v3865, %v3889
  %v3934 = vadd.f32 %v3866, %v3889
  %v3935 = vadd.f32 %v3867, %v3889
  %v3936 = vadd.f32 %v3868, %v3889
  %v3937 = vadd.f32 %v3869, %v3889
  %v3938 = vadd.f32 %v3870, %v3889
  %v3939 = vadd.f32 %v3871, %v3889
  %v3940 = vadd.f32 %v3872, %v3889
  %v3941 = vadd.f32 %v3873, %v3889
  %v3942 = vadd.f32 %v3874, %v3889
  %v3943 = vadd.f32 %v3875, %v3889
  %v3944 = vadd.f32 %v3876, %v3889
  %v3945 = vadd.f32 %v3877, %v3889
  %v3946 = vadd.f32 %v3878, %v3889
  %v3947 = vadd.f32 %v3879, %v3889
  %v3948 = vadd.f32 %v3880, %v3889
  %v3949 = vadd.f32 %v3881, %v3889
  %v3950 = vadd.f32 %v3882, %v3889
  %v3951 = vadd.f32 %v3883, %v3889
  %v3952 = vadd.f32 %v3884, %v3889
  %v3953 = vadd.f32 %v3885, %v3889
  %v3954 = vadd.f32 %v3886, %v3889
  %3955 = vst.msk [vmem:[%s4] sm:$0xff] %vm3405, %v3891
  %3956 = vst.msk [vmem:[%s4 + $0x8] sm:$0xff] %vm3405, %v3892
  %3957 = vst.msk [vmem:[%s4 + $0x10] sm:$0xff] %vm3405, %v3893
  %3958 = vst.msk [vmem:[%s4 + $0x18] sm:$0xff] %vm3405, %v3894
  %3959 = vst.msk [vmem:[%s4 + $0x20] sm:$0xff] %vm3405, %v3895
  %3960 = vst.msk [vmem:[%s4 + $0x28] sm:$0xff] %vm3405, %v3896
  %3961 = vst.msk [vmem:[%s4 + $0x30] sm:$0xff] %vm3405, %v3897
  %3962 = vst.msk [vmem:[%s4 + $0x38] sm:$0xff] %vm3405, %v3898
  %3963 = vst.msk [vmem:[%s4 + $0x40] sm:$0xff] %vm3405, %v3899
  %3964 = vst.msk [vmem:[%s4 + $0x48] sm:$0xff] %vm3405, %v3900
  %3965 = vst.msk [vmem:[%s4 + $0x50] sm:$0xff] %vm3405, %v3901
  %3966 = vst.msk [vmem:[%s4 + $0x58] sm:$0xff] %vm3405, %v3902
  %3967 = vst.msk [vmem:[%s4 + $0x60] sm:$0xff] %vm3405, %v3903
  %3968 = vst.msk [vmem:[%s4 + $0x68] sm:$0xff] %vm3405, %v3904
  %3969 = vst.msk [vmem:[%s4 + $0x70] sm:$0xff] %vm3405, %v3905
  %3970 = vst.msk [vmem:[%s4 + $0x78] sm:$0xff] %vm3405, %v3906
  %3971 = vst.msk [vmem:[%s4 + $0x80] sm:$0xff] %vm3405, %v3907
  %3972 = vst.msk [vmem:[%s4 + $0x88] sm:$0xff] %vm3405, %v3908
  %3973 = vst.msk [vmem:[%s4 + $0x90] sm:$0xff] %vm3405, %v3909
  %3974 = vst.msk [vmem:[%s4 + $0x98] sm:$0xff] %vm3405, %v3910
  %3975 = vst.msk [vmem:[%s4 + $0xa0] sm:$0xff] %vm3405, %v3911
  %3976 = vst.msk [vmem:[%s4 + $0xa8] sm:$0xff] %vm3405, %v3912
  %3977 = vst.msk [vmem:[%s4 + $0xb0] sm:$0xff] %vm3405, %v3913
  %3978 = vst.msk [vmem:[%s4 + $0xb8] sm:$0xff] %vm3405, %v3914
  %3979 = vst.msk [vmem:[%s4 + $0xc0] sm:$0xff] %vm3405, %v3915
  %3980 = vst.msk [vmem:[%s4 + $0xc8] sm:$0xff] %vm3405, %v3916
  %3981 = vst.msk [vmem:[%s4 + $0xd0] sm:$0xff] %vm3405, %v3917
  %3982 = vst.msk [vmem:[%s4 + $0xd8] sm:$0xff] %vm3405, %v3918
  %3983 = vst.msk [vmem:[%s4 + $0xe0] sm:$0xff] %vm3405, %v3919
  %3984 = vst.msk [vmem:[%s4 + $0xe8] sm:$0xff] %vm3405, %v3920
  %3985 = vst.msk [vmem:[%s4 + $0xf0] sm:$0xff] %vm3405, %v3921
  %3986 = vst.msk [vmem:[%s4 + $0xf8] sm:$0xff] %vm3405, %v3922
  %3987 = vst.msk [vmem:[%s4 + $0x100] sm:$0xff] %vm3405, %v3923
  %3988 = vst.msk [vmem:[%s4 + $0x108] sm:$0xff] %vm3405, %v3924
  %3989 = vst.msk [vmem:[%s4 + $0x110] sm:$0xff] %vm3405, %v3925
  %3990 = vst.msk [vmem:[%s4 + $0x118] sm:$0xff] %vm3405, %v3926
  %3991 = vst.msk [vmem:[%s4 + $0x120] sm:$0xff] %vm3405, %v3927
  %3992 = vst.msk [vmem:[%s4 + $0x128] sm:$0xff] %vm3405, %v3928
  %3993 = vst.msk [vmem:[%s4 + $0x130] sm:$0xff] %vm3405, %v3929
  %3994 = vst.msk [vmem:[%s4 + $0x138] sm:$0xff] %vm3405, %v3930
  %3995 = vst.msk [vmem:[%s4 + $0x140] sm:$0xff] %vm3405, %v3931
  %3996 = vst.msk [vmem:[%s4 + $0x148] sm:$0xff] %vm3405, %v3932
  %3997 = vst.msk [vmem:[%s4 + $0x150] sm:$0xff] %vm3405, %v3933
  %3998 = vst.msk [vmem:[%s4 + $0x158] sm:$0xff] %vm3405, %v3934
  %3999 = vst.msk [vmem:[%s4 + $0x160] sm:$0xff] %vm3405, %v3935
  %4000 = vst.msk [vmem:[%s4 + $0x168] sm:$0xff] %vm3405, %v3936
  %4001 = vst.msk [vmem:[%s4 + $0x170] sm:$0xff] %vm3405, %v3937
  %4002 = vst.msk [vmem:[%s4 + $0x178] sm:$0xff] %vm3405, %v3938
  %4003 = vst.msk [vmem:[%s4 + $0x180] sm:$0xff] %vm3405, %v3939
  %4004 = vst.msk [vmem:[%s4 + $0x188] sm:$0xff] %vm3405, %v3940
  %4005 = vst.msk [vmem:[%s4 + $0x190] sm:$0xff] %vm3405, %v3941
  %4006 = vst.msk [vmem:[%s4 + $0x198] sm:$0xff] %vm3405, %v3942
  %4007 = vst.msk [vmem:[%s4 + $0x1a0] sm:$0xff] %vm3405, %v3943
  %4008 = vst.msk [vmem:[%s4 + $0x1a8] sm:$0xff] %vm3405, %v3944
  %4009 = vst.msk [vmem:[%s4 + $0x1b0] sm:$0xff] %vm3405, %v3945
  %4010 = vst.msk [vmem:[%s4 + $0x1b8] sm:$0xff] %vm3405, %v3946
  %4011 = vst.msk [vmem:[%s4 + $0x1c0] sm:$0xff] %vm3405, %v3947
  %4012 = vst.msk [vmem:[%s4 + $0x1c8] sm:$0xff] %vm3405, %v3948
  %4013 = vst.msk [vmem:[%s4 + $0x1d0] sm:$0xff] %vm3405, %v3949
  %4014 = vst.msk [vmem:[%s4 + $0x1d8] sm:$0xff] %vm3405, %v3950
  %4015 = vst.msk [vmem:[%s4 + $0x1e0] sm:$0xff] %vm3405, %v3951
  %4016 = vst.msk [vmem:[%s4 + $0x1e8] sm:$0xff] %vm3405, %v3952
  %4017 = vst.msk [vmem:[%s4 + $0x1f0] sm:$0xff] %vm3405, %v3953
  %4018 = vst.msk [vmem:[%s4 + $0x1f8] sm:$0xff] %vm3405, %v3954
  // Predicated region
  $region18: #{tcn_forward.1} parent=0 // pred_check
    _
  $region19: #{tcn_forward.1} parent=0 // pred_check_branch
    %4020 = sbr.rel (0) target = $region21
  $region20: #{tcn_forward.1} parent=0 // pred_region
    _
  $region21: #{tcn_forward.1} parent=0 // pred_fallthru
    _
  // Predicated region
  $region22: #{tcn_forward.1} parent=0 // pred_check
    _
  $region23: #{tcn_forward.1} parent=0 // pred_check_branch
    %4022 = sbr.rel (0) target = $region25
  $region24: #{tcn_forward.1} parent=0 // pred_region
    _
  $region25: #{tcn_forward.1} parent=0 // pred_fallthru
    _

</llo_original>
